<compile_context>
chip_gen: v6e
topology: v6e:2x2x1
jax: 0.10.0
libtpu: 0.0.40
codegen_flags: <defaults>
</compile_context>

<pallas_src>
import jax
import jax.numpy as jnp
from jax.experimental import pallas as pl
from jax.experimental.pallas import tpu as pltpu

BN_EPS = 1e-5      # nn.BatchNorm2d default
L2_EPS = 1e-12     # clamp for all-zero rows (PyTorch code would produce inf/NaN)


def _round_up(x, m):
    return (x + m - 1) // m * m


def reid_head_kernel(x_ref, scale_ref, bias_ref, o_ref):
    """x_ref: (TB, C, HW); scale_ref/bias_ref: (1, C) f32; o_ref: (TB, C)."""
    tb, _, hw = x_ref.shape
    inv_hw = jnp.float32(1.0 / hw)
    scale = scale_ref[...]                      # (1, C) f32, broadcast over rows
    bias = bias_ref[...]                        # (1, C) f32

    # Process the tile in sublane-aligned groups of 8 batch rows so the f32 accumulation
    # temp stays at (group, C, HW) instead of a full-tile f32 copy (matters for bf16 inputs).
    group = 8 if (tb % 8 == 0) else tb          # tb is a multiple of 8 or the full batch
    n_groups = tb // group

    def process(start):
        xg = x_ref[pl.ds(start, group), :, :]                         # (group, C, HW)
        # 1. GAP: f32-accumulating mean over the spatial (lane) axis.
        gap = jnp.sum(xg.astype(jnp.float32), axis=-1) * inv_hw       # (group, C) f32
        # 2. Folded BatchNorm2d (inference): gap * scale + bias.
        feat = gap * scale + bias                                     # (group, C)
        # 3. Row-wise L2 normalization via rsqrt (EUP) instead of sqrt + div.
        sq = jnp.sum(feat * feat, axis=-1, keepdims=True)             # (group, 1)
        inv_norm = jax.lax.rsqrt(jnp.maximum(sq, L2_EPS))
        o_ref[pl.ds(start, group), :] = (feat * inv_norm).astype(o_ref.dtype)

    if n_groups == 1:
        process(0)
    else:
        def body(g, carry):
            process(pl.multiple_of(g * group, group))
            return carry
        jax.lax.fori_loop(0, n_groups, body, jnp.int32(0))


def _vmem_limit_bytes():
    """Per-generation scoped-VMEM limit: ~75% of physical VMEM, capped at 100 MiB.

    Falls back to 48 MiB (safe on v5e/v6e 128 MiB and v7x 64 MiB physical) if the query fails.
    """
    cap = None
    try:
        info = pltpu.get_tpu_info()
        cap = getattr(info, "vmem_capacity_bytes", None)
    except Exception:
        cap = None
    if not cap:
        cap = 64 * 1024 * 1024
    return int(min(cap * 3 // 4, 100 * 1024 * 1024))


def _pick_batch_tile(B, C, HW, in_itemsize, out_itemsize, budget_bytes):
    """Largest batch tile whose *real* VMEM footprint (lane padding to 128, sublane padding,
    double buffering, f32 group temp) fits the budget; tb is a multiple of 8 or the full batch,
    and we prefer >= 2 grid steps so pipelining / v7x megacore actually engage."""
    c_pad8 = _round_up(C, 8)
    c_pad128 = _round_up(C, 128)
    hw_pad = _round_up(HW, 128)

    def footprint(tb):
        group = 8 if tb % 8 == 0 else tb
        in_block = 2 * tb * c_pad8 * hw_pad * in_itemsize          # double-buffered input block
        f32_tmp = group * c_pad8 * hw_pad * 4                      # per-group f32 accumulation temp
        out_block = 2 * _round_up(tb, 8) * c_pad128 * out_itemsize  # double-buffered output block
        params = 2 * 2 * c_pad128 * 4                              # scale + bias, double-buffered
        return in_block + f32_tmp + out_block + params

    # Valid block heights: multiples of 8 that divide B, or the full batch (full-extent block).
    candidates = sorted({B} | {tb for tb in range(8, B + 1, 8) if B % tb == 0})
    feasible = [tb for tb in candidates if footprint(tb) <= budget_bytes]
    if not feasible:
        # Nothing fits the budget cleanly: take the smallest-footprint candidate and let the
        # explicit vmem_limit absorb it.
        return min(candidates, key=footprint)
    # Prefer >= 2 grid steps (DMA/compute overlap; v7x 2-TC sharding), then the largest tile.
    multi = [tb for tb in feasible if B // tb >= 2]
    pool = multi if multi else feasible
    return max(pool)


def reid_head(x_nchw, gamma, beta, running_mean, running_var, *, out_dtype=jnp.float32):
    """x_nchw: (B, C, H, W) backbone feature map (f32 or bf16) -> (B, C) L2-normed features."""
    B, C, H, W = x_nchw.shape
    HW = H * W

    # Free reshape: HW is already contiguous in NCHW, so no HBM transpose/copy is materialized.
    x = x_nchw.reshape(B, C, HW)

    # Fold BN (eval mode) into a single scale/bias pair (host side, tiny (C,) math).
    scale = (gamma.astype(jnp.float32) *
             jax.lax.rsqrt(running_var.astype(jnp.float32) + BN_EPS))
    bias = beta.astype(jnp.float32) - running_mean.astype(jnp.float32) * scale
    scale = scale.reshape(1, C)
    bias = bias.reshape(1, C)

    in_itemsize = jnp.dtype(x.dtype).itemsize
    out_itemsize = jnp.dtype(out_dtype).itemsize
    vmem_limit = _vmem_limit_bytes()
    tb = _pick_batch_tile(B, C, HW, in_itemsize, out_itemsize,
                          budget_bytes=int(vmem_limit * 0.8))
    grid = (B // tb,)

    cost = pl.CostEstimate(
        flops=2 * B * C * HW + 6 * B * C,
        transcendentals=B,
        bytes_accessed=B * C * HW * in_itemsize
        + B * C * out_itemsize
        + 2 * C * 4,
    )

    out = pl.pallas_call(
        reid_head_kernel,
        out_shape=jax.ShapeDtypeStruct((B, C), out_dtype),
        grid_spec=pltpu.PrefetchScalarGridSpec(
            num_scalar_prefetch=0,
            grid=grid,
            in_specs=[
                pl.BlockSpec((tb, C, HW), lambda i: (i, 0, 0)),
                pl.BlockSpec((1, C), lambda i: (0, 0)),
                pl.BlockSpec((1, C), lambda i: (0, 0)),
            ],
            out_specs=pl.BlockSpec((tb, C), lambda i: (i, 0)),
        ),
        compiler_params=pltpu.CompilerParams(
            dimension_semantics=("parallel",),   # megacore sharding on v7x (>= 2 grid steps)
            vmem_limit_bytes=vmem_limit,
        ),
        cost_estimate=cost,
    )(x, scale, bias)
    return out


def reid_head_reference(x_nchw, gamma, beta, running_mean, running_var):
    """Plain-JAX reference mirroring the PyTorch forward."""
    B, C, H, W = x_nchw.shape
    gap = jnp.mean(x_nchw.astype(jnp.float32), axis=(2, 3))                      # AvgPool2d((h,w))
    feat = (gap - running_mean) / jnp.sqrt(running_var + BN_EPS) * gamma + beta  # BN2d (eval)
    feat = feat.reshape(-1, C)                                                   # view(-1, FEAT_DIM)
    norm = jnp.sqrt(jnp.sum(jnp.square(feat), axis=1, keepdims=True))            # l2_normalize
    return feat / norm


if __name__ == "__main__":
    # Small shapes consistent with the forward: FEAT_DIM channels, spatial feature map.
    # B=16 exercises the multiple-of-8 batch tiling and a >=2-step grid.
    B, FEAT_DIM, H, W = 16, 256, 8, 8

    key = jax.random.PRNGKey(0)
    kx, kg, kb, km, kv = jax.random.split(key, 5)

    # Stand-in for ResNet-50 output features (backbone not provided in source).
    x_feat = jax.random.normal(kx, (B, FEAT_DIM, H, W), dtype=jnp.float32)

    # Non-trivial BatchNorm2d(FEAT_DIM) parameters to exercise the folded-BN path.
    gamma = jax.random.uniform(kg, (FEAT_DIM,), jnp.float32, 0.5, 1.5)
    beta = 0.1 * jax.random.normal(kb, (FEAT_DIM,), dtype=jnp.float32)
    running_mean = 0.1 * jax.random.normal(km, (FEAT_DIM,), dtype=jnp.float32)
    running_var = jax.random.uniform(kv, (FEAT_DIM,), jnp.float32, 0.5, 1.5)

    out = reid_head(x_feat, gamma, beta, running_mean, running_var)
    out = jax.block_until_ready(out)

    ref = reid_head_reference(x_feat, gamma, beta, running_mean, running_var)
    assert out.shape == (B, FEAT_DIM)
    assert jnp.allclose(out, ref, atol=1e-4, rtol=1e-4), "mismatch vs reference"

    print("KERNEL_OK")
</pallas_src>

<mosaic_0001>
module attributes {stable_mosaic.version = 11 : i64} {
  func.func @reid_head_kernel(%arg0: i32, %arg1: memref<8x256x64xf32, #tpu.memory_space<vmem>>, %arg2: memref<1x256xf32, #tpu.memory_space<vmem>>, %arg3: memref<1x256xf32, #tpu.memory_space<vmem>>, %arg4: memref<8x256xf32, #tpu.memory_space<vmem>>) attributes {dimension_semantics = [#tpu.dimension_semantics<parallel>], iteration_bounds = array<i64: 2>, scalar_prefetch = 0 : i64, scratch_operands = 0 : i64, tpu.core_type = #tpu.core_type<tc>, window_params = [{transform_indices = @transform_0, window_bounds = array<i64: 8, 256, 64>}, {pipeline_mode = #tpu.pipeline_mode<synchronous>, transform_indices = @transform_1, window_bounds = array<i64: 1, 256>}, {pipeline_mode = #tpu.pipeline_mode<synchronous>, transform_indices = @transform_2, window_bounds = array<i64: 1, 256>}, {transform_indices = @transform_3, window_bounds = array<i64: 8, 256>}]} {
    %c0 = arith.constant 0 : index
    %c0_0 = arith.constant 0 : index
    %0 = vector.load %arg2[%c0, %c0_0] : memref<1x256xf32, #tpu.memory_space<vmem>>, vector<1x256xf32>
    %c0_1 = arith.constant 0 : index
    %c0_2 = arith.constant 0 : index
    %1 = vector.load %arg3[%c0_1, %c0_2] : memref<1x256xf32, #tpu.memory_space<vmem>>, vector<1x256xf32>
    %c0_3 = arith.constant 0 : index
    %c0_4 = arith.constant 0 : index
    %c0_5 = arith.constant 0 : index
    %2 = vector.load %arg1[%c0_3, %c0_4, %c0_5] : memref<8x256x64xf32, #tpu.memory_space<vmem>>, vector<8x256x64xf32>
    %cst = arith.constant dense<0.000000e+00> : vector<8x256xf32>
    %3 = vector.multi_reduction <add>, %2, %cst [2] : vector<8x256x64xf32> to vector<8x256xf32>
    %cst_6 = arith.constant 1.562500e-02 : f32
    %4 = vector.broadcast %cst_6 : f32 to vector<8x256xf32>
    %5 = arith.mulf %3, %4 : vector<8x256xf32>
    %6 = vector.broadcast %0 : vector<1x256xf32> to vector<8x256xf32>
    %7 = arith.mulf %5, %6 : vector<8x256xf32>
    %8 = vector.broadcast %1 : vector<1x256xf32> to vector<8x256xf32>
    %9 = arith.addf %7, %8 : vector<8x256xf32>
    %10 = arith.mulf %9, %9 : vector<8x256xf32>
    %cst_7 = arith.constant dense<0.000000e+00> : vector<8xf32>
    %11 = vector.multi_reduction <add>, %10, %cst_7 [1] : vector<8x256xf32> to vector<8xf32>
    %12 = vector.shape_cast %11 : vector<8xf32> to vector<8x1xf32>
    %cst_8 = arith.constant 9.99999996E-13 : f32
    %13 = vector.broadcast %cst_8 : f32 to vector<8x1xf32>
    %14 = arith.maximumf %12, %13 : vector<8x1xf32>
    %15 = math.rsqrt %14 : vector<8x1xf32>
    %16 = vector.broadcast %15 : vector<8x1xf32> to vector<8x256xf32>
    %17 = arith.mulf %9, %16 : vector<8x256xf32>
    %c0_9 = arith.constant 0 : index
    %c0_10 = arith.constant 0 : index
    %18 = vector.load %arg4[%c0_9, %c0_10] : memref<8x256xf32, #tpu.memory_space<vmem>>, vector<8x256xf32>
    tpu.vector_store %arg4[%c0_9, %c0_10], %17 {strides = array<i32>} : memref<8x256xf32, #tpu.memory_space<vmem>>, vector<8x256xf32>,
    return
  }
  func.func @transform_0(%arg0: i32) -> (i32, i32, i32) {
    %c0_i32 = arith.constant 0 : i32
    %c0_i32_0 = arith.constant 0 : i32
    %c0_i32_1 = arith.constant 0 : i32
    return %arg0, %c0_i32, %c0_i32_0 : i32, i32, i32
  }
  func.func @transform_1(%arg0: i32) -> (i32, i32) {
    %c0_i32 = arith.constant 0 : i32
    %c0_i32_0 = arith.constant 0 : i32
    %c0_i32_1 = arith.constant 0 : i32
    return %c0_i32, %c0_i32_0 : i32, i32
  }
  func.func @transform_2(%arg0: i32) -> (i32, i32) {
    %c0_i32 = arith.constant 0 : i32
    %c0_i32_0 = arith.constant 0 : i32
    %c0_i32_1 = arith.constant 0 : i32
    return %c0_i32, %c0_i32_0 : i32, i32
  }
  func.func @transform_3(%arg0: i32) -> (i32, i32) {
    %c0_i32 = arith.constant 0 : i32
    %c0_i32_0 = arith.constant 0 : i32
    return %arg0, %c0_i32 : i32, i32
  }
}

</mosaic_0001>

<llo_original>
// kernel: tpu_custom_call.1
$region0: #{tpu_custom_call.1}
  #allocation0 [shape = 'u32[]', space=smem, size = 0x4, offset = 0x4, fixed_abs, tag = 'smem constant byte address 0x4 - core index']
  #allocation1 [shape = 'u32[144,128]{1,0:T(1,128)}', space=vmem, size = 0x12000, scoped, tag = 'internal scratch']
  %s0 = inlined_call_operand.vmem [shape: f32[16,256,64], index: 0, kind: input, shape index: {}]
  %s1 = inlined_call_operand.vmem [shape: f32[1,256], index: 1, kind: input, shape index: {}]
  %s2 = inlined_call_operand.vmem [shape: f32[1,256], index: 2, kind: input, shape index: {}]
  %s3 = inlined_call_operand.hbm [shape: f32[16,256], index: 3, kind: output, shape index: {}]
  %s4 = sld [smem:[#allocation0]]
  $region45: #{tpu_custom_call.1} parent=0
    _
  %s6 = ssub.s32 1, %s4
  %s7 = scalar_select 0, %s6, %s4
  $region1: #{tpu_custom_call.1} parent=0
    #allocation2 [shape = 'u8[16384]{0}', space=vmem, size = 0x4000, scoped, tag = 'output window, operand 0']
    #allocation3 [shape = 's32[2]{0}', space=sflag, size = 0x8, scoped, tag = 'scoped memory for tpu_custom_call.1']
    %8 = vsyncpa [#allocation3], 0
    %s9 = scalar_lea.sflag [#allocation3], 1
    %10 = vsyncpa %s9, 0
    loop: start=0, step=1, limit=4
    $region2: #{tpu_custom_call.1} parent=1 // loop_pre_header
      _
    $region3: #{tpu_custom_call.1} parent=1 // loop_header
      %s12 = sphi 0, %s16
      %p13 = scmp.ge.s32.totalorder %s12, 4
      %s22 = sphi 0, %s24
      %s25 = sphi 0, %s22
      %s26 = sphi 0, %s25
      %s42 = sphi 0, %s26
      %s46 = sphi 0, %s46
      %s48 = sphi 0, %s46
      %s49 = sphi 0, %s48
      %s63 = sphi 0, %s49
      %s67 = sphi 0, %s67
      %s69 = sphi 0, %s67
      %s70 = sphi 0, %s69
      %s84 = sphi 0, %s70
      %s90 = sphi 0, %s92
      %s93 = sphi 0, %s90
      %s94 = sphi 0, %s93
      %s110 = sphi 0, %s94
    $region4: #{tpu_custom_call.1} parent=1 // loop_header_branch
      %15 = sbr.rel (%p13) target = $region8
    $region5: #{tpu_custom_call.1} parent=1 // loop_body
      %s17 = ssub.s32 %s12, 1
      %s18 = ssub.s32 %s12, 2
      %s19 = sadd.s32 %s12, 1
      %s20 = ssub.s32 %s12, %s19
      %p21 = scmp.eq.s32.totalorder %s20, 0
      %s23 = sadd.s32 %s22, 1
      %s24 = scalar_select %p21, %s22, %s23
      %p27 = pneg %p21
      %p28 = scmp.eq.s32.totalorder %s12, 1
      %p29 = por %p27, %p28
      %p30 = scmp.ne.s32.totalorder %s22, %s25
      %p31 = scmp.eq.s32.totalorder %s12, 0
      %p32 = por %p30, %p31
      %p33 = scmp.ne.s32.totalorder %s22, %s25
      %p34 = scmp.eq.s32.totalorder %s17, 1
      %p35 = por %p33, %p34
      %p36 = scmp.ne.s32.totalorder %s25, %s26
      %p37 = scmp.eq.s32.totalorder %s17, 0
      %p38 = por %p36, %p37
      %p39 = scmp.ne.s32.totalorder %s25, %s26
      %p40 = scmp.eq.s32.totalorder %s18, 1
      %p41 = por %p39, %p40
      %p43 = scmp.ne.s32.totalorder %s26, %s42
      %p44 = scmp.eq.s32.totalorder %s18, 0
      %p45 = por %p43, %p44
      %s47 = sadd.s32 %s46, 1
      %p50 = scmp.eq.s32.totalorder %s12, 1
      %p51 = scmp.ne.s32.totalorder %s46, %s48
      %p52 = scmp.eq.s32.totalorder %s12, 0
      %p53 = por %p51, %p52
      %p54 = scmp.ne.s32.totalorder %s46, %s48
      %p55 = scmp.eq.s32.totalorder %s17, 1
      %p56 = por %p54, %p55
      %p57 = scmp.ne.s32.totalorder %s48, %s49
      %p58 = scmp.eq.s32.totalorder %s17, 0
      %p59 = por %p57, %p58
      %p60 = scmp.ne.s32.totalorder %s48, %s49
      %p61 = scmp.eq.s32.totalorder %s18, 1
      %p62 = por %p60, %p61
      %p64 = scmp.ne.s32.totalorder %s49, %s63
      %p65 = scmp.eq.s32.totalorder %s18, 0
      %p66 = por %p64, %p65
      %s68 = sadd.s32 %s67, 1
      %p71 = scmp.eq.s32.totalorder %s12, 1
      %p72 = scmp.ne.s32.totalorder %s67, %s69
      %p73 = scmp.eq.s32.totalorder %s12, 0
      %p74 = por %p72, %p73
      %p75 = scmp.ne.s32.totalorder %s67, %s69
      %p76 = scmp.eq.s32.totalorder %s17, 1
      %p77 = por %p75, %p76
      %p78 = scmp.ne.s32.totalorder %s69, %s70
      %p79 = scmp.eq.s32.totalorder %s17, 0
      %p80 = por %p78, %p79
      %p81 = scmp.ne.s32.totalorder %s69, %s70
      %p82 = scmp.eq.s32.totalorder %s18, 1
      %p83 = por %p81, %p82
      %p85 = scmp.ne.s32.totalorder %s70, %s84
      %p86 = scmp.eq.s32.totalorder %s18, 0
      %p87 = por %p85, %p86
      %s88 = ssub.s32 %s12, %s19
      %p89 = scmp.eq.s32.totalorder %s88, 0
      %s91 = sadd.s32 %s90, 1
      %s92 = scalar_select %p89, %s90, %s91
      %p95 = pneg %p89
      %p96 = scmp.eq.s32.totalorder %s12, 1
      %p97 = por %p95, %p96
      %p98 = scmp.ne.s32.totalorder %s90, %s93
      %p99 = scmp.eq.s32.totalorder %s12, 0
      %p100 = por %p98, %p99
      %p101 = scmp.ne.s32.totalorder %s90, %s93
      %p102 = scmp.eq.s32.totalorder %s17, 1
      %p103 = por %p101, %p102
      %p104 = scmp.ne.s32.totalorder %s93, %s94
      %p105 = scmp.eq.s32.totalorder %s17, 0
      %p106 = por %p104, %p105
      %p107 = scmp.ne.s32.totalorder %s93, %s94
      %p108 = scmp.eq.s32.totalorder %s18, 1
      %p109 = por %p107, %p108
      %p111 = scmp.ne.s32.totalorder %s94, %s110
      %p112 = scmp.eq.s32.totalorder %s18, 0
      %p113 = por %p111, %p112
      %p114 = scmp.le.s32.totalorder 1, %s12
      %p115 = scmp.lt.s32.totalorder %s12, 3
      %p116 = pnand %p114, %p115
      %p117 = pneg %p116
      // Predicated region
      $region9: #{tpu_custom_call.1} parent=5 // pred_check
        _
      $region10: #{tpu_custom_call.1} parent=5 // pred_check_branch
        %119 = sbr.rel (%p116) target = $region12
      $region11: #{tpu_custom_call.1} parent=5 // pred_region
        %s120 = ssub.s32 %s12, 1
        // Predicated region
        $region13: #{tpu_custom_call.1} parent=11 // pred_check
          %p121 = pneg %p59
        $region14: #{tpu_custom_call.1} parent=11 // pred_check_branch
          %123 = sbr.rel (%p121) target = $region16
        $region15: #{tpu_custom_call.1} parent=11 // pred_region
          _
        $region16: #{tpu_custom_call.1} parent=11 // pred_fallthru
          _
        // Predicated region
        $region17: #{tpu_custom_call.1} parent=11 // pred_check
          %p124 = pneg %p80
        $region18: #{tpu_custom_call.1} parent=11 // pred_check_branch
          %126 = sbr.rel (%p124) target = $region20
        $region19: #{tpu_custom_call.1} parent=11 // pred_region
          _
        $region20: #{tpu_custom_call.1} parent=11 // pred_fallthru
          _
      $region12: #{tpu_custom_call.1} parent=5 // pred_fallthru
        _
      %p127 = scmp.lt.s32.totalorder %s12, 2
      // Predicated region
      $region21: #{tpu_custom_call.1} parent=5 // pred_check
        %p128 = pneg %p127
      $region22: #{tpu_custom_call.1} parent=5 // pred_check_branch
        %130 = sbr.rel (%p128) target = $region24
      $region23: #{tpu_custom_call.1} parent=5 // pred_region
        // Predicated region
        $region25: #{tpu_custom_call.1} parent=23 // pred_check
          %p131 = pneg %p32
        $region26: #{tpu_custom_call.1} parent=23 // pred_check_branch
          %133 = sbr.rel (%p131) target = $region28
        $region27: #{tpu_custom_call.1} parent=23 // pred_region
          %s134 = smul.u32 8, %s12
          %p135 = scmp.lt.s32.totalorder %s134, 15
          %s136 = scalar_select %p135, %s134, 15
          %s137 = smul.addr %s136, 32
          %s138 = smul.addr %s137, 8
          %s139 = scalar_lea.vmem %s0, %s138
          %s140 = smul.u32 8, %s12
        $region28: #{tpu_custom_call.1} parent=23 // pred_fallthru
          _
      $region24: #{tpu_custom_call.1} parent=5 // pred_fallthru
        _
      %p141 = scmp.le.s32.totalorder 1, %s12
      %p142 = scmp.lt.s32.totalorder %s12, 3
      %p143 = pnand %p141, %p142
      %p144 = pneg %p143
      // Predicated region
      $region29: #{tpu_custom_call.1} parent=5 // pred_check
        _
      $region30: #{tpu_custom_call.1} parent=5 // pred_check_branch
        %146 = sbr.rel (%p143) target = $region32
      $region31: #{tpu_custom_call.1} parent=5 // pred_region
        %s147 = ssub.s32 %s12, 1
        %s148 = smul.u32 8, %s17
        %p149 = scmp.lt.s32.totalorder %s148, 15
        %s150 = scalar_select %p149, %s148, 15
        %s151 = smul.addr %s150, 32
        %s152 = smul.addr %s151, 8
        %s153 = scalar_lea.vmem %s0, %s152
        %p154 = pneg %p38
        %p155 = pneg %p35
        %p156 = pneg %p59
        %p157 = pneg %p56
        %p158 = pneg %p80
        %p159 = pneg %p77
        %p160 = pneg %p106
        %p161 = pneg %p103
        %s162 = sand.u32 %s93, 1
        %s163 = scalar_lea.sflag [#allocation3], %s162
        %s164 = sand.u32 %s93, 1
        %s165 = smul.addr %s164, 16
        %s166 = scalar_lea.vmem [#allocation2], %s165
        %s167 = smul.u32 8, %s17
        %p168 = scmp.lt.s32.totalorder %s167, 15
        %s169 = scalar_select %p168, %s167, 15
        %s170 = smul.addr %s169, 32
        %s171 = smul.addr %s170, 8
        %s172 = scalar_lea.vmem %s0, %s171
        %s173 = smul.u32 8, %s17
        %v174 = vld [vmem:[%s1] sm:$0x3]
        %v175 = vld [vmem:[%s2] sm:$0x3]
        %v176 = vld [vmem:[%s172] sm:$0xff]
        %v177 = vld [vmem:[%s172 + $0x8] sm:$0xff]
        %v178 = vld [vmem:[%s172 + $0x10] sm:$0xff]
        %v179 = vld [vmem:[%s172 + $0x18] sm:$0xff]
        %v180 = vld [vmem:[%s172 + $0x20] sm:$0xff]
        %v181 = vld [vmem:[%s172 + $0x28] sm:$0xff]
        %v182 = vld [vmem:[%s172 + $0x30] sm:$0xff]
        %v183 = vld [vmem:[%s172 + $0x38] sm:$0xff]
        %v184 = vld [vmem:[%s172 + $0x40] sm:$0xff]
        %v185 = vld [vmem:[%s172 + $0x48] sm:$0xff]
        %v186 = vld [vmem:[%s172 + $0x50] sm:$0xff]
        %v187 = vld [vmem:[%s172 + $0x58] sm:$0xff]
        %v188 = vld [vmem:[%s172 + $0x60] sm:$0xff]
        %v189 = vld [vmem:[%s172 + $0x68] sm:$0xff]
        %v190 = vld [vmem:[%s172 + $0x70] sm:$0xff]
        %v191 = vld [vmem:[%s172 + $0x78] sm:$0xff]
        %v192 = vld [vmem:[%s172 + $0x80] sm:$0xff]
        %v193 = vld [vmem:[%s172 + $0x88] sm:$0xff]
        %v194 = vld [vmem:[%s172 + $0x90] sm:$0xff]
        %v195 = vld [vmem:[%s172 + $0x98] sm:$0xff]
        %v196 = vld [vmem:[%s172 + $0xa0] sm:$0xff]
        %v197 = vld [vmem:[%s172 + $0xa8] sm:$0xff]
        %v198 = vld [vmem:[%s172 + $0xb0] sm:$0xff]
        %v199 = vld [vmem:[%s172 + $0xb8] sm:$0xff]
        %v200 = vld [vmem:[%s172 + $0xc0] sm:$0xff]
        %v201 = vld [vmem:[%s172 + $0xc8] sm:$0xff]
        %v202 = vld [vmem:[%s172 + $0xd0] sm:$0xff]
        %v203 = vld [vmem:[%s172 + $0xd8] sm:$0xff]
        %v204 = vld [vmem:[%s172 + $0xe0] sm:$0xff]
        %v205 = vld [vmem:[%s172 + $0xe8] sm:$0xff]
        %v206 = vld [vmem:[%s172 + $0xf0] sm:$0xff]
        %v207 = vld [vmem:[%s172 + $0xf8] sm:$0xff]
        %v208 = vld [vmem:[%s172 + $0x100] sm:$0xff]
        %v209 = vld [vmem:[%s172 + $0x108] sm:$0xff]
        %v210 = vld [vmem:[%s172 + $0x110] sm:$0xff]
        %v211 = vld [vmem:[%s172 + $0x118] sm:$0xff]
        %v212 = vld [vmem:[%s172 + $0x120] sm:$0xff]
        %v213 = vld [vmem:[%s172 + $0x128] sm:$0xff]
        %v214 = vld [vmem:[%s172 + $0x130] sm:$0xff]
        %v215 = vld [vmem:[%s172 + $0x138] sm:$0xff]
        %v216 = vld [vmem:[%s172 + $0x140] sm:$0xff]
        %v217 = vld [vmem:[%s172 + $0x148] sm:$0xff]
        %v218 = vld [vmem:[%s172 + $0x150] sm:$0xff]
        %v219 = vld [vmem:[%s172 + $0x158] sm:$0xff]
        %v220 = vld [vmem:[%s172 + $0x160] sm:$0xff]
        %v221 = vld [vmem:[%s172 + $0x168] sm:$0xff]
        %v222 = vld [vmem:[%s172 + $0x170] sm:$0xff]
        %v223 = vld [vmem:[%s172 + $0x178] sm:$0xff]
        %v224 = vld [vmem:[%s172 + $0x180] sm:$0xff]
        %v225 = vld [vmem:[%s172 + $0x188] sm:$0xff]
        %v226 = vld [vmem:[%s172 + $0x190] sm:$0xff]
        %v227 = vld [vmem:[%s172 + $0x198] sm:$0xff]
        %v228 = vld [vmem:[%s172 + $0x1a0] sm:$0xff]
        %v229 = vld [vmem:[%s172 + $0x1a8] sm:$0xff]
        %v230 = vld [vmem:[%s172 + $0x1b0] sm:$0xff]
        %v231 = vld [vmem:[%s172 + $0x1b8] sm:$0xff]
        %v232 = vld [vmem:[%s172 + $0x1c0] sm:$0xff]
        %v233 = vld [vmem:[%s172 + $0x1c8] sm:$0xff]
        %v234 = vld [vmem:[%s172 + $0x1d0] sm:$0xff]
        %v235 = vld [vmem:[%s172 + $0x1d8] sm:$0xff]
        %v236 = vld [vmem:[%s172 + $0x1e0] sm:$0xff]
        %v237 = vld [vmem:[%s172 + $0x1e8] sm:$0xff]
        %v238 = vld [vmem:[%s172 + $0x1f0] sm:$0xff]
        %v239 = vld [vmem:[%s172 + $0x1f8] sm:$0xff]
        %v240 = vld [vmem:[%s172 + $0x200] sm:$0xff]
        %v241 = vld [vmem:[%s172 + $0x208] sm:$0xff]
        %v242 = vld [vmem:[%s172 + $0x210] sm:$0xff]
        %v243 = vld [vmem:[%s172 + $0x218] sm:$0xff]
        %v244 = vld [vmem:[%s172 + $0x220] sm:$0xff]
        %v245 = vld [vmem:[%s172 + $0x228] sm:$0xff]
        %v246 = vld [vmem:[%s172 + $0x230] sm:$0xff]
        %v247 = vld [vmem:[%s172 + $0x238] sm:$0xff]
        %v248 = vld [vmem:[%s172 + $0x240] sm:$0xff]
        %v249 = vld [vmem:[%s172 + $0x248] sm:$0xff]
        %v250 = vld [vmem:[%s172 + $0x250] sm:$0xff]
        %v251 = vld [vmem:[%s172 + $0x258] sm:$0xff]
        %v252 = vld [vmem:[%s172 + $0x260] sm:$0xff]
        %v253 = vld [vmem:[%s172 + $0x268] sm:$0xff]
        %v254 = vld [vmem:[%s172 + $0x270] sm:$0xff]
        %v255 = vld [vmem:[%s172 + $0x278] sm:$0xff]
        %v256 = vld [vmem:[%s172 + $0x280] sm:$0xff]
        %v257 = vld [vmem:[%s172 + $0x288] sm:$0xff]
        %v258 = vld [vmem:[%s172 + $0x290] sm:$0xff]
        %v259 = vld [vmem:[%s172 + $0x298] sm:$0xff]
        %v260 = vld [vmem:[%s172 + $0x2a0] sm:$0xff]
        %v261 = vld [vmem:[%s172 + $0x2a8] sm:$0xff]
        %v262 = vld [vmem:[%s172 + $0x2b0] sm:$0xff]
        %v263 = vld [vmem:[%s172 + $0x2b8] sm:$0xff]
        %v264 = vld [vmem:[%s172 + $0x2c0] sm:$0xff]
        %v265 = vld [vmem:[%s172 + $0x2c8] sm:$0xff]
        %v266 = vld [vmem:[%s172 + $0x2d0] sm:$0xff]
        %v267 = vld [vmem:[%s172 + $0x2d8] sm:$0xff]
        %v268 = vld [vmem:[%s172 + $0x2e0] sm:$0xff]
        %v269 = vld [vmem:[%s172 + $0x2e8] sm:$0xff]
        %v270 = vld [vmem:[%s172 + $0x2f0] sm:$0xff]
        %v271 = vld [vmem:[%s172 + $0x2f8] sm:$0xff]
        %v272 = vld [vmem:[%s172 + $0x300] sm:$0xff]
        %v273 = vld [vmem:[%s172 + $0x308] sm:$0xff]
        %v274 = vld [vmem:[%s172 + $0x310] sm:$0xff]
        %v275 = vld [vmem:[%s172 + $0x318] sm:$0xff]
        %v276 = vld [vmem:[%s172 + $0x320] sm:$0xff]
        %v277 = vld [vmem:[%s172 + $0x328] sm:$0xff]
        %v278 = vld [vmem:[%s172 + $0x330] sm:$0xff]
        %v279 = vld [vmem:[%s172 + $0x338] sm:$0xff]
        %v280 = vld [vmem:[%s172 + $0x340] sm:$0xff]
        %v281 = vld [vmem:[%s172 + $0x348] sm:$0xff]
        %v282 = vld [vmem:[%s172 + $0x350] sm:$0xff]
        %v283 = vld [vmem:[%s172 + $0x358] sm:$0xff]
        %v284 = vld [vmem:[%s172 + $0x360] sm:$0xff]
        %v285 = vld [vmem:[%s172 + $0x368] sm:$0xff]
        %v286 = vld [vmem:[%s172 + $0x370] sm:$0xff]
        %v287 = vld [vmem:[%s172 + $0x378] sm:$0xff]
        %v288 = vld [vmem:[%s172 + $0x380] sm:$0xff]
        %v289 = vld [vmem:[%s172 + $0x388] sm:$0xff]
        %v290 = vld [vmem:[%s172 + $0x390] sm:$0xff]
        %v291 = vld [vmem:[%s172 + $0x398] sm:$0xff]
        %v292 = vld [vmem:[%s172 + $0x3a0] sm:$0xff]
        %v293 = vld [vmem:[%s172 + $0x3a8] sm:$0xff]
        %v294 = vld [vmem:[%s172 + $0x3b0] sm:$0xff]
        %v295 = vld [vmem:[%s172 + $0x3b8] sm:$0xff]
        %v296 = vld [vmem:[%s172 + $0x3c0] sm:$0xff]
        %v297 = vld [vmem:[%s172 + $0x3c8] sm:$0xff]
        %v298 = vld [vmem:[%s172 + $0x3d0] sm:$0xff]
        %v299 = vld [vmem:[%s172 + $0x3d8] sm:$0xff]
        %v300 = vld [vmem:[%s172 + $0x3e0] sm:$0xff]
        %v301 = vld [vmem:[%s172 + $0x3e8] sm:$0xff]
        %v302 = vld [vmem:[%s172 + $0x3f0] sm:$0xff]
        %v303 = vld [vmem:[%s172 + $0x3f8] sm:$0xff]
        %v304 = vld [vmem:[%s172 + $0x400] sm:$0xff]
        %v305 = vld [vmem:[%s172 + $0x408] sm:$0xff]
        %v306 = vld [vmem:[%s172 + $0x410] sm:$0xff]
        %v307 = vld [vmem:[%s172 + $0x418] sm:$0xff]
        %v308 = vld [vmem:[%s172 + $0x420] sm:$0xff]
        %v309 = vld [vmem:[%s172 + $0x428] sm:$0xff]
        %v310 = vld [vmem:[%s172 + $0x430] sm:$0xff]
        %v311 = vld [vmem:[%s172 + $0x438] sm:$0xff]
        %v312 = vld [vmem:[%s172 + $0x440] sm:$0xff]
        %v313 = vld [vmem:[%s172 + $0x448] sm:$0xff]
        %v314 = vld [vmem:[%s172 + $0x450] sm:$0xff]
        %v315 = vld [vmem:[%s172 + $0x458] sm:$0xff]
        %v316 = vld [vmem:[%s172 + $0x460] sm:$0xff]
        %v317 = vld [vmem:[%s172 + $0x468] sm:$0xff]
        %v318 = vld [vmem:[%s172 + $0x470] sm:$0xff]
        %v319 = vld [vmem:[%s172 + $0x478] sm:$0xff]
        %v320 = vld [vmem:[%s172 + $0x480] sm:$0xff]
        %v321 = vld [vmem:[%s172 + $0x488] sm:$0xff]
        %v322 = vld [vmem:[%s172 + $0x490] sm:$0xff]
        %v323 = vld [vmem:[%s172 + $0x498] sm:$0xff]
        %v324 = vld [vmem:[%s172 + $0x4a0] sm:$0xff]
        %v325 = vld [vmem:[%s172 + $0x4a8] sm:$0xff]
        %v326 = vld [vmem:[%s172 + $0x4b0] sm:$0xff]
        %v327 = vld [vmem:[%s172 + $0x4b8] sm:$0xff]
        %v328 = vld [vmem:[%s172 + $0x4c0] sm:$0xff]
        %v329 = vld [vmem:[%s172 + $0x4c8] sm:$0xff]
        %v330 = vld [vmem:[%s172 + $0x4d0] sm:$0xff]
        %v331 = vld [vmem:[%s172 + $0x4d8] sm:$0xff]
        %v332 = vld [vmem:[%s172 + $0x4e0] sm:$0xff]
        %v333 = vld [vmem:[%s172 + $0x4e8] sm:$0xff]
        %v334 = vld [vmem:[%s172 + $0x4f0] sm:$0xff]
        %v335 = vld [vmem:[%s172 + $0x4f8] sm:$0xff]
        %v336 = vld [vmem:[%s172 + $0x500] sm:$0xff]
        %v337 = vld [vmem:[%s172 + $0x508] sm:$0xff]
        %v338 = vld [vmem:[%s172 + $0x510] sm:$0xff]
        %v339 = vld [vmem:[%s172 + $0x518] sm:$0xff]
        %v340 = vld [vmem:[%s172 + $0x520] sm:$0xff]
        %v341 = vld [vmem:[%s172 + $0x528] sm:$0xff]
        %v342 = vld [vmem:[%s172 + $0x530] sm:$0xff]
        %v343 = vld [vmem:[%s172 + $0x538] sm:$0xff]
        %v344 = vld [vmem:[%s172 + $0x540] sm:$0xff]
        %v345 = vld [vmem:[%s172 + $0x548] sm:$0xff]
        %v346 = vld [vmem:[%s172 + $0x550] sm:$0xff]
        %v347 = vld [vmem:[%s172 + $0x558] sm:$0xff]
        %v348 = vld [vmem:[%s172 + $0x560] sm:$0xff]
        %v349 = vld [vmem:[%s172 + $0x568] sm:$0xff]
        %v350 = vld [vmem:[%s172 + $0x570] sm:$0xff]
        %v351 = vld [vmem:[%s172 + $0x578] sm:$0xff]
        %v352 = vld [vmem:[%s172 + $0x580] sm:$0xff]
        %v353 = vld [vmem:[%s172 + $0x588] sm:$0xff]
        %v354 = vld [vmem:[%s172 + $0x590] sm:$0xff]
        %v355 = vld [vmem:[%s172 + $0x598] sm:$0xff]
        %v356 = vld [vmem:[%s172 + $0x5a0] sm:$0xff]
        %v357 = vld [vmem:[%s172 + $0x5a8] sm:$0xff]
        %v358 = vld [vmem:[%s172 + $0x5b0] sm:$0xff]
        %v359 = vld [vmem:[%s172 + $0x5b8] sm:$0xff]
        %v360 = vld [vmem:[%s172 + $0x5c0] sm:$0xff]
        %v361 = vld [vmem:[%s172 + $0x5c8] sm:$0xff]
        %v362 = vld [vmem:[%s172 + $0x5d0] sm:$0xff]
        %v363 = vld [vmem:[%s172 + $0x5d8] sm:$0xff]
        %v364 = vld [vmem:[%s172 + $0x5e0] sm:$0xff]
        %v365 = vld [vmem:[%s172 + $0x5e8] sm:$0xff]
        %v366 = vld [vmem:[%s172 + $0x5f0] sm:$0xff]
        %v367 = vld [vmem:[%s172 + $0x5f8] sm:$0xff]
        %v368 = vld [vmem:[%s172 + $0x600] sm:$0xff]
        %v369 = vld [vmem:[%s172 + $0x608] sm:$0xff]
        %v370 = vld [vmem:[%s172 + $0x610] sm:$0xff]
        %v371 = vld [vmem:[%s172 + $0x618] sm:$0xff]
        %v372 = vld [vmem:[%s172 + $0x620] sm:$0xff]
        %v373 = vld [vmem:[%s172 + $0x628] sm:$0xff]
        %v374 = vld [vmem:[%s172 + $0x630] sm:$0xff]
        %v375 = vld [vmem:[%s172 + $0x638] sm:$0xff]
        %v376 = vld [vmem:[%s172 + $0x640] sm:$0xff]
        %v377 = vld [vmem:[%s172 + $0x648] sm:$0xff]
        %v378 = vld [vmem:[%s172 + $0x650] sm:$0xff]
        %v379 = vld [vmem:[%s172 + $0x658] sm:$0xff]
        %v380 = vld [vmem:[%s172 + $0x660] sm:$0xff]
        %v381 = vld [vmem:[%s172 + $0x668] sm:$0xff]
        %v382 = vld [vmem:[%s172 + $0x670] sm:$0xff]
        %v383 = vld [vmem:[%s172 + $0x678] sm:$0xff]
        %v384 = vld [vmem:[%s172 + $0x680] sm:$0xff]
        %v385 = vld [vmem:[%s172 + $0x688] sm:$0xff]
        %v386 = vld [vmem:[%s172 + $0x690] sm:$0xff]
        %v387 = vld [vmem:[%s172 + $0x698] sm:$0xff]
        %v388 = vld [vmem:[%s172 + $0x6a0] sm:$0xff]
        %v389 = vld [vmem:[%s172 + $0x6a8] sm:$0xff]
        %v390 = vld [vmem:[%s172 + $0x6b0] sm:$0xff]
        %v391 = vld [vmem:[%s172 + $0x6b8] sm:$0xff]
        %v392 = vld [vmem:[%s172 + $0x6c0] sm:$0xff]
        %v393 = vld [vmem:[%s172 + $0x6c8] sm:$0xff]
        %v394 = vld [vmem:[%s172 + $0x6d0] sm:$0xff]
        %v395 = vld [vmem:[%s172 + $0x6d8] sm:$0xff]
        %v396 = vld [vmem:[%s172 + $0x6e0] sm:$0xff]
        %v397 = vld [vmem:[%s172 + $0x6e8] sm:$0xff]
        %v398 = vld [vmem:[%s172 + $0x6f0] sm:$0xff]
        %v399 = vld [vmem:[%s172 + $0x6f8] sm:$0xff]
        %v400 = vld [vmem:[%s172 + $0x700] sm:$0xff]
        %v401 = vld [vmem:[%s172 + $0x708] sm:$0xff]
        %v402 = vld [vmem:[%s172 + $0x710] sm:$0xff]
        %v403 = vld [vmem:[%s172 + $0x718] sm:$0xff]
        %v404 = vld [vmem:[%s172 + $0x720] sm:$0xff]
        %v405 = vld [vmem:[%s172 + $0x728] sm:$0xff]
        %v406 = vld [vmem:[%s172 + $0x730] sm:$0xff]
        %v407 = vld [vmem:[%s172 + $0x738] sm:$0xff]
        %v408 = vld [vmem:[%s172 + $0x740] sm:$0xff]
        %v409 = vld [vmem:[%s172 + $0x748] sm:$0xff]
        %v410 = vld [vmem:[%s172 + $0x750] sm:$0xff]
        %v411 = vld [vmem:[%s172 + $0x758] sm:$0xff]
        %v412 = vld [vmem:[%s172 + $0x760] sm:$0xff]
        %v413 = vld [vmem:[%s172 + $0x768] sm:$0xff]
        %v414 = vld [vmem:[%s172 + $0x770] sm:$0xff]
        %v415 = vld [vmem:[%s172 + $0x778] sm:$0xff]
        %v416 = vld [vmem:[%s172 + $0x780] sm:$0xff]
        %v417 = vld [vmem:[%s172 + $0x788] sm:$0xff]
        %v418 = vld [vmem:[%s172 + $0x790] sm:$0xff]
        %v419 = vld [vmem:[%s172 + $0x798] sm:$0xff]
        %v420 = vld [vmem:[%s172 + $0x7a0] sm:$0xff]
        %v421 = vld [vmem:[%s172 + $0x7a8] sm:$0xff]
        %v422 = vld [vmem:[%s172 + $0x7b0] sm:$0xff]
        %v423 = vld [vmem:[%s172 + $0x7b8] sm:$0xff]
        %v424 = vld [vmem:[%s172 + $0x7c0] sm:$0xff]
        %v425 = vld [vmem:[%s172 + $0x7c8] sm:$0xff]
        %v426 = vld [vmem:[%s172 + $0x7d0] sm:$0xff]
        %v427 = vld [vmem:[%s172 + $0x7d8] sm:$0xff]
        %v428 = vld [vmem:[%s172 + $0x7e0] sm:$0xff]
        %v429 = vld [vmem:[%s172 + $0x7e8] sm:$0xff]
        %v430 = vld [vmem:[%s172 + $0x7f0] sm:$0xff]
        %v431 = vld [vmem:[%s172 + $0x7f8] sm:$0xff]
        %vm432 = vcmask 523264
        %v433 = vsel %vm432, %v176, 0.0
        %434 = vadd.xlane.f32.xlu0 %v433
        %v435 = vpop.xlane.xlu0 %434
        %v436 = vsel %vm432, %v177, 0.0
        %437 = vadd.xlane.f32.xlu0 %v436
        %v438 = vpop.xlane.xlu0 %437
        %v439 = vsel %vm432, %v178, 0.0
        %440 = vadd.xlane.f32.xlu0 %v439
        %v441 = vpop.xlane.xlu0 %440
        %v442 = vsel %vm432, %v179, 0.0
        %443 = vadd.xlane.f32.xlu0 %v442
        %v444 = vpop.xlane.xlu0 %443
        %v445 = vsel %vm432, %v180, 0.0
        %446 = vadd.xlane.f32.xlu0 %v445
        %v447 = vpop.xlane.xlu0 %446
        %v448 = vsel %vm432, %v181, 0.0
        %449 = vadd.xlane.f32.xlu0 %v448
        %v450 = vpop.xlane.xlu0 %449
        %v451 = vsel %vm432, %v182, 0.0
        %452 = vadd.xlane.f32.xlu0 %v451
        %v453 = vpop.xlane.xlu0 %452
        %v454 = vsel %vm432, %v183, 0.0
        %455 = vadd.xlane.f32.xlu0 %v454
        %v456 = vpop.xlane.xlu0 %455
        %v457 = vsel %vm432, %v184, 0.0
        %458 = vadd.xlane.f32.xlu0 %v457
        %v459 = vpop.xlane.xlu0 %458
        %v460 = vsel %vm432, %v185, 0.0
        %461 = vadd.xlane.f32.xlu0 %v460
        %v462 = vpop.xlane.xlu0 %461
        %v463 = vsel %vm432, %v186, 0.0
        %464 = vadd.xlane.f32.xlu0 %v463
        %v465 = vpop.xlane.xlu0 %464
        %v466 = vsel %vm432, %v187, 0.0
        %467 = vadd.xlane.f32.xlu0 %v466
        %v468 = vpop.xlane.xlu0 %467
        %v469 = vsel %vm432, %v188, 0.0
        %470 = vadd.xlane.f32.xlu0 %v469
        %v471 = vpop.xlane.xlu0 %470
        %v472 = vsel %vm432, %v189, 0.0
        %473 = vadd.xlane.f32.xlu0 %v472
        %v474 = vpop.xlane.xlu0 %473
        %v475 = vsel %vm432, %v190, 0.0
        %476 = vadd.xlane.f32.xlu0 %v475
        %v477 = vpop.xlane.xlu0 %476
        %v478 = vsel %vm432, %v191, 0.0
        %479 = vadd.xlane.f32.xlu0 %v478
        %v480 = vpop.xlane.xlu0 %479
        %v481 = vsel %vm432, %v192, 0.0
        %482 = vadd.xlane.f32.xlu0 %v481
        %v483 = vpop.xlane.xlu0 %482
        %v484 = vsel %vm432, %v193, 0.0
        %485 = vadd.xlane.f32.xlu0 %v484
        %v486 = vpop.xlane.xlu0 %485
        %v487 = vsel %vm432, %v194, 0.0
        %488 = vadd.xlane.f32.xlu0 %v487
        %v489 = vpop.xlane.xlu0 %488
        %v490 = vsel %vm432, %v195, 0.0
        %491 = vadd.xlane.f32.xlu0 %v490
        %v492 = vpop.xlane.xlu0 %491
        %v493 = vsel %vm432, %v196, 0.0
        %494 = vadd.xlane.f32.xlu0 %v493
        %v495 = vpop.xlane.xlu0 %494
        %v496 = vsel %vm432, %v197, 0.0
        %497 = vadd.xlane.f32.xlu0 %v496
        %v498 = vpop.xlane.xlu0 %497
        %v499 = vsel %vm432, %v198, 0.0
        %500 = vadd.xlane.f32.xlu0 %v499
        %v501 = vpop.xlane.xlu0 %500
        %v502 = vsel %vm432, %v199, 0.0
        %503 = vadd.xlane.f32.xlu0 %v502
        %v504 = vpop.xlane.xlu0 %503
        %v505 = vsel %vm432, %v200, 0.0
        %506 = vadd.xlane.f32.xlu0 %v505
        %v507 = vpop.xlane.xlu0 %506
        %v508 = vsel %vm432, %v201, 0.0
        %509 = vadd.xlane.f32.xlu0 %v508
        %v510 = vpop.xlane.xlu0 %509
        %v511 = vsel %vm432, %v202, 0.0
        %512 = vadd.xlane.f32.xlu0 %v511
        %v513 = vpop.xlane.xlu0 %512
        %v514 = vsel %vm432, %v203, 0.0
        %515 = vadd.xlane.f32.xlu0 %v514
        %v516 = vpop.xlane.xlu0 %515
        %v517 = vsel %vm432, %v204, 0.0
        %518 = vadd.xlane.f32.xlu0 %v517
        %v519 = vpop.xlane.xlu0 %518
        %v520 = vsel %vm432, %v205, 0.0
        %521 = vadd.xlane.f32.xlu0 %v520
        %v522 = vpop.xlane.xlu0 %521
        %v523 = vsel %vm432, %v206, 0.0
        %524 = vadd.xlane.f32.xlu0 %v523
        %v525 = vpop.xlane.xlu0 %524
        %v526 = vsel %vm432, %v207, 0.0
        %527 = vadd.xlane.f32.xlu0 %v526
        %v528 = vpop.xlane.xlu0 %527
        %v529 = vsel %vm432, %v208, 0.0
        %530 = vadd.xlane.f32.xlu0 %v529
        %v531 = vpop.xlane.xlu0 %530
        %v532 = vsel %vm432, %v209, 0.0
        %533 = vadd.xlane.f32.xlu0 %v532
        %v534 = vpop.xlane.xlu0 %533
        %v535 = vsel %vm432, %v210, 0.0
        %536 = vadd.xlane.f32.xlu0 %v535
        %v537 = vpop.xlane.xlu0 %536
        %v538 = vsel %vm432, %v211, 0.0
        %539 = vadd.xlane.f32.xlu0 %v538
        %v540 = vpop.xlane.xlu0 %539
        %v541 = vsel %vm432, %v212, 0.0
        %542 = vadd.xlane.f32.xlu0 %v541
        %v543 = vpop.xlane.xlu0 %542
        %v544 = vsel %vm432, %v213, 0.0
        %545 = vadd.xlane.f32.xlu0 %v544
        %v546 = vpop.xlane.xlu0 %545
        %v547 = vsel %vm432, %v214, 0.0
        %548 = vadd.xlane.f32.xlu0 %v547
        %v549 = vpop.xlane.xlu0 %548
        %v550 = vsel %vm432, %v215, 0.0
        %551 = vadd.xlane.f32.xlu0 %v550
        %v552 = vpop.xlane.xlu0 %551
        %v553 = vsel %vm432, %v216, 0.0
        %554 = vadd.xlane.f32.xlu0 %v553
        %v555 = vpop.xlane.xlu0 %554
        %v556 = vsel %vm432, %v217, 0.0
        %557 = vadd.xlane.f32.xlu0 %v556
        %v558 = vpop.xlane.xlu0 %557
        %v559 = vsel %vm432, %v218, 0.0
        %560 = vadd.xlane.f32.xlu0 %v559
        %v561 = vpop.xlane.xlu0 %560
        %v562 = vsel %vm432, %v219, 0.0
        %563 = vadd.xlane.f32.xlu0 %v562
        %v564 = vpop.xlane.xlu0 %563
        %v565 = vsel %vm432, %v220, 0.0
        %566 = vadd.xlane.f32.xlu0 %v565
        %v567 = vpop.xlane.xlu0 %566
        %v568 = vsel %vm432, %v221, 0.0
        %569 = vadd.xlane.f32.xlu0 %v568
        %v570 = vpop.xlane.xlu0 %569
        %v571 = vsel %vm432, %v222, 0.0
        %572 = vadd.xlane.f32.xlu0 %v571
        %v573 = vpop.xlane.xlu0 %572
        %v574 = vsel %vm432, %v223, 0.0
        %575 = vadd.xlane.f32.xlu0 %v574
        %v576 = vpop.xlane.xlu0 %575
        %v577 = vsel %vm432, %v224, 0.0
        %578 = vadd.xlane.f32.xlu0 %v577
        %v579 = vpop.xlane.xlu0 %578
        %v580 = vsel %vm432, %v225, 0.0
        %581 = vadd.xlane.f32.xlu0 %v580
        %v582 = vpop.xlane.xlu0 %581
        %v583 = vsel %vm432, %v226, 0.0
        %584 = vadd.xlane.f32.xlu0 %v583
        %v585 = vpop.xlane.xlu0 %584
        %v586 = vsel %vm432, %v227, 0.0
        %587 = vadd.xlane.f32.xlu0 %v586
        %v588 = vpop.xlane.xlu0 %587
        %v589 = vsel %vm432, %v228, 0.0
        %590 = vadd.xlane.f32.xlu0 %v589
        %v591 = vpop.xlane.xlu0 %590
        %v592 = vsel %vm432, %v229, 0.0
        %593 = vadd.xlane.f32.xlu0 %v592
        %v594 = vpop.xlane.xlu0 %593
        %v595 = vsel %vm432, %v230, 0.0
        %596 = vadd.xlane.f32.xlu0 %v595
        %v597 = vpop.xlane.xlu0 %596
        %v598 = vsel %vm432, %v231, 0.0
        %599 = vadd.xlane.f32.xlu0 %v598
        %v600 = vpop.xlane.xlu0 %599
        %v601 = vsel %vm432, %v232, 0.0
        %602 = vadd.xlane.f32.xlu0 %v601
        %v603 = vpop.xlane.xlu0 %602
        %v604 = vsel %vm432, %v233, 0.0
        %605 = vadd.xlane.f32.xlu0 %v604
        %v606 = vpop.xlane.xlu0 %605
        %v607 = vsel %vm432, %v234, 0.0
        %608 = vadd.xlane.f32.xlu0 %v607
        %v609 = vpop.xlane.xlu0 %608
        %v610 = vsel %vm432, %v235, 0.0
        %611 = vadd.xlane.f32.xlu0 %v610
        %v612 = vpop.xlane.xlu0 %611
        %v613 = vsel %vm432, %v236, 0.0
        %614 = vadd.xlane.f32.xlu0 %v613
        %v615 = vpop.xlane.xlu0 %614
        %v616 = vsel %vm432, %v237, 0.0
        %617 = vadd.xlane.f32.xlu0 %v616
        %v618 = vpop.xlane.xlu0 %617
        %v619 = vsel %vm432, %v238, 0.0
        %620 = vadd.xlane.f32.xlu0 %v619
        %v621 = vpop.xlane.xlu0 %620
        %v622 = vsel %vm432, %v239, 0.0
        %623 = vadd.xlane.f32.xlu0 %v622
        %v624 = vpop.xlane.xlu0 %623
        %v625 = vsel %vm432, %v240, 0.0
        %626 = vadd.xlane.f32.xlu0 %v625
        %v627 = vpop.xlane.xlu0 %626
        %v628 = vsel %vm432, %v241, 0.0
        %629 = vadd.xlane.f32.xlu0 %v628
        %v630 = vpop.xlane.xlu0 %629
        %v631 = vsel %vm432, %v242, 0.0
        %632 = vadd.xlane.f32.xlu0 %v631
        %v633 = vpop.xlane.xlu0 %632
        %v634 = vsel %vm432, %v243, 0.0
        %635 = vadd.xlane.f32.xlu0 %v634
        %v636 = vpop.xlane.xlu0 %635
        %v637 = vsel %vm432, %v244, 0.0
        %638 = vadd.xlane.f32.xlu0 %v637
        %v639 = vpop.xlane.xlu0 %638
        %v640 = vsel %vm432, %v245, 0.0
        %641 = vadd.xlane.f32.xlu0 %v640
        %v642 = vpop.xlane.xlu0 %641
        %v643 = vsel %vm432, %v246, 0.0
        %644 = vadd.xlane.f32.xlu0 %v643
        %v645 = vpop.xlane.xlu0 %644
        %v646 = vsel %vm432, %v247, 0.0
        %647 = vadd.xlane.f32.xlu0 %v646
        %v648 = vpop.xlane.xlu0 %647
        %v649 = vsel %vm432, %v248, 0.0
        %650 = vadd.xlane.f32.xlu0 %v649
        %v651 = vpop.xlane.xlu0 %650
        %v652 = vsel %vm432, %v249, 0.0
        %653 = vadd.xlane.f32.xlu0 %v652
        %v654 = vpop.xlane.xlu0 %653
        %v655 = vsel %vm432, %v250, 0.0
        %656 = vadd.xlane.f32.xlu0 %v655
        %v657 = vpop.xlane.xlu0 %656
        %v658 = vsel %vm432, %v251, 0.0
        %659 = vadd.xlane.f32.xlu0 %v658
        %v660 = vpop.xlane.xlu0 %659
        %v661 = vsel %vm432, %v252, 0.0
        %662 = vadd.xlane.f32.xlu0 %v661
        %v663 = vpop.xlane.xlu0 %662
        %v664 = vsel %vm432, %v253, 0.0
        %665 = vadd.xlane.f32.xlu0 %v664
        %v666 = vpop.xlane.xlu0 %665
        %v667 = vsel %vm432, %v254, 0.0
        %668 = vadd.xlane.f32.xlu0 %v667
        %v669 = vpop.xlane.xlu0 %668
        %v670 = vsel %vm432, %v255, 0.0
        %671 = vadd.xlane.f32.xlu0 %v670
        %v672 = vpop.xlane.xlu0 %671
        %v673 = vsel %vm432, %v256, 0.0
        %674 = vadd.xlane.f32.xlu0 %v673
        %v675 = vpop.xlane.xlu0 %674
        %v676 = vsel %vm432, %v257, 0.0
        %677 = vadd.xlane.f32.xlu0 %v676
        %v678 = vpop.xlane.xlu0 %677
        %v679 = vsel %vm432, %v258, 0.0
        %680 = vadd.xlane.f32.xlu0 %v679
        %v681 = vpop.xlane.xlu0 %680
        %v682 = vsel %vm432, %v259, 0.0
        %683 = vadd.xlane.f32.xlu0 %v682
        %v684 = vpop.xlane.xlu0 %683
        %v685 = vsel %vm432, %v260, 0.0
        %686 = vadd.xlane.f32.xlu0 %v685
        %v687 = vpop.xlane.xlu0 %686
        %v688 = vsel %vm432, %v261, 0.0
        %689 = vadd.xlane.f32.xlu0 %v688
        %v690 = vpop.xlane.xlu0 %689
        %v691 = vsel %vm432, %v262, 0.0
        %692 = vadd.xlane.f32.xlu0 %v691
        %v693 = vpop.xlane.xlu0 %692
        %v694 = vsel %vm432, %v263, 0.0
        %695 = vadd.xlane.f32.xlu0 %v694
        %v696 = vpop.xlane.xlu0 %695
        %v697 = vsel %vm432, %v264, 0.0
        %698 = vadd.xlane.f32.xlu0 %v697
        %v699 = vpop.xlane.xlu0 %698
        %v700 = vsel %vm432, %v265, 0.0
        %701 = vadd.xlane.f32.xlu0 %v700
        %v702 = vpop.xlane.xlu0 %701
        %v703 = vsel %vm432, %v266, 0.0
        %704 = vadd.xlane.f32.xlu0 %v703
        %v705 = vpop.xlane.xlu0 %704
        %v706 = vsel %vm432, %v267, 0.0
        %707 = vadd.xlane.f32.xlu0 %v706
        %v708 = vpop.xlane.xlu0 %707
        %v709 = vsel %vm432, %v268, 0.0
        %710 = vadd.xlane.f32.xlu0 %v709
        %v711 = vpop.xlane.xlu0 %710
        %v712 = vsel %vm432, %v269, 0.0
        %713 = vadd.xlane.f32.xlu0 %v712
        %v714 = vpop.xlane.xlu0 %713
        %v715 = vsel %vm432, %v270, 0.0
        %716 = vadd.xlane.f32.xlu0 %v715
        %v717 = vpop.xlane.xlu0 %716
        %v718 = vsel %vm432, %v271, 0.0
        %719 = vadd.xlane.f32.xlu0 %v718
        %v720 = vpop.xlane.xlu0 %719
        %v721 = vsel %vm432, %v272, 0.0
        %722 = vadd.xlane.f32.xlu0 %v721
        %v723 = vpop.xlane.xlu0 %722
        %v724 = vsel %vm432, %v273, 0.0
        %725 = vadd.xlane.f32.xlu0 %v724
        %v726 = vpop.xlane.xlu0 %725
        %v727 = vsel %vm432, %v274, 0.0
        %728 = vadd.xlane.f32.xlu0 %v727
        %v729 = vpop.xlane.xlu0 %728
        %v730 = vsel %vm432, %v275, 0.0
        %731 = vadd.xlane.f32.xlu0 %v730
        %v732 = vpop.xlane.xlu0 %731
        %v733 = vsel %vm432, %v276, 0.0
        %734 = vadd.xlane.f32.xlu0 %v733
        %v735 = vpop.xlane.xlu0 %734
        %v736 = vsel %vm432, %v277, 0.0
        %737 = vadd.xlane.f32.xlu0 %v736
        %v738 = vpop.xlane.xlu0 %737
        %v739 = vsel %vm432, %v278, 0.0
        %740 = vadd.xlane.f32.xlu0 %v739
        %v741 = vpop.xlane.xlu0 %740
        %v742 = vsel %vm432, %v279, 0.0
        %743 = vadd.xlane.f32.xlu0 %v742
        %v744 = vpop.xlane.xlu0 %743
        %v745 = vsel %vm432, %v280, 0.0
        %746 = vadd.xlane.f32.xlu0 %v745
        %v747 = vpop.xlane.xlu0 %746
        %v748 = vsel %vm432, %v281, 0.0
        %749 = vadd.xlane.f32.xlu0 %v748
        %v750 = vpop.xlane.xlu0 %749
        %v751 = vsel %vm432, %v282, 0.0
        %752 = vadd.xlane.f32.xlu0 %v751
        %v753 = vpop.xlane.xlu0 %752
        %v754 = vsel %vm432, %v283, 0.0
        %755 = vadd.xlane.f32.xlu0 %v754
        %v756 = vpop.xlane.xlu0 %755
        %v757 = vsel %vm432, %v284, 0.0
        %758 = vadd.xlane.f32.xlu0 %v757
        %v759 = vpop.xlane.xlu0 %758
        %v760 = vsel %vm432, %v285, 0.0
        %761 = vadd.xlane.f32.xlu0 %v760
        %v762 = vpop.xlane.xlu0 %761
        %v763 = vsel %vm432, %v286, 0.0
        %764 = vadd.xlane.f32.xlu0 %v763
        %v765 = vpop.xlane.xlu0 %764
        %v766 = vsel %vm432, %v287, 0.0
        %767 = vadd.xlane.f32.xlu0 %v766
        %v768 = vpop.xlane.xlu0 %767
        %v769 = vsel %vm432, %v288, 0.0
        %770 = vadd.xlane.f32.xlu0 %v769
        %v771 = vpop.xlane.xlu0 %770
        %v772 = vsel %vm432, %v289, 0.0
        %773 = vadd.xlane.f32.xlu0 %v772
        %v774 = vpop.xlane.xlu0 %773
        %v775 = vsel %vm432, %v290, 0.0
        %776 = vadd.xlane.f32.xlu0 %v775
        %v777 = vpop.xlane.xlu0 %776
        %v778 = vsel %vm432, %v291, 0.0
        %779 = vadd.xlane.f32.xlu0 %v778
        %v780 = vpop.xlane.xlu0 %779
        %v781 = vsel %vm432, %v292, 0.0
        %782 = vadd.xlane.f32.xlu0 %v781
        %v783 = vpop.xlane.xlu0 %782
        %v784 = vsel %vm432, %v293, 0.0
        %785 = vadd.xlane.f32.xlu0 %v784
        %v786 = vpop.xlane.xlu0 %785
        %v787 = vsel %vm432, %v294, 0.0
        %788 = vadd.xlane.f32.xlu0 %v787
        %v789 = vpop.xlane.xlu0 %788
        %v790 = vsel %vm432, %v295, 0.0
        %791 = vadd.xlane.f32.xlu0 %v790
        %v792 = vpop.xlane.xlu0 %791
        %v793 = vsel %vm432, %v296, 0.0
        %794 = vadd.xlane.f32.xlu0 %v793
        %v795 = vpop.xlane.xlu0 %794
        %v796 = vsel %vm432, %v297, 0.0
        %797 = vadd.xlane.f32.xlu0 %v796
        %v798 = vpop.xlane.xlu0 %797
        %v799 = vsel %vm432, %v298, 0.0
        %800 = vadd.xlane.f32.xlu0 %v799
        %v801 = vpop.xlane.xlu0 %800
        %v802 = vsel %vm432, %v299, 0.0
        %803 = vadd.xlane.f32.xlu0 %v802
        %v804 = vpop.xlane.xlu0 %803
        %v805 = vsel %vm432, %v300, 0.0
        %806 = vadd.xlane.f32.xlu0 %v805
        %v807 = vpop.xlane.xlu0 %806
        %v808 = vsel %vm432, %v301, 0.0
        %809 = vadd.xlane.f32.xlu0 %v808
        %v810 = vpop.xlane.xlu0 %809
        %v811 = vsel %vm432, %v302, 0.0
        %812 = vadd.xlane.f32.xlu0 %v811
        %v813 = vpop.xlane.xlu0 %812
        %v814 = vsel %vm432, %v303, 0.0
        %815 = vadd.xlane.f32.xlu0 %v814
        %v816 = vpop.xlane.xlu0 %815
        %v817 = vsel %vm432, %v304, 0.0
        %818 = vadd.xlane.f32.xlu0 %v817
        %v819 = vpop.xlane.xlu0 %818
        %v820 = vsel %vm432, %v305, 0.0
        %821 = vadd.xlane.f32.xlu0 %v820
        %v822 = vpop.xlane.xlu0 %821
        %v823 = vsel %vm432, %v306, 0.0
        %824 = vadd.xlane.f32.xlu0 %v823
        %v825 = vpop.xlane.xlu0 %824
        %v826 = vsel %vm432, %v307, 0.0
        %827 = vadd.xlane.f32.xlu0 %v826
        %v828 = vpop.xlane.xlu0 %827
        %v829 = vsel %vm432, %v308, 0.0
        %830 = vadd.xlane.f32.xlu0 %v829
        %v831 = vpop.xlane.xlu0 %830
        %v832 = vsel %vm432, %v309, 0.0
        %833 = vadd.xlane.f32.xlu0 %v832
        %v834 = vpop.xlane.xlu0 %833
        %v835 = vsel %vm432, %v310, 0.0
        %836 = vadd.xlane.f32.xlu0 %v835
        %v837 = vpop.xlane.xlu0 %836
        %v838 = vsel %vm432, %v311, 0.0
        %839 = vadd.xlane.f32.xlu0 %v838
        %v840 = vpop.xlane.xlu0 %839
        %v841 = vsel %vm432, %v312, 0.0
        %842 = vadd.xlane.f32.xlu0 %v841
        %v843 = vpop.xlane.xlu0 %842
        %v844 = vsel %vm432, %v313, 0.0
        %845 = vadd.xlane.f32.xlu0 %v844
        %v846 = vpop.xlane.xlu0 %845
        %v847 = vsel %vm432, %v314, 0.0
        %848 = vadd.xlane.f32.xlu0 %v847
        %v849 = vpop.xlane.xlu0 %848
        %v850 = vsel %vm432, %v315, 0.0
        %851 = vadd.xlane.f32.xlu0 %v850
        %v852 = vpop.xlane.xlu0 %851
        %v853 = vsel %vm432, %v316, 0.0
        %854 = vadd.xlane.f32.xlu0 %v853
        %v855 = vpop.xlane.xlu0 %854
        %v856 = vsel %vm432, %v317, 0.0
        %857 = vadd.xlane.f32.xlu0 %v856
        %v858 = vpop.xlane.xlu0 %857
        %v859 = vsel %vm432, %v318, 0.0
        %860 = vadd.xlane.f32.xlu0 %v859
        %v861 = vpop.xlane.xlu0 %860
        %v862 = vsel %vm432, %v319, 0.0
        %863 = vadd.xlane.f32.xlu0 %v862
        %v864 = vpop.xlane.xlu0 %863
        %v865 = vsel %vm432, %v320, 0.0
        %866 = vadd.xlane.f32.xlu0 %v865
        %v867 = vpop.xlane.xlu0 %866
        %v868 = vsel %vm432, %v321, 0.0
        %869 = vadd.xlane.f32.xlu0 %v868
        %v870 = vpop.xlane.xlu0 %869
        %v871 = vsel %vm432, %v322, 0.0
        %872 = vadd.xlane.f32.xlu0 %v871
        %v873 = vpop.xlane.xlu0 %872
        %v874 = vsel %vm432, %v323, 0.0
        %875 = vadd.xlane.f32.xlu0 %v874
        %v876 = vpop.xlane.xlu0 %875
        %v877 = vsel %vm432, %v324, 0.0
        %878 = vadd.xlane.f32.xlu0 %v877
        %v879 = vpop.xlane.xlu0 %878
        %v880 = vsel %vm432, %v325, 0.0
        %881 = vadd.xlane.f32.xlu0 %v880
        %v882 = vpop.xlane.xlu0 %881
        %v883 = vsel %vm432, %v326, 0.0
        %884 = vadd.xlane.f32.xlu0 %v883
        %v885 = vpop.xlane.xlu0 %884
        %v886 = vsel %vm432, %v327, 0.0
        %887 = vadd.xlane.f32.xlu0 %v886
        %v888 = vpop.xlane.xlu0 %887
        %v889 = vsel %vm432, %v328, 0.0
        %890 = vadd.xlane.f32.xlu0 %v889
        %v891 = vpop.xlane.xlu0 %890
        %v892 = vsel %vm432, %v329, 0.0
        %893 = vadd.xlane.f32.xlu0 %v892
        %v894 = vpop.xlane.xlu0 %893
        %v895 = vsel %vm432, %v330, 0.0
        %896 = vadd.xlane.f32.xlu0 %v895
        %v897 = vpop.xlane.xlu0 %896
        %v898 = vsel %vm432, %v331, 0.0
        %899 = vadd.xlane.f32.xlu0 %v898
        %v900 = vpop.xlane.xlu0 %899
        %v901 = vsel %vm432, %v332, 0.0
        %902 = vadd.xlane.f32.xlu0 %v901
        %v903 = vpop.xlane.xlu0 %902
        %v904 = vsel %vm432, %v333, 0.0
        %905 = vadd.xlane.f32.xlu0 %v904
        %v906 = vpop.xlane.xlu0 %905
        %v907 = vsel %vm432, %v334, 0.0
        %908 = vadd.xlane.f32.xlu0 %v907
        %v909 = vpop.xlane.xlu0 %908
        %v910 = vsel %vm432, %v335, 0.0
        %911 = vadd.xlane.f32.xlu0 %v910
        %v912 = vpop.xlane.xlu0 %911
        %v913 = vsel %vm432, %v336, 0.0
        %914 = vadd.xlane.f32.xlu0 %v913
        %v915 = vpop.xlane.xlu0 %914
        %v916 = vsel %vm432, %v337, 0.0
        %917 = vadd.xlane.f32.xlu0 %v916
        %v918 = vpop.xlane.xlu0 %917
        %v919 = vsel %vm432, %v338, 0.0
        %920 = vadd.xlane.f32.xlu0 %v919
        %v921 = vpop.xlane.xlu0 %920
        %v922 = vsel %vm432, %v339, 0.0
        %923 = vadd.xlane.f32.xlu0 %v922
        %v924 = vpop.xlane.xlu0 %923
        %v925 = vsel %vm432, %v340, 0.0
        %926 = vadd.xlane.f32.xlu0 %v925
        %v927 = vpop.xlane.xlu0 %926
        %v928 = vsel %vm432, %v341, 0.0
        %929 = vadd.xlane.f32.xlu0 %v928
        %v930 = vpop.xlane.xlu0 %929
        %v931 = vsel %vm432, %v342, 0.0
        %932 = vadd.xlane.f32.xlu0 %v931
        %v933 = vpop.xlane.xlu0 %932
        %v934 = vsel %vm432, %v343, 0.0
        %935 = vadd.xlane.f32.xlu0 %v934
        %v936 = vpop.xlane.xlu0 %935
        %v937 = vsel %vm432, %v344, 0.0
        %938 = vadd.xlane.f32.xlu0 %v937
        %v939 = vpop.xlane.xlu0 %938
        %v940 = vsel %vm432, %v345, 0.0
        %941 = vadd.xlane.f32.xlu0 %v940
        %v942 = vpop.xlane.xlu0 %941
        %v943 = vsel %vm432, %v346, 0.0
        %944 = vadd.xlane.f32.xlu0 %v943
        %v945 = vpop.xlane.xlu0 %944
        %v946 = vsel %vm432, %v347, 0.0
        %947 = vadd.xlane.f32.xlu0 %v946
        %v948 = vpop.xlane.xlu0 %947
        %v949 = vsel %vm432, %v348, 0.0
        %950 = vadd.xlane.f32.xlu0 %v949
        %v951 = vpop.xlane.xlu0 %950
        %v952 = vsel %vm432, %v349, 0.0
        %953 = vadd.xlane.f32.xlu0 %v952
        %v954 = vpop.xlane.xlu0 %953
        %v955 = vsel %vm432, %v350, 0.0
        %956 = vadd.xlane.f32.xlu0 %v955
        %v957 = vpop.xlane.xlu0 %956
        %v958 = vsel %vm432, %v351, 0.0
        %959 = vadd.xlane.f32.xlu0 %v958
        %v960 = vpop.xlane.xlu0 %959
        %v961 = vsel %vm432, %v352, 0.0
        %962 = vadd.xlane.f32.xlu0 %v961
        %v963 = vpop.xlane.xlu0 %962
        %v964 = vsel %vm432, %v353, 0.0
        %965 = vadd.xlane.f32.xlu0 %v964
        %v966 = vpop.xlane.xlu0 %965
        %v967 = vsel %vm432, %v354, 0.0
        %968 = vadd.xlane.f32.xlu0 %v967
        %v969 = vpop.xlane.xlu0 %968
        %v970 = vsel %vm432, %v355, 0.0
        %971 = vadd.xlane.f32.xlu0 %v970
        %v972 = vpop.xlane.xlu0 %971
        %v973 = vsel %vm432, %v356, 0.0
        %974 = vadd.xlane.f32.xlu0 %v973
        %v975 = vpop.xlane.xlu0 %974
        %v976 = vsel %vm432, %v357, 0.0
        %977 = vadd.xlane.f32.xlu0 %v976
        %v978 = vpop.xlane.xlu0 %977
        %v979 = vsel %vm432, %v358, 0.0
        %980 = vadd.xlane.f32.xlu0 %v979
        %v981 = vpop.xlane.xlu0 %980
        %v982 = vsel %vm432, %v359, 0.0
        %983 = vadd.xlane.f32.xlu0 %v982
        %v984 = vpop.xlane.xlu0 %983
        %v985 = vsel %vm432, %v360, 0.0
        %986 = vadd.xlane.f32.xlu0 %v985
        %v987 = vpop.xlane.xlu0 %986
        %v988 = vsel %vm432, %v361, 0.0
        %989 = vadd.xlane.f32.xlu0 %v988
        %v990 = vpop.xlane.xlu0 %989
        %v991 = vsel %vm432, %v362, 0.0
        %992 = vadd.xlane.f32.xlu0 %v991
        %v993 = vpop.xlane.xlu0 %992
        %v994 = vsel %vm432, %v363, 0.0
        %995 = vadd.xlane.f32.xlu0 %v994
        %v996 = vpop.xlane.xlu0 %995
        %v997 = vsel %vm432, %v364, 0.0
        %998 = vadd.xlane.f32.xlu0 %v997
        %v999 = vpop.xlane.xlu0 %998
        %v1000 = vsel %vm432, %v365, 0.0
        %1001 = vadd.xlane.f32.xlu0 %v1000
        %v1002 = vpop.xlane.xlu0 %1001
        %v1003 = vsel %vm432, %v366, 0.0
        %1004 = vadd.xlane.f32.xlu0 %v1003
        %v1005 = vpop.xlane.xlu0 %1004
        %v1006 = vsel %vm432, %v367, 0.0
        %1007 = vadd.xlane.f32.xlu0 %v1006
        %v1008 = vpop.xlane.xlu0 %1007
        %v1009 = vsel %vm432, %v368, 0.0
        %1010 = vadd.xlane.f32.xlu0 %v1009
        %v1011 = vpop.xlane.xlu0 %1010
        %v1012 = vsel %vm432, %v369, 0.0
        %1013 = vadd.xlane.f32.xlu0 %v1012
        %v1014 = vpop.xlane.xlu0 %1013
        %v1015 = vsel %vm432, %v370, 0.0
        %1016 = vadd.xlane.f32.xlu0 %v1015
        %v1017 = vpop.xlane.xlu0 %1016
        %v1018 = vsel %vm432, %v371, 0.0
        %1019 = vadd.xlane.f32.xlu0 %v1018
        %v1020 = vpop.xlane.xlu0 %1019
        %v1021 = vsel %vm432, %v372, 0.0
        %1022 = vadd.xlane.f32.xlu0 %v1021
        %v1023 = vpop.xlane.xlu0 %1022
        %v1024 = vsel %vm432, %v373, 0.0
        %1025 = vadd.xlane.f32.xlu0 %v1024
        %v1026 = vpop.xlane.xlu0 %1025
        %v1027 = vsel %vm432, %v374, 0.0
        %1028 = vadd.xlane.f32.xlu0 %v1027
        %v1029 = vpop.xlane.xlu0 %1028
        %v1030 = vsel %vm432, %v375, 0.0
        %1031 = vadd.xlane.f32.xlu0 %v1030
        %v1032 = vpop.xlane.xlu0 %1031
        %v1033 = vsel %vm432, %v376, 0.0
        %1034 = vadd.xlane.f32.xlu0 %v1033
        %v1035 = vpop.xlane.xlu0 %1034
        %v1036 = vsel %vm432, %v377, 0.0
        %1037 = vadd.xlane.f32.xlu0 %v1036
        %v1038 = vpop.xlane.xlu0 %1037
        %v1039 = vsel %vm432, %v378, 0.0
        %1040 = vadd.xlane.f32.xlu0 %v1039
        %v1041 = vpop.xlane.xlu0 %1040
        %v1042 = vsel %vm432, %v379, 0.0
        %1043 = vadd.xlane.f32.xlu0 %v1042
        %v1044 = vpop.xlane.xlu0 %1043
        %v1045 = vsel %vm432, %v380, 0.0
        %1046 = vadd.xlane.f32.xlu0 %v1045
        %v1047 = vpop.xlane.xlu0 %1046
        %v1048 = vsel %vm432, %v381, 0.0
        %1049 = vadd.xlane.f32.xlu0 %v1048
        %v1050 = vpop.xlane.xlu0 %1049
        %v1051 = vsel %vm432, %v382, 0.0
        %1052 = vadd.xlane.f32.xlu0 %v1051
        %v1053 = vpop.xlane.xlu0 %1052
        %v1054 = vsel %vm432, %v383, 0.0
        %1055 = vadd.xlane.f32.xlu0 %v1054
        %v1056 = vpop.xlane.xlu0 %1055
        %v1057 = vsel %vm432, %v384, 0.0
        %1058 = vadd.xlane.f32.xlu0 %v1057
        %v1059 = vpop.xlane.xlu0 %1058
        %v1060 = vsel %vm432, %v385, 0.0
        %1061 = vadd.xlane.f32.xlu0 %v1060
        %v1062 = vpop.xlane.xlu0 %1061
        %v1063 = vsel %vm432, %v386, 0.0
        %1064 = vadd.xlane.f32.xlu0 %v1063
        %v1065 = vpop.xlane.xlu0 %1064
        %v1066 = vsel %vm432, %v387, 0.0
        %1067 = vadd.xlane.f32.xlu0 %v1066
        %v1068 = vpop.xlane.xlu0 %1067
        %v1069 = vsel %vm432, %v388, 0.0
        %1070 = vadd.xlane.f32.xlu0 %v1069
        %v1071 = vpop.xlane.xlu0 %1070
        %v1072 = vsel %vm432, %v389, 0.0
        %1073 = vadd.xlane.f32.xlu0 %v1072
        %v1074 = vpop.xlane.xlu0 %1073
        %v1075 = vsel %vm432, %v390, 0.0
        %1076 = vadd.xlane.f32.xlu0 %v1075
        %v1077 = vpop.xlane.xlu0 %1076
        %v1078 = vsel %vm432, %v391, 0.0
        %1079 = vadd.xlane.f32.xlu0 %v1078
        %v1080 = vpop.xlane.xlu0 %1079
        %v1081 = vsel %vm432, %v392, 0.0
        %1082 = vadd.xlane.f32.xlu0 %v1081
        %v1083 = vpop.xlane.xlu0 %1082
        %v1084 = vsel %vm432, %v393, 0.0
        %1085 = vadd.xlane.f32.xlu0 %v1084
        %v1086 = vpop.xlane.xlu0 %1085
        %v1087 = vsel %vm432, %v394, 0.0
        %1088 = vadd.xlane.f32.xlu0 %v1087
        %v1089 = vpop.xlane.xlu0 %1088
        %v1090 = vsel %vm432, %v395, 0.0
        %1091 = vadd.xlane.f32.xlu0 %v1090
        %v1092 = vpop.xlane.xlu0 %1091
        %v1093 = vsel %vm432, %v396, 0.0
        %1094 = vadd.xlane.f32.xlu0 %v1093
        %v1095 = vpop.xlane.xlu0 %1094
        %v1096 = vsel %vm432, %v397, 0.0
        %1097 = vadd.xlane.f32.xlu0 %v1096
        %v1098 = vpop.xlane.xlu0 %1097
        %v1099 = vsel %vm432, %v398, 0.0
        %1100 = vadd.xlane.f32.xlu0 %v1099
        %v1101 = vpop.xlane.xlu0 %1100
        %v1102 = vsel %vm432, %v399, 0.0
        %1103 = vadd.xlane.f32.xlu0 %v1102
        %v1104 = vpop.xlane.xlu0 %1103
        %v1105 = vsel %vm432, %v400, 0.0
        %1106 = vadd.xlane.f32.xlu0 %v1105
        %v1107 = vpop.xlane.xlu0 %1106
        %v1108 = vsel %vm432, %v401, 0.0
        %1109 = vadd.xlane.f32.xlu0 %v1108
        %v1110 = vpop.xlane.xlu0 %1109
        %v1111 = vsel %vm432, %v402, 0.0
        %1112 = vadd.xlane.f32.xlu0 %v1111
        %v1113 = vpop.xlane.xlu0 %1112
        %v1114 = vsel %vm432, %v403, 0.0
        %1115 = vadd.xlane.f32.xlu0 %v1114
        %v1116 = vpop.xlane.xlu0 %1115
        %v1117 = vsel %vm432, %v404, 0.0
        %1118 = vadd.xlane.f32.xlu0 %v1117
        %v1119 = vpop.xlane.xlu0 %1118
        %v1120 = vsel %vm432, %v405, 0.0
        %1121 = vadd.xlane.f32.xlu0 %v1120
        %v1122 = vpop.xlane.xlu0 %1121
        %v1123 = vsel %vm432, %v406, 0.0
        %1124 = vadd.xlane.f32.xlu0 %v1123
        %v1125 = vpop.xlane.xlu0 %1124
        %v1126 = vsel %vm432, %v407, 0.0
        %1127 = vadd.xlane.f32.xlu0 %v1126
        %v1128 = vpop.xlane.xlu0 %1127
        %v1129 = vsel %vm432, %v408, 0.0
        %1130 = vadd.xlane.f32.xlu0 %v1129
        %v1131 = vpop.xlane.xlu0 %1130
        %v1132 = vsel %vm432, %v409, 0.0
        %1133 = vadd.xlane.f32.xlu0 %v1132
        %v1134 = vpop.xlane.xlu0 %1133
        %v1135 = vsel %vm432, %v410, 0.0
        %1136 = vadd.xlane.f32.xlu0 %v1135
        %v1137 = vpop.xlane.xlu0 %1136
        %v1138 = vsel %vm432, %v411, 0.0
        %1139 = vadd.xlane.f32.xlu0 %v1138
        %v1140 = vpop.xlane.xlu0 %1139
        %v1141 = vsel %vm432, %v412, 0.0
        %1142 = vadd.xlane.f32.xlu0 %v1141
        %v1143 = vpop.xlane.xlu0 %1142
        %v1144 = vsel %vm432, %v413, 0.0
        %1145 = vadd.xlane.f32.xlu0 %v1144
        %v1146 = vpop.xlane.xlu0 %1145
        %v1147 = vsel %vm432, %v414, 0.0
        %1148 = vadd.xlane.f32.xlu0 %v1147
        %v1149 = vpop.xlane.xlu0 %1148
        %v1150 = vsel %vm432, %v415, 0.0
        %1151 = vadd.xlane.f32.xlu0 %v1150
        %v1152 = vpop.xlane.xlu0 %1151
        %v1153 = vsel %vm432, %v416, 0.0
        %1154 = vadd.xlane.f32.xlu0 %v1153
        %v1155 = vpop.xlane.xlu0 %1154
        %v1156 = vsel %vm432, %v417, 0.0
        %1157 = vadd.xlane.f32.xlu0 %v1156
        %v1158 = vpop.xlane.xlu0 %1157
        %v1159 = vsel %vm432, %v418, 0.0
        %1160 = vadd.xlane.f32.xlu0 %v1159
        %v1161 = vpop.xlane.xlu0 %1160
        %v1162 = vsel %vm432, %v419, 0.0
        %1163 = vadd.xlane.f32.xlu0 %v1162
        %v1164 = vpop.xlane.xlu0 %1163
        %v1165 = vsel %vm432, %v420, 0.0
        %1166 = vadd.xlane.f32.xlu0 %v1165
        %v1167 = vpop.xlane.xlu0 %1166
        %v1168 = vsel %vm432, %v421, 0.0
        %1169 = vadd.xlane.f32.xlu0 %v1168
        %v1170 = vpop.xlane.xlu0 %1169
        %v1171 = vsel %vm432, %v422, 0.0
        %1172 = vadd.xlane.f32.xlu0 %v1171
        %v1173 = vpop.xlane.xlu0 %1172
        %v1174 = vsel %vm432, %v423, 0.0
        %1175 = vadd.xlane.f32.xlu0 %v1174
        %v1176 = vpop.xlane.xlu0 %1175
        %v1177 = vsel %vm432, %v424, 0.0
        %1178 = vadd.xlane.f32.xlu0 %v1177
        %v1179 = vpop.xlane.xlu0 %1178
        %v1180 = vsel %vm432, %v425, 0.0
        %1181 = vadd.xlane.f32.xlu0 %v1180
        %v1182 = vpop.xlane.xlu0 %1181
        %v1183 = vsel %vm432, %v426, 0.0
        %1184 = vadd.xlane.f32.xlu0 %v1183
        %v1185 = vpop.xlane.xlu0 %1184
        %v1186 = vsel %vm432, %v427, 0.0
        %1187 = vadd.xlane.f32.xlu0 %v1186
        %v1188 = vpop.xlane.xlu0 %1187
        %v1189 = vsel %vm432, %v428, 0.0
        %1190 = vadd.xlane.f32.xlu0 %v1189
        %v1191 = vpop.xlane.xlu0 %1190
        %v1192 = vsel %vm432, %v429, 0.0
        %1193 = vadd.xlane.f32.xlu0 %v1192
        %v1194 = vpop.xlane.xlu0 %1193
        %v1195 = vsel %vm432, %v430, 0.0
        %1196 = vadd.xlane.f32.xlu0 %v1195
        %v1197 = vpop.xlane.xlu0 %1196
        %v1198 = vsel %vm432, %v431, 0.0
        %1199 = vadd.xlane.f32.xlu0 %v1198
        %v1200 = vpop.xlane.xlu0 %1199
        %v1201 = vmul.f32 %v435, 0.015625
        %v1202 = vmul.f32 %v438, 0.015625
        %v1203 = vmul.f32 %v441, 0.015625
        %v1204 = vmul.f32 %v444, 0.015625
        %v1205 = vmul.f32 %v447, 0.015625
        %v1206 = vmul.f32 %v450, 0.015625
        %v1207 = vmul.f32 %v453, 0.015625
        %v1208 = vmul.f32 %v456, 0.015625
        %v1209 = vmul.f32 %v459, 0.015625
        %v1210 = vmul.f32 %v462, 0.015625
        %v1211 = vmul.f32 %v465, 0.015625
        %v1212 = vmul.f32 %v468, 0.015625
        %v1213 = vmul.f32 %v471, 0.015625
        %v1214 = vmul.f32 %v474, 0.015625
        %v1215 = vmul.f32 %v477, 0.015625
        %v1216 = vmul.f32 %v480, 0.015625
        %v1217 = vmul.f32 %v483, 0.015625
        %v1218 = vmul.f32 %v486, 0.015625
        %v1219 = vmul.f32 %v489, 0.015625
        %v1220 = vmul.f32 %v492, 0.015625
        %v1221 = vmul.f32 %v495, 0.015625
        %v1222 = vmul.f32 %v498, 0.015625
        %v1223 = vmul.f32 %v501, 0.015625
        %v1224 = vmul.f32 %v504, 0.015625
        %v1225 = vmul.f32 %v507, 0.015625
        %v1226 = vmul.f32 %v510, 0.015625
        %v1227 = vmul.f32 %v513, 0.015625
        %v1228 = vmul.f32 %v516, 0.015625
        %v1229 = vmul.f32 %v519, 0.015625
        %v1230 = vmul.f32 %v522, 0.015625
        %v1231 = vmul.f32 %v525, 0.015625
        %v1232 = vmul.f32 %v528, 0.015625
        %v1233 = vmul.f32 %v531, 0.015625
        %v1234 = vmul.f32 %v534, 0.015625
        %v1235 = vmul.f32 %v537, 0.015625
        %v1236 = vmul.f32 %v540, 0.015625
        %v1237 = vmul.f32 %v543, 0.015625
        %v1238 = vmul.f32 %v546, 0.015625
        %v1239 = vmul.f32 %v549, 0.015625
        %v1240 = vmul.f32 %v552, 0.015625
        %v1241 = vmul.f32 %v555, 0.015625
        %v1242 = vmul.f32 %v558, 0.015625
        %v1243 = vmul.f32 %v561, 0.015625
        %v1244 = vmul.f32 %v564, 0.015625
        %v1245 = vmul.f32 %v567, 0.015625
        %v1246 = vmul.f32 %v570, 0.015625
        %v1247 = vmul.f32 %v573, 0.015625
        %v1248 = vmul.f32 %v576, 0.015625
        %v1249 = vmul.f32 %v579, 0.015625
        %v1250 = vmul.f32 %v582, 0.015625
        %v1251 = vmul.f32 %v585, 0.015625
        %v1252 = vmul.f32 %v588, 0.015625
        %v1253 = vmul.f32 %v591, 0.015625
        %v1254 = vmul.f32 %v594, 0.015625
        %v1255 = vmul.f32 %v597, 0.015625
        %v1256 = vmul.f32 %v600, 0.015625
        %v1257 = vmul.f32 %v603, 0.015625
        %v1258 = vmul.f32 %v606, 0.015625
        %v1259 = vmul.f32 %v609, 0.015625
        %v1260 = vmul.f32 %v612, 0.015625
        %v1261 = vmul.f32 %v615, 0.015625
        %v1262 = vmul.f32 %v618, 0.015625
        %v1263 = vmul.f32 %v621, 0.015625
        %v1264 = vmul.f32 %v624, 0.015625
        %v1265 = vmul.f32 %v627, 0.015625
        %v1266 = vmul.f32 %v630, 0.015625
        %v1267 = vmul.f32 %v633, 0.015625
        %v1268 = vmul.f32 %v636, 0.015625
        %v1269 = vmul.f32 %v639, 0.015625
        %v1270 = vmul.f32 %v642, 0.015625
        %v1271 = vmul.f32 %v645, 0.015625
        %v1272 = vmul.f32 %v648, 0.015625
        %v1273 = vmul.f32 %v651, 0.015625
        %v1274 = vmul.f32 %v654, 0.015625
        %v1275 = vmul.f32 %v657, 0.015625
        %v1276 = vmul.f32 %v660, 0.015625
        %v1277 = vmul.f32 %v663, 0.015625
        %v1278 = vmul.f32 %v666, 0.015625
        %v1279 = vmul.f32 %v669, 0.015625
        %v1280 = vmul.f32 %v672, 0.015625
        %v1281 = vmul.f32 %v675, 0.015625
        %v1282 = vmul.f32 %v678, 0.015625
        %v1283 = vmul.f32 %v681, 0.015625
        %v1284 = vmul.f32 %v684, 0.015625
        %v1285 = vmul.f32 %v687, 0.015625
        %v1286 = vmul.f32 %v690, 0.015625
        %v1287 = vmul.f32 %v693, 0.015625
        %v1288 = vmul.f32 %v696, 0.015625
        %v1289 = vmul.f32 %v699, 0.015625
        %v1290 = vmul.f32 %v702, 0.015625
        %v1291 = vmul.f32 %v705, 0.015625
        %v1292 = vmul.f32 %v708, 0.015625
        %v1293 = vmul.f32 %v711, 0.015625
        %v1294 = vmul.f32 %v714, 0.015625
        %v1295 = vmul.f32 %v717, 0.015625
        %v1296 = vmul.f32 %v720, 0.015625
        %v1297 = vmul.f32 %v723, 0.015625
        %v1298 = vmul.f32 %v726, 0.015625
        %v1299 = vmul.f32 %v729, 0.015625
        %v1300 = vmul.f32 %v732, 0.015625
        %v1301 = vmul.f32 %v735, 0.015625
        %v1302 = vmul.f32 %v738, 0.015625
        %v1303 = vmul.f32 %v741, 0.015625
        %v1304 = vmul.f32 %v744, 0.015625
        %v1305 = vmul.f32 %v747, 0.015625
        %v1306 = vmul.f32 %v750, 0.015625
        %v1307 = vmul.f32 %v753, 0.015625
        %v1308 = vmul.f32 %v756, 0.015625
        %v1309 = vmul.f32 %v759, 0.015625
        %v1310 = vmul.f32 %v762, 0.015625
        %v1311 = vmul.f32 %v765, 0.015625
        %v1312 = vmul.f32 %v768, 0.015625
        %v1313 = vmul.f32 %v771, 0.015625
        %v1314 = vmul.f32 %v774, 0.015625
        %v1315 = vmul.f32 %v777, 0.015625
        %v1316 = vmul.f32 %v780, 0.015625
        %v1317 = vmul.f32 %v783, 0.015625
        %v1318 = vmul.f32 %v786, 0.015625
        %v1319 = vmul.f32 %v789, 0.015625
        %v1320 = vmul.f32 %v792, 0.015625
        %v1321 = vmul.f32 %v795, 0.015625
        %v1322 = vmul.f32 %v798, 0.015625
        %v1323 = vmul.f32 %v801, 0.015625
        %v1324 = vmul.f32 %v804, 0.015625
        %v1325 = vmul.f32 %v807, 0.015625
        %v1326 = vmul.f32 %v810, 0.015625
        %v1327 = vmul.f32 %v813, 0.015625
        %v1328 = vmul.f32 %v816, 0.015625
        %v1329 = vmul.f32 %v819, 0.015625
        %v1330 = vmul.f32 %v822, 0.015625
        %v1331 = vmul.f32 %v825, 0.015625
        %v1332 = vmul.f32 %v828, 0.015625
        %v1333 = vmul.f32 %v831, 0.015625
        %v1334 = vmul.f32 %v834, 0.015625
        %v1335 = vmul.f32 %v837, 0.015625
        %v1336 = vmul.f32 %v840, 0.015625
        %v1337 = vmul.f32 %v843, 0.015625
        %v1338 = vmul.f32 %v846, 0.015625
        %v1339 = vmul.f32 %v849, 0.015625
        %v1340 = vmul.f32 %v852, 0.015625
        %v1341 = vmul.f32 %v855, 0.015625
        %v1342 = vmul.f32 %v858, 0.015625
        %v1343 = vmul.f32 %v861, 0.015625
        %v1344 = vmul.f32 %v864, 0.015625
        %v1345 = vmul.f32 %v867, 0.015625
        %v1346 = vmul.f32 %v870, 0.015625
        %v1347 = vmul.f32 %v873, 0.015625
        %v1348 = vmul.f32 %v876, 0.015625
        %v1349 = vmul.f32 %v879, 0.015625
        %v1350 = vmul.f32 %v882, 0.015625
        %v1351 = vmul.f32 %v885, 0.015625
        %v1352 = vmul.f32 %v888, 0.015625
        %v1353 = vmul.f32 %v891, 0.015625
        %v1354 = vmul.f32 %v894, 0.015625
        %v1355 = vmul.f32 %v897, 0.015625
        %v1356 = vmul.f32 %v900, 0.015625
        %v1357 = vmul.f32 %v903, 0.015625
        %v1358 = vmul.f32 %v906, 0.015625
        %v1359 = vmul.f32 %v909, 0.015625
        %v1360 = vmul.f32 %v912, 0.015625
        %v1361 = vmul.f32 %v915, 0.015625
        %v1362 = vmul.f32 %v918, 0.015625
        %v1363 = vmul.f32 %v921, 0.015625
        %v1364 = vmul.f32 %v924, 0.015625
        %v1365 = vmul.f32 %v927, 0.015625
        %v1366 = vmul.f32 %v930, 0.015625
        %v1367 = vmul.f32 %v933, 0.015625
        %v1368 = vmul.f32 %v936, 0.015625
        %v1369 = vmul.f32 %v939, 0.015625
        %v1370 = vmul.f32 %v942, 0.015625
        %v1371 = vmul.f32 %v945, 0.015625
        %v1372 = vmul.f32 %v948, 0.015625
        %v1373 = vmul.f32 %v951, 0.015625
        %v1374 = vmul.f32 %v954, 0.015625
        %v1375 = vmul.f32 %v957, 0.015625
        %v1376 = vmul.f32 %v960, 0.015625
        %v1377 = vmul.f32 %v963, 0.015625
        %v1378 = vmul.f32 %v966, 0.015625
        %v1379 = vmul.f32 %v969, 0.015625
        %v1380 = vmul.f32 %v972, 0.015625
        %v1381 = vmul.f32 %v975, 0.015625
        %v1382 = vmul.f32 %v978, 0.015625
        %v1383 = vmul.f32 %v981, 0.015625
        %v1384 = vmul.f32 %v984, 0.015625
        %v1385 = vmul.f32 %v987, 0.015625
        %v1386 = vmul.f32 %v990, 0.015625
        %v1387 = vmul.f32 %v993, 0.015625
        %v1388 = vmul.f32 %v996, 0.015625
        %v1389 = vmul.f32 %v999, 0.015625
        %v1390 = vmul.f32 %v1002, 0.015625
        %v1391 = vmul.f32 %v1005, 0.015625
        %v1392 = vmul.f32 %v1008, 0.015625
        %v1393 = vmul.f32 %v1011, 0.015625
        %v1394 = vmul.f32 %v1014, 0.015625
        %v1395 = vmul.f32 %v1017, 0.015625
        %v1396 = vmul.f32 %v1020, 0.015625
        %v1397 = vmul.f32 %v1023, 0.015625
        %v1398 = vmul.f32 %v1026, 0.015625
        %v1399 = vmul.f32 %v1029, 0.015625
        %v1400 = vmul.f32 %v1032, 0.015625
        %v1401 = vmul.f32 %v1035, 0.015625
        %v1402 = vmul.f32 %v1038, 0.015625
        %v1403 = vmul.f32 %v1041, 0.015625
        %v1404 = vmul.f32 %v1044, 0.015625
        %v1405 = vmul.f32 %v1047, 0.015625
        %v1406 = vmul.f32 %v1050, 0.015625
        %v1407 = vmul.f32 %v1053, 0.015625
        %v1408 = vmul.f32 %v1056, 0.015625
        %v1409 = vmul.f32 %v1059, 0.015625
        %v1410 = vmul.f32 %v1062, 0.015625
        %v1411 = vmul.f32 %v1065, 0.015625
        %v1412 = vmul.f32 %v1068, 0.015625
        %v1413 = vmul.f32 %v1071, 0.015625
        %v1414 = vmul.f32 %v1074, 0.015625
        %v1415 = vmul.f32 %v1077, 0.015625
        %v1416 = vmul.f32 %v1080, 0.015625
        %v1417 = vmul.f32 %v1083, 0.015625
        %v1418 = vmul.f32 %v1086, 0.015625
        %v1419 = vmul.f32 %v1089, 0.015625
        %v1420 = vmul.f32 %v1092, 0.015625
        %v1421 = vmul.f32 %v1095, 0.015625
        %v1422 = vmul.f32 %v1098, 0.015625
        %v1423 = vmul.f32 %v1101, 0.015625
        %v1424 = vmul.f32 %v1104, 0.015625
        %v1425 = vmul.f32 %v1107, 0.015625
        %v1426 = vmul.f32 %v1110, 0.015625
        %v1427 = vmul.f32 %v1113, 0.015625
        %v1428 = vmul.f32 %v1116, 0.015625
        %v1429 = vmul.f32 %v1119, 0.015625
        %v1430 = vmul.f32 %v1122, 0.015625
        %v1431 = vmul.f32 %v1125, 0.015625
        %v1432 = vmul.f32 %v1128, 0.015625
        %v1433 = vmul.f32 %v1131, 0.015625
        %v1434 = vmul.f32 %v1134, 0.015625
        %v1435 = vmul.f32 %v1137, 0.015625
        %v1436 = vmul.f32 %v1140, 0.015625
        %v1437 = vmul.f32 %v1143, 0.015625
        %v1438 = vmul.f32 %v1146, 0.015625
        %v1439 = vmul.f32 %v1149, 0.015625
        %v1440 = vmul.f32 %v1152, 0.015625
        %v1441 = vmul.f32 %v1155, 0.015625
        %v1442 = vmul.f32 %v1158, 0.015625
        %v1443 = vmul.f32 %v1161, 0.015625
        %v1444 = vmul.f32 %v1164, 0.015625
        %v1445 = vmul.f32 %v1167, 0.015625
        %v1446 = vmul.f32 %v1170, 0.015625
        %v1447 = vmul.f32 %v1173, 0.015625
        %v1448 = vmul.f32 %v1176, 0.015625
        %v1449 = vmul.f32 %v1179, 0.015625
        %v1450 = vmul.f32 %v1182, 0.015625
        %v1451 = vmul.f32 %v1185, 0.015625
        %v1452 = vmul.f32 %v1188, 0.015625
        %v1453 = vmul.f32 %v1191, 0.015625
        %v1454 = vmul.f32 %v1194, 0.015625
        %v1455 = vmul.f32 %v1197, 0.015625
        %v1456 = vmul.f32 %v1200, 0.015625
        %v1458 = vlaneseq
        %v1459 = vshrl.u32 %v1458, 7
        %v1460 = vsub.s32 0, %v1459
        %v1461 = vrot.slane %v174, %v1460
        %v1462 = vlaneseq
        %v1463 = vshrl.u32 %v1462, 7
        %v1464 = vsub.s32 1, %v1463
        %v1465 = vrot.slane %v174, %v1464
        %1467 = vbcast.lane.b32.xlu0 %v1461, 256
        %v1468 = vpop.permute.xlu0 %1467
        %s1470 = sor.u32 256, 8
        %1471 = vbcast.lane.b32.xlu0 %v1461, %s1470
        %v1472 = vpop.permute.xlu0 %1471
        %s1474 = sor.u32 256, 16
        %1475 = vbcast.lane.b32.xlu0 %v1461, %s1474
        %v1476 = vpop.permute.xlu0 %1475
        %s1478 = sor.u32 256, 24
        %1479 = vbcast.lane.b32.xlu0 %v1461, %s1478
        %v1480 = vpop.permute.xlu0 %1479
        %s1482 = sor.u32 256, 32
        %1483 = vbcast.lane.b32.xlu0 %v1461, %s1482
        %v1484 = vpop.permute.xlu0 %1483
        %s1486 = sor.u32 256, 40
        %1487 = vbcast.lane.b32.xlu0 %v1461, %s1486
        %v1488 = vpop.permute.xlu0 %1487
        %s1490 = sor.u32 256, 48
        %1491 = vbcast.lane.b32.xlu0 %v1461, %s1490
        %v1492 = vpop.permute.xlu0 %1491
        %s1494 = sor.u32 256, 56
        %1495 = vbcast.lane.b32.xlu0 %v1461, %s1494
        %v1496 = vpop.permute.xlu0 %1495
        %s1498 = sor.u32 256, 64
        %1499 = vbcast.lane.b32.xlu0 %v1461, %s1498
        %v1500 = vpop.permute.xlu0 %1499
        %s1502 = sor.u32 256, 72
        %1503 = vbcast.lane.b32.xlu0 %v1461, %s1502
        %v1504 = vpop.permute.xlu0 %1503
        %s1506 = sor.u32 256, 80
        %1507 = vbcast.lane.b32.xlu0 %v1461, %s1506
        %v1508 = vpop.permute.xlu0 %1507
        %s1510 = sor.u32 256, 88
        %1511 = vbcast.lane.b32.xlu0 %v1461, %s1510
        %v1512 = vpop.permute.xlu0 %1511
        %s1514 = sor.u32 256, 96
        %1515 = vbcast.lane.b32.xlu0 %v1461, %s1514
        %v1516 = vpop.permute.xlu0 %1515
        %s1518 = sor.u32 256, 104
        %1519 = vbcast.lane.b32.xlu0 %v1461, %s1518
        %v1520 = vpop.permute.xlu0 %1519
        %s1522 = sor.u32 256, 112
        %1523 = vbcast.lane.b32.xlu0 %v1461, %s1522
        %v1524 = vpop.permute.xlu0 %1523
        %s1526 = sor.u32 256, 120
        %1527 = vbcast.lane.b32.xlu0 %v1461, %s1526
        %v1528 = vpop.permute.xlu0 %1527
        %1530 = vbcast.lane.b32.xlu0 %v1465, 256
        %v1531 = vpop.permute.xlu0 %1530
        %s1533 = sor.u32 256, 8
        %1534 = vbcast.lane.b32.xlu0 %v1465, %s1533
        %v1535 = vpop.permute.xlu0 %1534
        %s1537 = sor.u32 256, 16
        %1538 = vbcast.lane.b32.xlu0 %v1465, %s1537
        %v1539 = vpop.permute.xlu0 %1538
        %s1541 = sor.u32 256, 24
        %1542 = vbcast.lane.b32.xlu0 %v1465, %s1541
        %v1543 = vpop.permute.xlu0 %1542
        %s1545 = sor.u32 256, 32
        %1546 = vbcast.lane.b32.xlu0 %v1465, %s1545
        %v1547 = vpop.permute.xlu0 %1546
        %s1549 = sor.u32 256, 40
        %1550 = vbcast.lane.b32.xlu0 %v1465, %s1549
        %v1551 = vpop.permute.xlu0 %1550
        %s1553 = sor.u32 256, 48
        %1554 = vbcast.lane.b32.xlu0 %v1465, %s1553
        %v1555 = vpop.permute.xlu0 %1554
        %s1557 = sor.u32 256, 56
        %1558 = vbcast.lane.b32.xlu0 %v1465, %s1557
        %v1559 = vpop.permute.xlu0 %1558
        %s1561 = sor.u32 256, 64
        %1562 = vbcast.lane.b32.xlu0 %v1465, %s1561
        %v1563 = vpop.permute.xlu0 %1562
        %s1565 = sor.u32 256, 72
        %1566 = vbcast.lane.b32.xlu0 %v1465, %s1565
        %v1567 = vpop.permute.xlu0 %1566
        %s1569 = sor.u32 256, 80
        %1570 = vbcast.lane.b32.xlu0 %v1465, %s1569
        %v1571 = vpop.permute.xlu0 %1570
        %s1573 = sor.u32 256, 88
        %1574 = vbcast.lane.b32.xlu0 %v1465, %s1573
        %v1575 = vpop.permute.xlu0 %1574
        %s1577 = sor.u32 256, 96
        %1578 = vbcast.lane.b32.xlu0 %v1465, %s1577
        %v1579 = vpop.permute.xlu0 %1578
        %s1581 = sor.u32 256, 104
        %1582 = vbcast.lane.b32.xlu0 %v1465, %s1581
        %v1583 = vpop.permute.xlu0 %1582
        %s1585 = sor.u32 256, 112
        %1586 = vbcast.lane.b32.xlu0 %v1465, %s1585
        %v1587 = vpop.permute.xlu0 %1586
        %s1589 = sor.u32 256, 120
        %1590 = vbcast.lane.b32.xlu0 %v1465, %s1589
        %v1591 = vpop.permute.xlu0 %1590
        %v1624 = vmul.f32 %v1201, %v1468
        %v1625 = vmul.f32 %v1202, %v1472
        %v1626 = vmul.f32 %v1203, %v1476
        %v1627 = vmul.f32 %v1204, %v1480
        %v1628 = vmul.f32 %v1205, %v1484
        %v1629 = vmul.f32 %v1206, %v1488
        %v1630 = vmul.f32 %v1207, %v1492
        %v1631 = vmul.f32 %v1208, %v1496
        %v1632 = vmul.f32 %v1209, %v1500
        %v1633 = vmul.f32 %v1210, %v1504
        %v1634 = vmul.f32 %v1211, %v1508
        %v1635 = vmul.f32 %v1212, %v1512
        %v1636 = vmul.f32 %v1213, %v1516
        %v1637 = vmul.f32 %v1214, %v1520
        %v1638 = vmul.f32 %v1215, %v1524
        %v1639 = vmul.f32 %v1216, %v1528
        %v1640 = vmul.f32 %v1217, %v1531
        %v1641 = vmul.f32 %v1218, %v1535
        %v1642 = vmul.f32 %v1219, %v1539
        %v1643 = vmul.f32 %v1220, %v1543
        %v1644 = vmul.f32 %v1221, %v1547
        %v1645 = vmul.f32 %v1222, %v1551
        %v1646 = vmul.f32 %v1223, %v1555
        %v1647 = vmul.f32 %v1224, %v1559
        %v1648 = vmul.f32 %v1225, %v1563
        %v1649 = vmul.f32 %v1226, %v1567
        %v1650 = vmul.f32 %v1227, %v1571
        %v1651 = vmul.f32 %v1228, %v1575
        %v1652 = vmul.f32 %v1229, %v1579
        %v1653 = vmul.f32 %v1230, %v1583
        %v1654 = vmul.f32 %v1231, %v1587
        %v1655 = vmul.f32 %v1232, %v1591
        %v1656 = vmul.f32 %v1233, %v1468
        %v1657 = vmul.f32 %v1234, %v1472
        %v1658 = vmul.f32 %v1235, %v1476
        %v1659 = vmul.f32 %v1236, %v1480
        %v1660 = vmul.f32 %v1237, %v1484
        %v1661 = vmul.f32 %v1238, %v1488
        %v1662 = vmul.f32 %v1239, %v1492
        %v1663 = vmul.f32 %v1240, %v1496
        %v1664 = vmul.f32 %v1241, %v1500
        %v1665 = vmul.f32 %v1242, %v1504
        %v1666 = vmul.f32 %v1243, %v1508
        %v1667 = vmul.f32 %v1244, %v1512
        %v1668 = vmul.f32 %v1245, %v1516
        %v1669 = vmul.f32 %v1246, %v1520
        %v1670 = vmul.f32 %v1247, %v1524
        %v1671 = vmul.f32 %v1248, %v1528
        %v1672 = vmul.f32 %v1249, %v1531
        %v1673 = vmul.f32 %v1250, %v1535
        %v1674 = vmul.f32 %v1251, %v1539
        %v1675 = vmul.f32 %v1252, %v1543
        %v1676 = vmul.f32 %v1253, %v1547
        %v1677 = vmul.f32 %v1254, %v1551
        %v1678 = vmul.f32 %v1255, %v1555
        %v1679 = vmul.f32 %v1256, %v1559
        %v1680 = vmul.f32 %v1257, %v1563
        %v1681 = vmul.f32 %v1258, %v1567
        %v1682 = vmul.f32 %v1259, %v1571
        %v1683 = vmul.f32 %v1260, %v1575
        %v1684 = vmul.f32 %v1261, %v1579
        %v1685 = vmul.f32 %v1262, %v1583
        %v1686 = vmul.f32 %v1263, %v1587
        %v1687 = vmul.f32 %v1264, %v1591
        %v1688 = vmul.f32 %v1265, %v1468
        %v1689 = vmul.f32 %v1266, %v1472
        %v1690 = vmul.f32 %v1267, %v1476
        %v1691 = vmul.f32 %v1268, %v1480
        %v1692 = vmul.f32 %v1269, %v1484
        %v1693 = vmul.f32 %v1270, %v1488
        %v1694 = vmul.f32 %v1271, %v1492
        %v1695 = vmul.f32 %v1272, %v1496
        %v1696 = vmul.f32 %v1273, %v1500
        %v1697 = vmul.f32 %v1274, %v1504
        %v1698 = vmul.f32 %v1275, %v1508
        %v1699 = vmul.f32 %v1276, %v1512
        %v1700 = vmul.f32 %v1277, %v1516
        %v1701 = vmul.f32 %v1278, %v1520
        %v1702 = vmul.f32 %v1279, %v1524
        %v1703 = vmul.f32 %v1280, %v1528
        %v1704 = vmul.f32 %v1281, %v1531
        %v1705 = vmul.f32 %v1282, %v1535
        %v1706 = vmul.f32 %v1283, %v1539
        %v1707 = vmul.f32 %v1284, %v1543
        %v1708 = vmul.f32 %v1285, %v1547
        %v1709 = vmul.f32 %v1286, %v1551
        %v1710 = vmul.f32 %v1287, %v1555
        %v1711 = vmul.f32 %v1288, %v1559
        %v1712 = vmul.f32 %v1289, %v1563
        %v1713 = vmul.f32 %v1290, %v1567
        %v1714 = vmul.f32 %v1291, %v1571
        %v1715 = vmul.f32 %v1292, %v1575
        %v1716 = vmul.f32 %v1293, %v1579
        %v1717 = vmul.f32 %v1294, %v1583
        %v1718 = vmul.f32 %v1295, %v1587
        %v1719 = vmul.f32 %v1296, %v1591
        %v1720 = vmul.f32 %v1297, %v1468
        %v1721 = vmul.f32 %v1298, %v1472
        %v1722 = vmul.f32 %v1299, %v1476
        %v1723 = vmul.f32 %v1300, %v1480
        %v1724 = vmul.f32 %v1301, %v1484
        %v1725 = vmul.f32 %v1302, %v1488
        %v1726 = vmul.f32 %v1303, %v1492
        %v1727 = vmul.f32 %v1304, %v1496
        %v1728 = vmul.f32 %v1305, %v1500
        %v1729 = vmul.f32 %v1306, %v1504
        %v1730 = vmul.f32 %v1307, %v1508
        %v1731 = vmul.f32 %v1308, %v1512
        %v1732 = vmul.f32 %v1309, %v1516
        %v1733 = vmul.f32 %v1310, %v1520
        %v1734 = vmul.f32 %v1311, %v1524
        %v1735 = vmul.f32 %v1312, %v1528
        %v1736 = vmul.f32 %v1313, %v1531
        %v1737 = vmul.f32 %v1314, %v1535
        %v1738 = vmul.f32 %v1315, %v1539
        %v1739 = vmul.f32 %v1316, %v1543
        %v1740 = vmul.f32 %v1317, %v1547
        %v1741 = vmul.f32 %v1318, %v1551
        %v1742 = vmul.f32 %v1319, %v1555
        %v1743 = vmul.f32 %v1320, %v1559
        %v1744 = vmul.f32 %v1321, %v1563
        %v1745 = vmul.f32 %v1322, %v1567
        %v1746 = vmul.f32 %v1323, %v1571
        %v1747 = vmul.f32 %v1324, %v1575
        %v1748 = vmul.f32 %v1325, %v1579
        %v1749 = vmul.f32 %v1326, %v1583
        %v1750 = vmul.f32 %v1327, %v1587
        %v1751 = vmul.f32 %v1328, %v1591
        %v1752 = vmul.f32 %v1329, %v1468
        %v1753 = vmul.f32 %v1330, %v1472
        %v1754 = vmul.f32 %v1331, %v1476
        %v1755 = vmul.f32 %v1332, %v1480
        %v1756 = vmul.f32 %v1333, %v1484
        %v1757 = vmul.f32 %v1334, %v1488
        %v1758 = vmul.f32 %v1335, %v1492
        %v1759 = vmul.f32 %v1336, %v1496
        %v1760 = vmul.f32 %v1337, %v1500
        %v1761 = vmul.f32 %v1338, %v1504
        %v1762 = vmul.f32 %v1339, %v1508
        %v1763 = vmul.f32 %v1340, %v1512
        %v1764 = vmul.f32 %v1341, %v1516
        %v1765 = vmul.f32 %v1342, %v1520
        %v1766 = vmul.f32 %v1343, %v1524
        %v1767 = vmul.f32 %v1344, %v1528
        %v1768 = vmul.f32 %v1345, %v1531
        %v1769 = vmul.f32 %v1346, %v1535
        %v1770 = vmul.f32 %v1347, %v1539
        %v1771 = vmul.f32 %v1348, %v1543
        %v1772 = vmul.f32 %v1349, %v1547
        %v1773 = vmul.f32 %v1350, %v1551
        %v1774 = vmul.f32 %v1351, %v1555
        %v1775 = vmul.f32 %v1352, %v1559
        %v1776 = vmul.f32 %v1353, %v1563
        %v1777 = vmul.f32 %v1354, %v1567
        %v1778 = vmul.f32 %v1355, %v1571
        %v1779 = vmul.f32 %v1356, %v1575
        %v1780 = vmul.f32 %v1357, %v1579
        %v1781 = vmul.f32 %v1358, %v1583
        %v1782 = vmul.f32 %v1359, %v1587
        %v1783 = vmul.f32 %v1360, %v1591
        %v1784 = vmul.f32 %v1361, %v1468
        %v1785 = vmul.f32 %v1362, %v1472
        %v1786 = vmul.f32 %v1363, %v1476
        %v1787 = vmul.f32 %v1364, %v1480
        %v1788 = vmul.f32 %v1365, %v1484
        %v1789 = vmul.f32 %v1366, %v1488
        %v1790 = vmul.f32 %v1367, %v1492
        %v1791 = vmul.f32 %v1368, %v1496
        %v1792 = vmul.f32 %v1369, %v1500
        %v1793 = vmul.f32 %v1370, %v1504
        %v1794 = vmul.f32 %v1371, %v1508
        %v1795 = vmul.f32 %v1372, %v1512
        %v1796 = vmul.f32 %v1373, %v1516
        %v1797 = vmul.f32 %v1374, %v1520
        %v1798 = vmul.f32 %v1375, %v1524
        %v1799 = vmul.f32 %v1376, %v1528
        %v1800 = vmul.f32 %v1377, %v1531
        %v1801 = vmul.f32 %v1378, %v1535
        %v1802 = vmul.f32 %v1379, %v1539
        %v1803 = vmul.f32 %v1380, %v1543
        %v1804 = vmul.f32 %v1381, %v1547
        %v1805 = vmul.f32 %v1382, %v1551
        %v1806 = vmul.f32 %v1383, %v1555
        %v1807 = vmul.f32 %v1384, %v1559
        %v1808 = vmul.f32 %v1385, %v1563
        %v1809 = vmul.f32 %v1386, %v1567
        %v1810 = vmul.f32 %v1387, %v1571
        %v1811 = vmul.f32 %v1388, %v1575
        %v1812 = vmul.f32 %v1389, %v1579
        %v1813 = vmul.f32 %v1390, %v1583
        %v1814 = vmul.f32 %v1391, %v1587
        %v1815 = vmul.f32 %v1392, %v1591
        %v1816 = vmul.f32 %v1393, %v1468
        %v1817 = vmul.f32 %v1394, %v1472
        %v1818 = vmul.f32 %v1395, %v1476
        %v1819 = vmul.f32 %v1396, %v1480
        %v1820 = vmul.f32 %v1397, %v1484
        %v1821 = vmul.f32 %v1398, %v1488
        %v1822 = vmul.f32 %v1399, %v1492
        %v1823 = vmul.f32 %v1400, %v1496
        %v1824 = vmul.f32 %v1401, %v1500
        %v1825 = vmul.f32 %v1402, %v1504
        %v1826 = vmul.f32 %v1403, %v1508
        %v1827 = vmul.f32 %v1404, %v1512
        %v1828 = vmul.f32 %v1405, %v1516
        %v1829 = vmul.f32 %v1406, %v1520
        %v1830 = vmul.f32 %v1407, %v1524
        %v1831 = vmul.f32 %v1408, %v1528
        %v1832 = vmul.f32 %v1409, %v1531
        %v1833 = vmul.f32 %v1410, %v1535
        %v1834 = vmul.f32 %v1411, %v1539
        %v1835 = vmul.f32 %v1412, %v1543
        %v1836 = vmul.f32 %v1413, %v1547
        %v1837 = vmul.f32 %v1414, %v1551
        %v1838 = vmul.f32 %v1415, %v1555
        %v1839 = vmul.f32 %v1416, %v1559
        %v1840 = vmul.f32 %v1417, %v1563
        %v1841 = vmul.f32 %v1418, %v1567
        %v1842 = vmul.f32 %v1419, %v1571
        %v1843 = vmul.f32 %v1420, %v1575
        %v1844 = vmul.f32 %v1421, %v1579
        %v1845 = vmul.f32 %v1422, %v1583
        %v1846 = vmul.f32 %v1423, %v1587
        %v1847 = vmul.f32 %v1424, %v1591
        %v1848 = vmul.f32 %v1425, %v1468
        %v1849 = vmul.f32 %v1426, %v1472
        %v1850 = vmul.f32 %v1427, %v1476
        %v1851 = vmul.f32 %v1428, %v1480
        %v1852 = vmul.f32 %v1429, %v1484
        %v1853 = vmul.f32 %v1430, %v1488
        %v1854 = vmul.f32 %v1431, %v1492
        %v1855 = vmul.f32 %v1432, %v1496
        %v1856 = vmul.f32 %v1433, %v1500
        %v1857 = vmul.f32 %v1434, %v1504
        %v1858 = vmul.f32 %v1435, %v1508
        %v1859 = vmul.f32 %v1436, %v1512
        %v1860 = vmul.f32 %v1437, %v1516
        %v1861 = vmul.f32 %v1438, %v1520
        %v1862 = vmul.f32 %v1439, %v1524
        %v1863 = vmul.f32 %v1440, %v1528
        %v1864 = vmul.f32 %v1441, %v1531
        %v1865 = vmul.f32 %v1442, %v1535
        %v1866 = vmul.f32 %v1443, %v1539
        %v1867 = vmul.f32 %v1444, %v1543
        %v1868 = vmul.f32 %v1445, %v1547
        %v1869 = vmul.f32 %v1446, %v1551
        %v1870 = vmul.f32 %v1447, %v1555
        %v1871 = vmul.f32 %v1448, %v1559
        %v1872 = vmul.f32 %v1449, %v1563
        %v1873 = vmul.f32 %v1450, %v1567
        %v1874 = vmul.f32 %v1451, %v1571
        %v1875 = vmul.f32 %v1452, %v1575
        %v1876 = vmul.f32 %v1453, %v1579
        %v1877 = vmul.f32 %v1454, %v1583
        %v1878 = vmul.f32 %v1455, %v1587
        %v1879 = vmul.f32 %v1456, %v1591
        %v1881 = vlaneseq
        %v1882 = vshrl.u32 %v1881, 7
        %v1883 = vsub.s32 0, %v1882
        %v1884 = vrot.slane %v175, %v1883
        %v1885 = vlaneseq
        %v1886 = vshrl.u32 %v1885, 7
        %v1887 = vsub.s32 1, %v1886
        %v1888 = vrot.slane %v175, %v1887
        %1890 = vbcast.lane.b32.xlu0 %v1884, 256
        %v1891 = vpop.permute.xlu0 %1890
        %s1893 = sor.u32 256, 8
        %1894 = vbcast.lane.b32.xlu0 %v1884, %s1893
        %v1895 = vpop.permute.xlu0 %1894
        %s1897 = sor.u32 256, 16
        %1898 = vbcast.lane.b32.xlu0 %v1884, %s1897
        %v1899 = vpop.permute.xlu0 %1898
        %s1901 = sor.u32 256, 24
        %1902 = vbcast.lane.b32.xlu0 %v1884, %s1901
        %v1903 = vpop.permute.xlu0 %1902
        %s1905 = sor.u32 256, 32
        %1906 = vbcast.lane.b32.xlu0 %v1884, %s1905
        %v1907 = vpop.permute.xlu0 %1906
        %s1909 = sor.u32 256, 40
        %1910 = vbcast.lane.b32.xlu0 %v1884, %s1909
        %v1911 = vpop.permute.xlu0 %1910
        %s1913 = sor.u32 256, 48
        %1914 = vbcast.lane.b32.xlu0 %v1884, %s1913
        %v1915 = vpop.permute.xlu0 %1914
        %s1917 = sor.u32 256, 56
        %1918 = vbcast.lane.b32.xlu0 %v1884, %s1917
        %v1919 = vpop.permute.xlu0 %1918
        %s1921 = sor.u32 256, 64
        %1922 = vbcast.lane.b32.xlu0 %v1884, %s1921
        %v1923 = vpop.permute.xlu0 %1922
        %s1925 = sor.u32 256, 72
        %1926 = vbcast.lane.b32.xlu0 %v1884, %s1925
        %v1927 = vpop.permute.xlu0 %1926
        %s1929 = sor.u32 256, 80
        %1930 = vbcast.lane.b32.xlu0 %v1884, %s1929
        %v1931 = vpop.permute.xlu0 %1930
        %s1933 = sor.u32 256, 88
        %1934 = vbcast.lane.b32.xlu0 %v1884, %s1933
        %v1935 = vpop.permute.xlu0 %1934
        %s1937 = sor.u32 256, 96
        %1938 = vbcast.lane.b32.xlu0 %v1884, %s1937
        %v1939 = vpop.permute.xlu0 %1938
        %s1941 = sor.u32 256, 104
        %1942 = vbcast.lane.b32.xlu0 %v1884, %s1941
        %v1943 = vpop.permute.xlu0 %1942
        %s1945 = sor.u32 256, 112
        %1946 = vbcast.lane.b32.xlu0 %v1884, %s1945
        %v1947 = vpop.permute.xlu0 %1946
        %s1949 = sor.u32 256, 120
        %1950 = vbcast.lane.b32.xlu0 %v1884, %s1949
        %v1951 = vpop.permute.xlu0 %1950
        %1953 = vbcast.lane.b32.xlu0 %v1888, 256
        %v1954 = vpop.permute.xlu0 %1953
        %s1956 = sor.u32 256, 8
        %1957 = vbcast.lane.b32.xlu0 %v1888, %s1956
        %v1958 = vpop.permute.xlu0 %1957
        %s1960 = sor.u32 256, 16
        %1961 = vbcast.lane.b32.xlu0 %v1888, %s1960
        %v1962 = vpop.permute.xlu0 %1961
        %s1964 = sor.u32 256, 24
        %1965 = vbcast.lane.b32.xlu0 %v1888, %s1964
        %v1966 = vpop.permute.xlu0 %1965
        %s1968 = sor.u32 256, 32
        %1969 = vbcast.lane.b32.xlu0 %v1888, %s1968
        %v1970 = vpop.permute.xlu0 %1969
        %s1972 = sor.u32 256, 40
        %1973 = vbcast.lane.b32.xlu0 %v1888, %s1972
        %v1974 = vpop.permute.xlu0 %1973
        %s1976 = sor.u32 256, 48
        %1977 = vbcast.lane.b32.xlu0 %v1888, %s1976
        %v1978 = vpop.permute.xlu0 %1977
        %s1980 = sor.u32 256, 56
        %1981 = vbcast.lane.b32.xlu0 %v1888, %s1980
        %v1982 = vpop.permute.xlu0 %1981
        %s1984 = sor.u32 256, 64
        %1985 = vbcast.lane.b32.xlu0 %v1888, %s1984
        %v1986 = vpop.permute.xlu0 %1985
        %s1988 = sor.u32 256, 72
        %1989 = vbcast.lane.b32.xlu0 %v1888, %s1988
        %v1990 = vpop.permute.xlu0 %1989
        %s1992 = sor.u32 256, 80
        %1993 = vbcast.lane.b32.xlu0 %v1888, %s1992
        %v1994 = vpop.permute.xlu0 %1993
        %s1996 = sor.u32 256, 88
        %1997 = vbcast.lane.b32.xlu0 %v1888, %s1996
        %v1998 = vpop.permute.xlu0 %1997
        %s2000 = sor.u32 256, 96
        %2001 = vbcast.lane.b32.xlu0 %v1888, %s2000
        %v2002 = vpop.permute.xlu0 %2001
        %s2004 = sor.u32 256, 104
        %2005 = vbcast.lane.b32.xlu0 %v1888, %s2004
        %v2006 = vpop.permute.xlu0 %2005
        %s2008 = sor.u32 256, 112
        %2009 = vbcast.lane.b32.xlu0 %v1888, %s2008
        %v2010 = vpop.permute.xlu0 %2009
        %s2012 = sor.u32 256, 120
        %2013 = vbcast.lane.b32.xlu0 %v1888, %s2012
        %v2014 = vpop.permute.xlu0 %2013
        %v2047 = vadd.f32 %v1624, %v1891
        %v2048 = vadd.f32 %v1625, %v1895
        %v2049 = vadd.f32 %v1626, %v1899
        %v2050 = vadd.f32 %v1627, %v1903
        %v2051 = vadd.f32 %v1628, %v1907
        %v2052 = vadd.f32 %v1629, %v1911
        %v2053 = vadd.f32 %v1630, %v1915
        %v2054 = vadd.f32 %v1631, %v1919
        %v2055 = vadd.f32 %v1632, %v1923
        %v2056 = vadd.f32 %v1633, %v1927
        %v2057 = vadd.f32 %v1634, %v1931
        %v2058 = vadd.f32 %v1635, %v1935
        %v2059 = vadd.f32 %v1636, %v1939
        %v2060 = vadd.f32 %v1637, %v1943
        %v2061 = vadd.f32 %v1638, %v1947
        %v2062 = vadd.f32 %v1639, %v1951
        %v2063 = vadd.f32 %v1640, %v1954
        %v2064 = vadd.f32 %v1641, %v1958
        %v2065 = vadd.f32 %v1642, %v1962
        %v2066 = vadd.f32 %v1643, %v1966
        %v2067 = vadd.f32 %v1644, %v1970
        %v2068 = vadd.f32 %v1645, %v1974
        %v2069 = vadd.f32 %v1646, %v1978
        %v2070 = vadd.f32 %v1647, %v1982
        %v2071 = vadd.f32 %v1648, %v1986
        %v2072 = vadd.f32 %v1649, %v1990
        %v2073 = vadd.f32 %v1650, %v1994
        %v2074 = vadd.f32 %v1651, %v1998
        %v2075 = vadd.f32 %v1652, %v2002
        %v2076 = vadd.f32 %v1653, %v2006
        %v2077 = vadd.f32 %v1654, %v2010
        %v2078 = vadd.f32 %v1655, %v2014
        %v2079 = vadd.f32 %v1656, %v1891
        %v2080 = vadd.f32 %v1657, %v1895
        %v2081 = vadd.f32 %v1658, %v1899
        %v2082 = vadd.f32 %v1659, %v1903
        %v2083 = vadd.f32 %v1660, %v1907
        %v2084 = vadd.f32 %v1661, %v1911
        %v2085 = vadd.f32 %v1662, %v1915
        %v2086 = vadd.f32 %v1663, %v1919
        %v2087 = vadd.f32 %v1664, %v1923
        %v2088 = vadd.f32 %v1665, %v1927
        %v2089 = vadd.f32 %v1666, %v1931
        %v2090 = vadd.f32 %v1667, %v1935
        %v2091 = vadd.f32 %v1668, %v1939
        %v2092 = vadd.f32 %v1669, %v1943
        %v2093 = vadd.f32 %v1670, %v1947
        %v2094 = vadd.f32 %v1671, %v1951
        %v2095 = vadd.f32 %v1672, %v1954
        %v2096 = vadd.f32 %v1673, %v1958
        %v2097 = vadd.f32 %v1674, %v1962
        %v2098 = vadd.f32 %v1675, %v1966
        %v2099 = vadd.f32 %v1676, %v1970
        %v2100 = vadd.f32 %v1677, %v1974
        %v2101 = vadd.f32 %v1678, %v1978
        %v2102 = vadd.f32 %v1679, %v1982
        %v2103 = vadd.f32 %v1680, %v1986
        %v2104 = vadd.f32 %v1681, %v1990
        %v2105 = vadd.f32 %v1682, %v1994
        %v2106 = vadd.f32 %v1683, %v1998
        %v2107 = vadd.f32 %v1684, %v2002
        %v2108 = vadd.f32 %v1685, %v2006
        %v2109 = vadd.f32 %v1686, %v2010
        %v2110 = vadd.f32 %v1687, %v2014
        %v2111 = vadd.f32 %v1688, %v1891
        %v2112 = vadd.f32 %v1689, %v1895
        %v2113 = vadd.f32 %v1690, %v1899
        %v2114 = vadd.f32 %v1691, %v1903
        %v2115 = vadd.f32 %v1692, %v1907
        %v2116 = vadd.f32 %v1693, %v1911
        %v2117 = vadd.f32 %v1694, %v1915
        %v2118 = vadd.f32 %v1695, %v1919
        %v2119 = vadd.f32 %v1696, %v1923
        %v2120 = vadd.f32 %v1697, %v1927
        %v2121 = vadd.f32 %v1698, %v1931
        %v2122 = vadd.f32 %v1699, %v1935
        %v2123 = vadd.f32 %v1700, %v1939
        %v2124 = vadd.f32 %v1701, %v1943
        %v2125 = vadd.f32 %v1702, %v1947
        %v2126 = vadd.f32 %v1703, %v1951
        %v2127 = vadd.f32 %v1704, %v1954
        %v2128 = vadd.f32 %v1705, %v1958
        %v2129 = vadd.f32 %v1706, %v1962
        %v2130 = vadd.f32 %v1707, %v1966
        %v2131 = vadd.f32 %v1708, %v1970
        %v2132 = vadd.f32 %v1709, %v1974
        %v2133 = vadd.f32 %v1710, %v1978
        %v2134 = vadd.f32 %v1711, %v1982
        %v2135 = vadd.f32 %v1712, %v1986
        %v2136 = vadd.f32 %v1713, %v1990
        %v2137 = vadd.f32 %v1714, %v1994
        %v2138 = vadd.f32 %v1715, %v1998
        %v2139 = vadd.f32 %v1716, %v2002
        %v2140 = vadd.f32 %v1717, %v2006
        %v2141 = vadd.f32 %v1718, %v2010
        %v2142 = vadd.f32 %v1719, %v2014
        %v2143 = vadd.f32 %v1720, %v1891
        %v2144 = vadd.f32 %v1721, %v1895
        %v2145 = vadd.f32 %v1722, %v1899
        %v2146 = vadd.f32 %v1723, %v1903
        %v2147 = vadd.f32 %v1724, %v1907
        %v2148 = vadd.f32 %v1725, %v1911
        %v2149 = vadd.f32 %v1726, %v1915
        %v2150 = vadd.f32 %v1727, %v1919
        %v2151 = vadd.f32 %v1728, %v1923
        %v2152 = vadd.f32 %v1729, %v1927
        %v2153 = vadd.f32 %v1730, %v1931
        %v2154 = vadd.f32 %v1731, %v1935
        %v2155 = vadd.f32 %v1732, %v1939
        %v2156 = vadd.f32 %v1733, %v1943
        %v2157 = vadd.f32 %v1734, %v1947
        %v2158 = vadd.f32 %v1735, %v1951
        %v2159 = vadd.f32 %v1736, %v1954
        %v2160 = vadd.f32 %v1737, %v1958
        %v2161 = vadd.f32 %v1738, %v1962
        %v2162 = vadd.f32 %v1739, %v1966
        %v2163 = vadd.f32 %v1740, %v1970
        %v2164 = vadd.f32 %v1741, %v1974
        %v2165 = vadd.f32 %v1742, %v1978
        %v2166 = vadd.f32 %v1743, %v1982
        %v2167 = vadd.f32 %v1744, %v1986
        %v2168 = vadd.f32 %v1745, %v1990
        %v2169 = vadd.f32 %v1746, %v1994
        %v2170 = vadd.f32 %v1747, %v1998
        %v2171 = vadd.f32 %v1748, %v2002
        %v2172 = vadd.f32 %v1749, %v2006
        %v2173 = vadd.f32 %v1750, %v2010
        %v2174 = vadd.f32 %v1751, %v2014
        %v2175 = vadd.f32 %v1752, %v1891
        %v2176 = vadd.f32 %v1753, %v1895
        %v2177 = vadd.f32 %v1754, %v1899
        %v2178 = vadd.f32 %v1755, %v1903
        %v2179 = vadd.f32 %v1756, %v1907
        %v2180 = vadd.f32 %v1757, %v1911
        %v2181 = vadd.f32 %v1758, %v1915
        %v2182 = vadd.f32 %v1759, %v1919
        %v2183 = vadd.f32 %v1760, %v1923
        %v2184 = vadd.f32 %v1761, %v1927
        %v2185 = vadd.f32 %v1762, %v1931
        %v2186 = vadd.f32 %v1763, %v1935
        %v2187 = vadd.f32 %v1764, %v1939
        %v2188 = vadd.f32 %v1765, %v1943
        %v2189 = vadd.f32 %v1766, %v1947
        %v2190 = vadd.f32 %v1767, %v1951
        %v2191 = vadd.f32 %v1768, %v1954
        %v2192 = vadd.f32 %v1769, %v1958
        %v2193 = vadd.f32 %v1770, %v1962
        %v2194 = vadd.f32 %v1771, %v1966
        %v2195 = vadd.f32 %v1772, %v1970
        %v2196 = vadd.f32 %v1773, %v1974
        %v2197 = vadd.f32 %v1774, %v1978
        %v2198 = vadd.f32 %v1775, %v1982
        %v2199 = vadd.f32 %v1776, %v1986
        %v2200 = vadd.f32 %v1777, %v1990
        %v2201 = vadd.f32 %v1778, %v1994
        %v2202 = vadd.f32 %v1779, %v1998
        %v2203 = vadd.f32 %v1780, %v2002
        %v2204 = vadd.f32 %v1781, %v2006
        %v2205 = vadd.f32 %v1782, %v2010
        %v2206 = vadd.f32 %v1783, %v2014
        %v2207 = vadd.f32 %v1784, %v1891
        %v2208 = vadd.f32 %v1785, %v1895
        %v2209 = vadd.f32 %v1786, %v1899
        %v2210 = vadd.f32 %v1787, %v1903
        %v2211 = vadd.f32 %v1788, %v1907
        %v2212 = vadd.f32 %v1789, %v1911
        %v2213 = vadd.f32 %v1790, %v1915
        %v2214 = vadd.f32 %v1791, %v1919
        %v2215 = vadd.f32 %v1792, %v1923
        %v2216 = vadd.f32 %v1793, %v1927
        %v2217 = vadd.f32 %v1794, %v1931
        %v2218 = vadd.f32 %v1795, %v1935
        %v2219 = vadd.f32 %v1796, %v1939
        %v2220 = vadd.f32 %v1797, %v1943
        %v2221 = vadd.f32 %v1798, %v1947
        %v2222 = vadd.f32 %v1799, %v1951
        %v2223 = vadd.f32 %v1800, %v1954
        %v2224 = vadd.f32 %v1801, %v1958
        %v2225 = vadd.f32 %v1802, %v1962
        %v2226 = vadd.f32 %v1803, %v1966
        %v2227 = vadd.f32 %v1804, %v1970
        %v2228 = vadd.f32 %v1805, %v1974
        %v2229 = vadd.f32 %v1806, %v1978
        %v2230 = vadd.f32 %v1807, %v1982
        %v2231 = vadd.f32 %v1808, %v1986
        %v2232 = vadd.f32 %v1809, %v1990
        %v2233 = vadd.f32 %v1810, %v1994
        %v2234 = vadd.f32 %v1811, %v1998
        %v2235 = vadd.f32 %v1812, %v2002
        %v2236 = vadd.f32 %v1813, %v2006
        %v2237 = vadd.f32 %v1814, %v2010
        %v2238 = vadd.f32 %v1815, %v2014
        %v2239 = vadd.f32 %v1816, %v1891
        %v2240 = vadd.f32 %v1817, %v1895
        %v2241 = vadd.f32 %v1818, %v1899
        %v2242 = vadd.f32 %v1819, %v1903
        %v2243 = vadd.f32 %v1820, %v1907
        %v2244 = vadd.f32 %v1821, %v1911
        %v2245 = vadd.f32 %v1822, %v1915
        %v2246 = vadd.f32 %v1823, %v1919
        %v2247 = vadd.f32 %v1824, %v1923
        %v2248 = vadd.f32 %v1825, %v1927
        %v2249 = vadd.f32 %v1826, %v1931
        %v2250 = vadd.f32 %v1827, %v1935
        %v2251 = vadd.f32 %v1828, %v1939
        %v2252 = vadd.f32 %v1829, %v1943
        %v2253 = vadd.f32 %v1830, %v1947
        %v2254 = vadd.f32 %v1831, %v1951
        %v2255 = vadd.f32 %v1832, %v1954
        %v2256 = vadd.f32 %v1833, %v1958
        %v2257 = vadd.f32 %v1834, %v1962
        %v2258 = vadd.f32 %v1835, %v1966
        %v2259 = vadd.f32 %v1836, %v1970
        %v2260 = vadd.f32 %v1837, %v1974
        %v2261 = vadd.f32 %v1838, %v1978
        %v2262 = vadd.f32 %v1839, %v1982
        %v2263 = vadd.f32 %v1840, %v1986
        %v2264 = vadd.f32 %v1841, %v1990
        %v2265 = vadd.f32 %v1842, %v1994
        %v2266 = vadd.f32 %v1843, %v1998
        %v2267 = vadd.f32 %v1844, %v2002
        %v2268 = vadd.f32 %v1845, %v2006
        %v2269 = vadd.f32 %v1846, %v2010
        %v2270 = vadd.f32 %v1847, %v2014
        %v2271 = vadd.f32 %v1848, %v1891
        %v2272 = vadd.f32 %v1849, %v1895
        %v2273 = vadd.f32 %v1850, %v1899
        %v2274 = vadd.f32 %v1851, %v1903
        %v2275 = vadd.f32 %v1852, %v1907
        %v2276 = vadd.f32 %v1853, %v1911
        %v2277 = vadd.f32 %v1854, %v1915
        %v2278 = vadd.f32 %v1855, %v1919
        %v2279 = vadd.f32 %v1856, %v1923
        %v2280 = vadd.f32 %v1857, %v1927
        %v2281 = vadd.f32 %v1858, %v1931
        %v2282 = vadd.f32 %v1859, %v1935
        %v2283 = vadd.f32 %v1860, %v1939
        %v2284 = vadd.f32 %v1861, %v1943
        %v2285 = vadd.f32 %v1862, %v1947
        %v2286 = vadd.f32 %v1863, %v1951
        %v2287 = vadd.f32 %v1864, %v1954
        %v2288 = vadd.f32 %v1865, %v1958
        %v2289 = vadd.f32 %v1866, %v1962
        %v2290 = vadd.f32 %v1867, %v1966
        %v2291 = vadd.f32 %v1868, %v1970
        %v2292 = vadd.f32 %v1869, %v1974
        %v2293 = vadd.f32 %v1870, %v1978
        %v2294 = vadd.f32 %v1871, %v1982
        %v2295 = vadd.f32 %v1872, %v1986
        %v2296 = vadd.f32 %v1873, %v1990
        %v2297 = vadd.f32 %v1874, %v1994
        %v2298 = vadd.f32 %v1875, %v1998
        %v2299 = vadd.f32 %v1876, %v2002
        %v2300 = vadd.f32 %v1877, %v2006
        %v2301 = vadd.f32 %v1878, %v2010
        %v2302 = vadd.f32 %v1879, %v2014
        %v2303 = vmul.f32 %v2047, %v2047
        %v2304 = vmul.f32 %v2048, %v2048
        %v2305 = vmul.f32 %v2049, %v2049
        %v2306 = vmul.f32 %v2050, %v2050
        %v2307 = vmul.f32 %v2051, %v2051
        %v2308 = vmul.f32 %v2052, %v2052
        %v2309 = vmul.f32 %v2053, %v2053
        %v2310 = vmul.f32 %v2054, %v2054
        %v2311 = vmul.f32 %v2055, %v2055
        %v2312 = vmul.f32 %v2056, %v2056
        %v2313 = vmul.f32 %v2057, %v2057
        %v2314 = vmul.f32 %v2058, %v2058
        %v2315 = vmul.f32 %v2059, %v2059
        %v2316 = vmul.f32 %v2060, %v2060
        %v2317 = vmul.f32 %v2061, %v2061
        %v2318 = vmul.f32 %v2062, %v2062
        %v2319 = vmul.f32 %v2063, %v2063
        %v2320 = vmul.f32 %v2064, %v2064
        %v2321 = vmul.f32 %v2065, %v2065
        %v2322 = vmul.f32 %v2066, %v2066
        %v2323 = vmul.f32 %v2067, %v2067
        %v2324 = vmul.f32 %v2068, %v2068
        %v2325 = vmul.f32 %v2069, %v2069
        %v2326 = vmul.f32 %v2070, %v2070
        %v2327 = vmul.f32 %v2071, %v2071
        %v2328 = vmul.f32 %v2072, %v2072
        %v2329 = vmul.f32 %v2073, %v2073
        %v2330 = vmul.f32 %v2074, %v2074
        %v2331 = vmul.f32 %v2075, %v2075
        %v2332 = vmul.f32 %v2076, %v2076
        %v2333 = vmul.f32 %v2077, %v2077
        %v2334 = vmul.f32 %v2078, %v2078
        %v2335 = vmul.f32 %v2079, %v2079
        %v2336 = vmul.f32 %v2080, %v2080
        %v2337 = vmul.f32 %v2081, %v2081
        %v2338 = vmul.f32 %v2082, %v2082
        %v2339 = vmul.f32 %v2083, %v2083
        %v2340 = vmul.f32 %v2084, %v2084
        %v2341 = vmul.f32 %v2085, %v2085
        %v2342 = vmul.f32 %v2086, %v2086
        %v2343 = vmul.f32 %v2087, %v2087
        %v2344 = vmul.f32 %v2088, %v2088
        %v2345 = vmul.f32 %v2089, %v2089
        %v2346 = vmul.f32 %v2090, %v2090
        %v2347 = vmul.f32 %v2091, %v2091
        %v2348 = vmul.f32 %v2092, %v2092
        %v2349 = vmul.f32 %v2093, %v2093
        %v2350 = vmul.f32 %v2094, %v2094
        %v2351 = vmul.f32 %v2095, %v2095
        %v2352 = vmul.f32 %v2096, %v2096
        %v2353 = vmul.f32 %v2097, %v2097
        %v2354 = vmul.f32 %v2098, %v2098
        %v2355 = vmul.f32 %v2099, %v2099
        %v2356 = vmul.f32 %v2100, %v2100
        %v2357 = vmul.f32 %v2101, %v2101
        %v2358 = vmul.f32 %v2102, %v2102
        %v2359 = vmul.f32 %v2103, %v2103
        %v2360 = vmul.f32 %v2104, %v2104
        %v2361 = vmul.f32 %v2105, %v2105
        %v2362 = vmul.f32 %v2106, %v2106
        %v2363 = vmul.f32 %v2107, %v2107
        %v2364 = vmul.f32 %v2108, %v2108
        %v2365 = vmul.f32 %v2109, %v2109
        %v2366 = vmul.f32 %v2110, %v2110
        %v2367 = vmul.f32 %v2111, %v2111
        %v2368 = vmul.f32 %v2112, %v2112
        %v2369 = vmul.f32 %v2113, %v2113
        %v2370 = vmul.f32 %v2114, %v2114
        %v2371 = vmul.f32 %v2115, %v2115
        %v2372 = vmul.f32 %v2116, %v2116
        %v2373 = vmul.f32 %v2117, %v2117
        %v2374 = vmul.f32 %v2118, %v2118
        %v2375 = vmul.f32 %v2119, %v2119
        %v2376 = vmul.f32 %v2120, %v2120
        %v2377 = vmul.f32 %v2121, %v2121
        %v2378 = vmul.f32 %v2122, %v2122
        %v2379 = vmul.f32 %v2123, %v2123
        %v2380 = vmul.f32 %v2124, %v2124
        %v2381 = vmul.f32 %v2125, %v2125
        %v2382 = vmul.f32 %v2126, %v2126
        %v2383 = vmul.f32 %v2127, %v2127
        %v2384 = vmul.f32 %v2128, %v2128
        %v2385 = vmul.f32 %v2129, %v2129
        %v2386 = vmul.f32 %v2130, %v2130
        %v2387 = vmul.f32 %v2131, %v2131
        %v2388 = vmul.f32 %v2132, %v2132
        %v2389 = vmul.f32 %v2133, %v2133
        %v2390 = vmul.f32 %v2134, %v2134
        %v2391 = vmul.f32 %v2135, %v2135
        %v2392 = vmul.f32 %v2136, %v2136
        %v2393 = vmul.f32 %v2137, %v2137
        %v2394 = vmul.f32 %v2138, %v2138
        %v2395 = vmul.f32 %v2139, %v2139
        %v2396 = vmul.f32 %v2140, %v2140
        %v2397 = vmul.f32 %v2141, %v2141
        %v2398 = vmul.f32 %v2142, %v2142
        %v2399 = vmul.f32 %v2143, %v2143
        %v2400 = vmul.f32 %v2144, %v2144
        %v2401 = vmul.f32 %v2145, %v2145
        %v2402 = vmul.f32 %v2146, %v2146
        %v2403 = vmul.f32 %v2147, %v2147
        %v2404 = vmul.f32 %v2148, %v2148
        %v2405 = vmul.f32 %v2149, %v2149
        %v2406 = vmul.f32 %v2150, %v2150
        %v2407 = vmul.f32 %v2151, %v2151
        %v2408 = vmul.f32 %v2152, %v2152
        %v2409 = vmul.f32 %v2153, %v2153
        %v2410 = vmul.f32 %v2154, %v2154
        %v2411 = vmul.f32 %v2155, %v2155
        %v2412 = vmul.f32 %v2156, %v2156
        %v2413 = vmul.f32 %v2157, %v2157
        %v2414 = vmul.f32 %v2158, %v2158
        %v2415 = vmul.f32 %v2159, %v2159
        %v2416 = vmul.f32 %v2160, %v2160
        %v2417 = vmul.f32 %v2161, %v2161
        %v2418 = vmul.f32 %v2162, %v2162
        %v2419 = vmul.f32 %v2163, %v2163
        %v2420 = vmul.f32 %v2164, %v2164
        %v2421 = vmul.f32 %v2165, %v2165
        %v2422 = vmul.f32 %v2166, %v2166
        %v2423 = vmul.f32 %v2167, %v2167
        %v2424 = vmul.f32 %v2168, %v2168
        %v2425 = vmul.f32 %v2169, %v2169
        %v2426 = vmul.f32 %v2170, %v2170
        %v2427 = vmul.f32 %v2171, %v2171
        %v2428 = vmul.f32 %v2172, %v2172
        %v2429 = vmul.f32 %v2173, %v2173
        %v2430 = vmul.f32 %v2174, %v2174
        %v2431 = vmul.f32 %v2175, %v2175
        %v2432 = vmul.f32 %v2176, %v2176
        %v2433 = vmul.f32 %v2177, %v2177
        %v2434 = vmul.f32 %v2178, %v2178
        %v2435 = vmul.f32 %v2179, %v2179
        %v2436 = vmul.f32 %v2180, %v2180
        %v2437 = vmul.f32 %v2181, %v2181
        %v2438 = vmul.f32 %v2182, %v2182
        %v2439 = vmul.f32 %v2183, %v2183
        %v2440 = vmul.f32 %v2184, %v2184
        %v2441 = vmul.f32 %v2185, %v2185
        %v2442 = vmul.f32 %v2186, %v2186
        %v2443 = vmul.f32 %v2187, %v2187
        %v2444 = vmul.f32 %v2188, %v2188
        %v2445 = vmul.f32 %v2189, %v2189
        %v2446 = vmul.f32 %v2190, %v2190
        %v2447 = vmul.f32 %v2191, %v2191
        %v2448 = vmul.f32 %v2192, %v2192
        %v2449 = vmul.f32 %v2193, %v2193
        %v2450 = vmul.f32 %v2194, %v2194
        %v2451 = vmul.f32 %v2195, %v2195
        %v2452 = vmul.f32 %v2196, %v2196
        %v2453 = vmul.f32 %v2197, %v2197
        %v2454 = vmul.f32 %v2198, %v2198
        %v2455 = vmul.f32 %v2199, %v2199
        %v2456 = vmul.f32 %v2200, %v2200
        %v2457 = vmul.f32 %v2201, %v2201
        %v2458 = vmul.f32 %v2202, %v2202
        %v2459 = vmul.f32 %v2203, %v2203
        %v2460 = vmul.f32 %v2204, %v2204
        %v2461 = vmul.f32 %v2205, %v2205
        %v2462 = vmul.f32 %v2206, %v2206
        %v2463 = vmul.f32 %v2207, %v2207
        %v2464 = vmul.f32 %v2208, %v2208
        %v2465 = vmul.f32 %v2209, %v2209
        %v2466 = vmul.f32 %v2210, %v2210
        %v2467 = vmul.f32 %v2211, %v2211
        %v2468 = vmul.f32 %v2212, %v2212
        %v2469 = vmul.f32 %v2213, %v2213
        %v2470 = vmul.f32 %v2214, %v2214
        %v2471 = vmul.f32 %v2215, %v2215
        %v2472 = vmul.f32 %v2216, %v2216
        %v2473 = vmul.f32 %v2217, %v2217
        %v2474 = vmul.f32 %v2218, %v2218
        %v2475 = vmul.f32 %v2219, %v2219
        %v2476 = vmul.f32 %v2220, %v2220
        %v2477 = vmul.f32 %v2221, %v2221
        %v2478 = vmul.f32 %v2222, %v2222
        %v2479 = vmul.f32 %v2223, %v2223
        %v2480 = vmul.f32 %v2224, %v2224
        %v2481 = vmul.f32 %v2225, %v2225
        %v2482 = vmul.f32 %v2226, %v2226
        %v2483 = vmul.f32 %v2227, %v2227
        %v2484 = vmul.f32 %v2228, %v2228
        %v2485 = vmul.f32 %v2229, %v2229
        %v2486 = vmul.f32 %v2230, %v2230
        %v2487 = vmul.f32 %v2231, %v2231
        %v2488 = vmul.f32 %v2232, %v2232
        %v2489 = vmul.f32 %v2233, %v2233
        %v2490 = vmul.f32 %v2234, %v2234
        %v2491 = vmul.f32 %v2235, %v2235
        %v2492 = vmul.f32 %v2236, %v2236
        %v2493 = vmul.f32 %v2237, %v2237
        %v2494 = vmul.f32 %v2238, %v2238
        %v2495 = vmul.f32 %v2239, %v2239
        %v2496 = vmul.f32 %v2240, %v2240
        %v2497 = vmul.f32 %v2241, %v2241
        %v2498 = vmul.f32 %v2242, %v2242
        %v2499 = vmul.f32 %v2243, %v2243
        %v2500 = vmul.f32 %v2244, %v2244
        %v2501 = vmul.f32 %v2245, %v2245
        %v2502 = vmul.f32 %v2246, %v2246
        %v2503 = vmul.f32 %v2247, %v2247
        %v2504 = vmul.f32 %v2248, %v2248
        %v2505 = vmul.f32 %v2249, %v2249
        %v2506 = vmul.f32 %v2250, %v2250
        %v2507 = vmul.f32 %v2251, %v2251
        %v2508 = vmul.f32 %v2252, %v2252
        %v2509 = vmul.f32 %v2253, %v2253
        %v2510 = vmul.f32 %v2254, %v2254
        %v2511 = vmul.f32 %v2255, %v2255
        %v2512 = vmul.f32 %v2256, %v2256
        %v2513 = vmul.f32 %v2257, %v2257
        %v2514 = vmul.f32 %v2258, %v2258
        %v2515 = vmul.f32 %v2259, %v2259
        %v2516 = vmul.f32 %v2260, %v2260
        %v2517 = vmul.f32 %v2261, %v2261
        %v2518 = vmul.f32 %v2262, %v2262
        %v2519 = vmul.f32 %v2263, %v2263
        %v2520 = vmul.f32 %v2264, %v2264
        %v2521 = vmul.f32 %v2265, %v2265
        %v2522 = vmul.f32 %v2266, %v2266
        %v2523 = vmul.f32 %v2267, %v2267
        %v2524 = vmul.f32 %v2268, %v2268
        %v2525 = vmul.f32 %v2269, %v2269
        %v2526 = vmul.f32 %v2270, %v2270
        %v2527 = vmul.f32 %v2271, %v2271
        %v2528 = vmul.f32 %v2272, %v2272
        %v2529 = vmul.f32 %v2273, %v2273
        %v2530 = vmul.f32 %v2274, %v2274
        %v2531 = vmul.f32 %v2275, %v2275
        %v2532 = vmul.f32 %v2276, %v2276
        %v2533 = vmul.f32 %v2277, %v2277
        %v2534 = vmul.f32 %v2278, %v2278
        %v2535 = vmul.f32 %v2279, %v2279
        %v2536 = vmul.f32 %v2280, %v2280
        %v2537 = vmul.f32 %v2281, %v2281
        %v2538 = vmul.f32 %v2282, %v2282
        %v2539 = vmul.f32 %v2283, %v2283
        %v2540 = vmul.f32 %v2284, %v2284
        %v2541 = vmul.f32 %v2285, %v2285
        %v2542 = vmul.f32 %v2286, %v2286
        %v2543 = vmul.f32 %v2287, %v2287
        %v2544 = vmul.f32 %v2288, %v2288
        %v2545 = vmul.f32 %v2289, %v2289
        %v2546 = vmul.f32 %v2290, %v2290
        %v2547 = vmul.f32 %v2291, %v2291
        %v2548 = vmul.f32 %v2292, %v2292
        %v2549 = vmul.f32 %v2293, %v2293
        %v2550 = vmul.f32 %v2294, %v2294
        %v2551 = vmul.f32 %v2295, %v2295
        %v2552 = vmul.f32 %v2296, %v2296
        %v2553 = vmul.f32 %v2297, %v2297
        %v2554 = vmul.f32 %v2298, %v2298
        %v2555 = vmul.f32 %v2299, %v2299
        %v2556 = vmul.f32 %v2300, %v2300
        %v2557 = vmul.f32 %v2301, %v2301
        %v2558 = vmul.f32 %v2302, %v2302
        %2815 = vset.pattern.permute.xlu0 0
        %2816 = vperm.xlu0 %2815, %v2303
        %v2817 = vpop.permute.xlu0 %2816
        %2818 = vset.pattern.permute.xlu0 0
        %2819 = vperm.xlu0 %2818, %v2304
        %v2820 = vpop.permute.xlu0 %2819
        %2821 = vset.pattern.permute.xlu0 0
        %2822 = vperm.xlu0 %2821, %v2305
        %v2823 = vpop.permute.xlu0 %2822
        %2824 = vset.pattern.permute.xlu0 0
        %2825 = vperm.xlu0 %2824, %v2306
        %v2826 = vpop.permute.xlu0 %2825
        %2827 = vset.pattern.permute.xlu0 0
        %2828 = vperm.xlu0 %2827, %v2307
        %v2829 = vpop.permute.xlu0 %2828
        %2830 = vset.pattern.permute.xlu0 0
        %2831 = vperm.xlu0 %2830, %v2308
        %v2832 = vpop.permute.xlu0 %2831
        %2833 = vset.pattern.permute.xlu0 0
        %2834 = vperm.xlu0 %2833, %v2309
        %v2835 = vpop.permute.xlu0 %2834
        %2836 = vset.pattern.permute.xlu0 0
        %2837 = vperm.xlu0 %2836, %v2310
        %v2838 = vpop.permute.xlu0 %2837
        %2839 = vset.pattern.permute.xlu0 0
        %2840 = vperm.xlu0 %2839, %v2311
        %v2841 = vpop.permute.xlu0 %2840
        %2842 = vset.pattern.permute.xlu0 0
        %2843 = vperm.xlu0 %2842, %v2312
        %v2844 = vpop.permute.xlu0 %2843
        %2845 = vset.pattern.permute.xlu0 0
        %2846 = vperm.xlu0 %2845, %v2313
        %v2847 = vpop.permute.xlu0 %2846
        %2848 = vset.pattern.permute.xlu0 0
        %2849 = vperm.xlu0 %2848, %v2314
        %v2850 = vpop.permute.xlu0 %2849
        %2851 = vset.pattern.permute.xlu0 0
        %2852 = vperm.xlu0 %2851, %v2315
        %v2853 = vpop.permute.xlu0 %2852
        %2854 = vset.pattern.permute.xlu0 0
        %2855 = vperm.xlu0 %2854, %v2316
        %v2856 = vpop.permute.xlu0 %2855
        %2857 = vset.pattern.permute.xlu0 0
        %2858 = vperm.xlu0 %2857, %v2317
        %v2859 = vpop.permute.xlu0 %2858
        %2860 = vset.pattern.permute.xlu0 0
        %2861 = vperm.xlu0 %2860, %v2318
        %v2862 = vpop.permute.xlu0 %2861
        %2863 = vset.pattern.permute.xlu0 0
        %2864 = vperm.xlu0 %2863, %v2319
        %v2865 = vpop.permute.xlu0 %2864
        %2866 = vset.pattern.permute.xlu0 0
        %2867 = vperm.xlu0 %2866, %v2320
        %v2868 = vpop.permute.xlu0 %2867
        %2869 = vset.pattern.permute.xlu0 0
        %2870 = vperm.xlu0 %2869, %v2321
        %v2871 = vpop.permute.xlu0 %2870
        %2872 = vset.pattern.permute.xlu0 0
        %2873 = vperm.xlu0 %2872, %v2322
        %v2874 = vpop.permute.xlu0 %2873
        %2875 = vset.pattern.permute.xlu0 0
        %2876 = vperm.xlu0 %2875, %v2323
        %v2877 = vpop.permute.xlu0 %2876
        %2878 = vset.pattern.permute.xlu0 0
        %2879 = vperm.xlu0 %2878, %v2324
        %v2880 = vpop.permute.xlu0 %2879
        %2881 = vset.pattern.permute.xlu0 0
        %2882 = vperm.xlu0 %2881, %v2325
        %v2883 = vpop.permute.xlu0 %2882
        %2884 = vset.pattern.permute.xlu0 0
        %2885 = vperm.xlu0 %2884, %v2326
        %v2886 = vpop.permute.xlu0 %2885
        %2887 = vset.pattern.permute.xlu0 0
        %2888 = vperm.xlu0 %2887, %v2327
        %v2889 = vpop.permute.xlu0 %2888
        %2890 = vset.pattern.permute.xlu0 0
        %2891 = vperm.xlu0 %2890, %v2328
        %v2892 = vpop.permute.xlu0 %2891
        %2893 = vset.pattern.permute.xlu0 0
        %2894 = vperm.xlu0 %2893, %v2329
        %v2895 = vpop.permute.xlu0 %2894
        %2896 = vset.pattern.permute.xlu0 0
        %2897 = vperm.xlu0 %2896, %v2330
        %v2898 = vpop.permute.xlu0 %2897
        %2899 = vset.pattern.permute.xlu0 0
        %2900 = vperm.xlu0 %2899, %v2331
        %v2901 = vpop.permute.xlu0 %2900
        %2902 = vset.pattern.permute.xlu0 0
        %2903 = vperm.xlu0 %2902, %v2332
        %v2904 = vpop.permute.xlu0 %2903
        %2905 = vset.pattern.permute.xlu0 0
        %2906 = vperm.xlu0 %2905, %v2333
        %v2907 = vpop.permute.xlu0 %2906
        %2908 = vset.pattern.permute.xlu0 0
        %2909 = vperm.xlu0 %2908, %v2334
        %v2910 = vpop.permute.xlu0 %2909
        %2911 = vset.pattern.permute.xlu0 0
        %2912 = vperm.xlu0 %2911, %v2335
        %v2913 = vpop.permute.xlu0 %2912
        %2914 = vset.pattern.permute.xlu0 0
        %2915 = vperm.xlu0 %2914, %v2336
        %v2916 = vpop.permute.xlu0 %2915
        %2917 = vset.pattern.permute.xlu0 0
        %2918 = vperm.xlu0 %2917, %v2337
        %v2919 = vpop.permute.xlu0 %2918
        %2920 = vset.pattern.permute.xlu0 0
        %2921 = vperm.xlu0 %2920, %v2338
        %v2922 = vpop.permute.xlu0 %2921
        %2923 = vset.pattern.permute.xlu0 0
        %2924 = vperm.xlu0 %2923, %v2339
        %v2925 = vpop.permute.xlu0 %2924
        %2926 = vset.pattern.permute.xlu0 0
        %2927 = vperm.xlu0 %2926, %v2340
        %v2928 = vpop.permute.xlu0 %2927
        %2929 = vset.pattern.permute.xlu0 0
        %2930 = vperm.xlu0 %2929, %v2341
        %v2931 = vpop.permute.xlu0 %2930
        %2932 = vset.pattern.permute.xlu0 0
        %2933 = vperm.xlu0 %2932, %v2342
        %v2934 = vpop.permute.xlu0 %2933
        %2935 = vset.pattern.permute.xlu0 0
        %2936 = vperm.xlu0 %2935, %v2343
        %v2937 = vpop.permute.xlu0 %2936
        %2938 = vset.pattern.permute.xlu0 0
        %2939 = vperm.xlu0 %2938, %v2344
        %v2940 = vpop.permute.xlu0 %2939
        %2941 = vset.pattern.permute.xlu0 0
        %2942 = vperm.xlu0 %2941, %v2345
        %v2943 = vpop.permute.xlu0 %2942
        %2944 = vset.pattern.permute.xlu0 0
        %2945 = vperm.xlu0 %2944, %v2346
        %v2946 = vpop.permute.xlu0 %2945
        %2947 = vset.pattern.permute.xlu0 0
        %2948 = vperm.xlu0 %2947, %v2347
        %v2949 = vpop.permute.xlu0 %2948
        %2950 = vset.pattern.permute.xlu0 0
        %2951 = vperm.xlu0 %2950, %v2348
        %v2952 = vpop.permute.xlu0 %2951
        %2953 = vset.pattern.permute.xlu0 0
        %2954 = vperm.xlu0 %2953, %v2349
        %v2955 = vpop.permute.xlu0 %2954
        %2956 = vset.pattern.permute.xlu0 0
        %2957 = vperm.xlu0 %2956, %v2350
        %v2958 = vpop.permute.xlu0 %2957
        %2959 = vset.pattern.permute.xlu0 0
        %2960 = vperm.xlu0 %2959, %v2351
        %v2961 = vpop.permute.xlu0 %2960
        %2962 = vset.pattern.permute.xlu0 0
        %2963 = vperm.xlu0 %2962, %v2352
        %v2964 = vpop.permute.xlu0 %2963
        %2965 = vset.pattern.permute.xlu0 0
        %2966 = vperm.xlu0 %2965, %v2353
        %v2967 = vpop.permute.xlu0 %2966
        %2968 = vset.pattern.permute.xlu0 0
        %2969 = vperm.xlu0 %2968, %v2354
        %v2970 = vpop.permute.xlu0 %2969
        %2971 = vset.pattern.permute.xlu0 0
        %2972 = vperm.xlu0 %2971, %v2355
        %v2973 = vpop.permute.xlu0 %2972
        %2974 = vset.pattern.permute.xlu0 0
        %2975 = vperm.xlu0 %2974, %v2356
        %v2976 = vpop.permute.xlu0 %2975
        %2977 = vset.pattern.permute.xlu0 0
        %2978 = vperm.xlu0 %2977, %v2357
        %v2979 = vpop.permute.xlu0 %2978
        %2980 = vset.pattern.permute.xlu0 0
        %2981 = vperm.xlu0 %2980, %v2358
        %v2982 = vpop.permute.xlu0 %2981
        %2983 = vset.pattern.permute.xlu0 0
        %2984 = vperm.xlu0 %2983, %v2359
        %v2985 = vpop.permute.xlu0 %2984
        %2986 = vset.pattern.permute.xlu0 0
        %2987 = vperm.xlu0 %2986, %v2360
        %v2988 = vpop.permute.xlu0 %2987
        %2989 = vset.pattern.permute.xlu0 0
        %2990 = vperm.xlu0 %2989, %v2361
        %v2991 = vpop.permute.xlu0 %2990
        %2992 = vset.pattern.permute.xlu0 0
        %2993 = vperm.xlu0 %2992, %v2362
        %v2994 = vpop.permute.xlu0 %2993
        %2995 = vset.pattern.permute.xlu0 0
        %2996 = vperm.xlu0 %2995, %v2363
        %v2997 = vpop.permute.xlu0 %2996
        %2998 = vset.pattern.permute.xlu0 0
        %2999 = vperm.xlu0 %2998, %v2364
        %v3000 = vpop.permute.xlu0 %2999
        %3001 = vset.pattern.permute.xlu0 0
        %3002 = vperm.xlu0 %3001, %v2365
        %v3003 = vpop.permute.xlu0 %3002
        %3004 = vset.pattern.permute.xlu0 0
        %3005 = vperm.xlu0 %3004, %v2366
        %v3006 = vpop.permute.xlu0 %3005
        %3007 = vset.pattern.permute.xlu0 0
        %3008 = vperm.xlu0 %3007, %v2367
        %v3009 = vpop.permute.xlu0 %3008
        %3010 = vset.pattern.permute.xlu0 0
        %3011 = vperm.xlu0 %3010, %v2368
        %v3012 = vpop.permute.xlu0 %3011
        %3013 = vset.pattern.permute.xlu0 0
        %3014 = vperm.xlu0 %3013, %v2369
        %v3015 = vpop.permute.xlu0 %3014
        %3016 = vset.pattern.permute.xlu0 0
        %3017 = vperm.xlu0 %3016, %v2370
        %v3018 = vpop.permute.xlu0 %3017
        %3019 = vset.pattern.permute.xlu0 0
        %3020 = vperm.xlu0 %3019, %v2371
        %v3021 = vpop.permute.xlu0 %3020
        %3022 = vset.pattern.permute.xlu0 0
        %3023 = vperm.xlu0 %3022, %v2372
        %v3024 = vpop.permute.xlu0 %3023
        %3025 = vset.pattern.permute.xlu0 0
        %3026 = vperm.xlu0 %3025, %v2373
        %v3027 = vpop.permute.xlu0 %3026
        %3028 = vset.pattern.permute.xlu0 0
        %3029 = vperm.xlu0 %3028, %v2374
        %v3030 = vpop.permute.xlu0 %3029
        %3031 = vset.pattern.permute.xlu0 0
        %3032 = vperm.xlu0 %3031, %v2375
        %v3033 = vpop.permute.xlu0 %3032
        %3034 = vset.pattern.permute.xlu0 0
        %3035 = vperm.xlu0 %3034, %v2376
        %v3036 = vpop.permute.xlu0 %3035
        %3037 = vset.pattern.permute.xlu0 0
        %3038 = vperm.xlu0 %3037, %v2377
        %v3039 = vpop.permute.xlu0 %3038
        %3040 = vset.pattern.permute.xlu0 0
        %3041 = vperm.xlu0 %3040, %v2378
        %v3042 = vpop.permute.xlu0 %3041
        %3043 = vset.pattern.permute.xlu0 0
        %3044 = vperm.xlu0 %3043, %v2379
        %v3045 = vpop.permute.xlu0 %3044
        %3046 = vset.pattern.permute.xlu0 0
        %3047 = vperm.xlu0 %3046, %v2380
        %v3048 = vpop.permute.xlu0 %3047
        %3049 = vset.pattern.permute.xlu0 0
        %3050 = vperm.xlu0 %3049, %v2381
        %v3051 = vpop.permute.xlu0 %3050
        %3052 = vset.pattern.permute.xlu0 0
        %3053 = vperm.xlu0 %3052, %v2382
        %v3054 = vpop.permute.xlu0 %3053
        %3055 = vset.pattern.permute.xlu0 0
        %3056 = vperm.xlu0 %3055, %v2383
        %v3057 = vpop.permute.xlu0 %3056
        %3058 = vset.pattern.permute.xlu0 0
        %3059 = vperm.xlu0 %3058, %v2384
        %v3060 = vpop.permute.xlu0 %3059
        %3061 = vset.pattern.permute.xlu0 0
        %3062 = vperm.xlu0 %3061, %v2385
        %v3063 = vpop.permute.xlu0 %3062
        %3064 = vset.pattern.permute.xlu0 0
        %3065 = vperm.xlu0 %3064, %v2386
        %v3066 = vpop.permute.xlu0 %3065
        %3067 = vset.pattern.permute.xlu0 0
        %3068 = vperm.xlu0 %3067, %v2387
        %v3069 = vpop.permute.xlu0 %3068
        %3070 = vset.pattern.permute.xlu0 0
        %3071 = vperm.xlu0 %3070, %v2388
        %v3072 = vpop.permute.xlu0 %3071
        %3073 = vset.pattern.permute.xlu0 0
        %3074 = vperm.xlu0 %3073, %v2389
        %v3075 = vpop.permute.xlu0 %3074
        %3076 = vset.pattern.permute.xlu0 0
        %3077 = vperm.xlu0 %3076, %v2390
        %v3078 = vpop.permute.xlu0 %3077
        %3079 = vset.pattern.permute.xlu0 0
        %3080 = vperm.xlu0 %3079, %v2391
        %v3081 = vpop.permute.xlu0 %3080
        %3082 = vset.pattern.permute.xlu0 0
        %3083 = vperm.xlu0 %3082, %v2392
        %v3084 = vpop.permute.xlu0 %3083
        %3085 = vset.pattern.permute.xlu0 0
        %3086 = vperm.xlu0 %3085, %v2393
        %v3087 = vpop.permute.xlu0 %3086
        %3088 = vset.pattern.permute.xlu0 0
        %3089 = vperm.xlu0 %3088, %v2394
        %v3090 = vpop.permute.xlu0 %3089
        %3091 = vset.pattern.permute.xlu0 0
        %3092 = vperm.xlu0 %3091, %v2395
        %v3093 = vpop.permute.xlu0 %3092
        %3094 = vset.pattern.permute.xlu0 0
        %3095 = vperm.xlu0 %3094, %v2396
        %v3096 = vpop.permute.xlu0 %3095
        %3097 = vset.pattern.permute.xlu0 0
        %3098 = vperm.xlu0 %3097, %v2397
        %v3099 = vpop.permute.xlu0 %3098
        %3100 = vset.pattern.permute.xlu0 0
        %3101 = vperm.xlu0 %3100, %v2398
        %v3102 = vpop.permute.xlu0 %3101
        %3103 = vset.pattern.permute.xlu0 0
        %3104 = vperm.xlu0 %3103, %v2399
        %v3105 = vpop.permute.xlu0 %3104
        %3106 = vset.pattern.permute.xlu0 0
        %3107 = vperm.xlu0 %3106, %v2400
        %v3108 = vpop.permute.xlu0 %3107
        %3109 = vset.pattern.permute.xlu0 0
        %3110 = vperm.xlu0 %3109, %v2401
        %v3111 = vpop.permute.xlu0 %3110
        %3112 = vset.pattern.permute.xlu0 0
        %3113 = vperm.xlu0 %3112, %v2402
        %v3114 = vpop.permute.xlu0 %3113
        %3115 = vset.pattern.permute.xlu0 0
        %3116 = vperm.xlu0 %3115, %v2403
        %v3117 = vpop.permute.xlu0 %3116
        %3118 = vset.pattern.permute.xlu0 0
        %3119 = vperm.xlu0 %3118, %v2404
        %v3120 = vpop.permute.xlu0 %3119
        %3121 = vset.pattern.permute.xlu0 0
        %3122 = vperm.xlu0 %3121, %v2405
        %v3123 = vpop.permute.xlu0 %3122
        %3124 = vset.pattern.permute.xlu0 0
        %3125 = vperm.xlu0 %3124, %v2406
        %v3126 = vpop.permute.xlu0 %3125
        %3127 = vset.pattern.permute.xlu0 0
        %3128 = vperm.xlu0 %3127, %v2407
        %v3129 = vpop.permute.xlu0 %3128
        %3130 = vset.pattern.permute.xlu0 0
        %3131 = vperm.xlu0 %3130, %v2408
        %v3132 = vpop.permute.xlu0 %3131
        %3133 = vset.pattern.permute.xlu0 0
        %3134 = vperm.xlu0 %3133, %v2409
        %v3135 = vpop.permute.xlu0 %3134
        %3136 = vset.pattern.permute.xlu0 0
        %3137 = vperm.xlu0 %3136, %v2410
        %v3138 = vpop.permute.xlu0 %3137
        %3139 = vset.pattern.permute.xlu0 0
        %3140 = vperm.xlu0 %3139, %v2411
        %v3141 = vpop.permute.xlu0 %3140
        %3142 = vset.pattern.permute.xlu0 0
        %3143 = vperm.xlu0 %3142, %v2412
        %v3144 = vpop.permute.xlu0 %3143
        %3145 = vset.pattern.permute.xlu0 0
        %3146 = vperm.xlu0 %3145, %v2413
        %v3147 = vpop.permute.xlu0 %3146
        %3148 = vset.pattern.permute.xlu0 0
        %3149 = vperm.xlu0 %3148, %v2414
        %v3150 = vpop.permute.xlu0 %3149
        %3151 = vset.pattern.permute.xlu0 0
        %3152 = vperm.xlu0 %3151, %v2415
        %v3153 = vpop.permute.xlu0 %3152
        %3154 = vset.pattern.permute.xlu0 0
        %3155 = vperm.xlu0 %3154, %v2416
        %v3156 = vpop.permute.xlu0 %3155
        %3157 = vset.pattern.permute.xlu0 0
        %3158 = vperm.xlu0 %3157, %v2417
        %v3159 = vpop.permute.xlu0 %3158
        %3160 = vset.pattern.permute.xlu0 0
        %3161 = vperm.xlu0 %3160, %v2418
        %v3162 = vpop.permute.xlu0 %3161
        %3163 = vset.pattern.permute.xlu0 0
        %3164 = vperm.xlu0 %3163, %v2419
        %v3165 = vpop.permute.xlu0 %3164
        %3166 = vset.pattern.permute.xlu0 0
        %3167 = vperm.xlu0 %3166, %v2420
        %v3168 = vpop.permute.xlu0 %3167
        %3169 = vset.pattern.permute.xlu0 0
        %3170 = vperm.xlu0 %3169, %v2421
        %v3171 = vpop.permute.xlu0 %3170
        %3172 = vset.pattern.permute.xlu0 0
        %3173 = vperm.xlu0 %3172, %v2422
        %v3174 = vpop.permute.xlu0 %3173
        %3175 = vset.pattern.permute.xlu0 0
        %3176 = vperm.xlu0 %3175, %v2423
        %v3177 = vpop.permute.xlu0 %3176
        %3178 = vset.pattern.permute.xlu0 0
        %3179 = vperm.xlu0 %3178, %v2424
        %v3180 = vpop.permute.xlu0 %3179
        %3181 = vset.pattern.permute.xlu0 0
        %3182 = vperm.xlu0 %3181, %v2425
        %v3183 = vpop.permute.xlu0 %3182
        %3184 = vset.pattern.permute.xlu0 0
        %3185 = vperm.xlu0 %3184, %v2426
        %v3186 = vpop.permute.xlu0 %3185
        %3187 = vset.pattern.permute.xlu0 0
        %3188 = vperm.xlu0 %3187, %v2427
        %v3189 = vpop.permute.xlu0 %3188
        %3190 = vset.pattern.permute.xlu0 0
        %3191 = vperm.xlu0 %3190, %v2428
        %v3192 = vpop.permute.xlu0 %3191
        %3193 = vset.pattern.permute.xlu0 0
        %3194 = vperm.xlu0 %3193, %v2429
        %v3195 = vpop.permute.xlu0 %3194
        %3196 = vset.pattern.permute.xlu0 0
        %3197 = vperm.xlu0 %3196, %v2430
        %v3198 = vpop.permute.xlu0 %3197
        %3199 = vset.pattern.permute.xlu0 0
        %3200 = vperm.xlu0 %3199, %v2431
        %v3201 = vpop.permute.xlu0 %3200
        %3202 = vset.pattern.permute.xlu0 0
        %3203 = vperm.xlu0 %3202, %v2432
        %v3204 = vpop.permute.xlu0 %3203
        %3205 = vset.pattern.permute.xlu0 0
        %3206 = vperm.xlu0 %3205, %v2433
        %v3207 = vpop.permute.xlu0 %3206
        %3208 = vset.pattern.permute.xlu0 0
        %3209 = vperm.xlu0 %3208, %v2434
        %v3210 = vpop.permute.xlu0 %3209
        %3211 = vset.pattern.permute.xlu0 0
        %3212 = vperm.xlu0 %3211, %v2435
        %v3213 = vpop.permute.xlu0 %3212
        %3214 = vset.pattern.permute.xlu0 0
        %3215 = vperm.xlu0 %3214, %v2436
        %v3216 = vpop.permute.xlu0 %3215
        %3217 = vset.pattern.permute.xlu0 0
        %3218 = vperm.xlu0 %3217, %v2437
        %v3219 = vpop.permute.xlu0 %3218
        %3220 = vset.pattern.permute.xlu0 0
        %3221 = vperm.xlu0 %3220, %v2438
        %v3222 = vpop.permute.xlu0 %3221
        %3223 = vset.pattern.permute.xlu0 0
        %3224 = vperm.xlu0 %3223, %v2439
        %v3225 = vpop.permute.xlu0 %3224
        %3226 = vset.pattern.permute.xlu0 0
        %3227 = vperm.xlu0 %3226, %v2440
        %v3228 = vpop.permute.xlu0 %3227
        %3229 = vset.pattern.permute.xlu0 0
        %3230 = vperm.xlu0 %3229, %v2441
        %v3231 = vpop.permute.xlu0 %3230
        %3232 = vset.pattern.permute.xlu0 0
        %3233 = vperm.xlu0 %3232, %v2442
        %v3234 = vpop.permute.xlu0 %3233
        %3235 = vset.pattern.permute.xlu0 0
        %3236 = vperm.xlu0 %3235, %v2443
        %v3237 = vpop.permute.xlu0 %3236
        %3238 = vset.pattern.permute.xlu0 0
        %3239 = vperm.xlu0 %3238, %v2444
        %v3240 = vpop.permute.xlu0 %3239
        %3241 = vset.pattern.permute.xlu0 0
        %3242 = vperm.xlu0 %3241, %v2445
        %v3243 = vpop.permute.xlu0 %3242
        %3244 = vset.pattern.permute.xlu0 0
        %3245 = vperm.xlu0 %3244, %v2446
        %v3246 = vpop.permute.xlu0 %3245
        %3247 = vset.pattern.permute.xlu0 0
        %3248 = vperm.xlu0 %3247, %v2447
        %v3249 = vpop.permute.xlu0 %3248
        %3250 = vset.pattern.permute.xlu0 0
        %3251 = vperm.xlu0 %3250, %v2448
        %v3252 = vpop.permute.xlu0 %3251
        %3253 = vset.pattern.permute.xlu0 0
        %3254 = vperm.xlu0 %3253, %v2449
        %v3255 = vpop.permute.xlu0 %3254
        %3256 = vset.pattern.permute.xlu0 0
        %3257 = vperm.xlu0 %3256, %v2450
        %v3258 = vpop.permute.xlu0 %3257
        %3259 = vset.pattern.permute.xlu0 0
        %3260 = vperm.xlu0 %3259, %v2451
        %v3261 = vpop.permute.xlu0 %3260
        %3262 = vset.pattern.permute.xlu0 0
        %3263 = vperm.xlu0 %3262, %v2452
        %v3264 = vpop.permute.xlu0 %3263
        %3265 = vset.pattern.permute.xlu0 0
        %3266 = vperm.xlu0 %3265, %v2453
        %v3267 = vpop.permute.xlu0 %3266
        %3268 = vset.pattern.permute.xlu0 0
        %3269 = vperm.xlu0 %3268, %v2454
        %v3270 = vpop.permute.xlu0 %3269
        %3271 = vset.pattern.permute.xlu0 0
        %3272 = vperm.xlu0 %3271, %v2455
        %v3273 = vpop.permute.xlu0 %3272
        %3274 = vset.pattern.permute.xlu0 0
        %3275 = vperm.xlu0 %3274, %v2456
        %v3276 = vpop.permute.xlu0 %3275
        %3277 = vset.pattern.permute.xlu0 0
        %3278 = vperm.xlu0 %3277, %v2457
        %v3279 = vpop.permute.xlu0 %3278
        %3280 = vset.pattern.permute.xlu0 0
        %3281 = vperm.xlu0 %3280, %v2458
        %v3282 = vpop.permute.xlu0 %3281
        %3283 = vset.pattern.permute.xlu0 0
        %3284 = vperm.xlu0 %3283, %v2459
        %v3285 = vpop.permute.xlu0 %3284
        %3286 = vset.pattern.permute.xlu0 0
        %3287 = vperm.xlu0 %3286, %v2460
        %v3288 = vpop.permute.xlu0 %3287
        %3289 = vset.pattern.permute.xlu0 0
        %3290 = vperm.xlu0 %3289, %v2461
        %v3291 = vpop.permute.xlu0 %3290
        %3292 = vset.pattern.permute.xlu0 0
        %3293 = vperm.xlu0 %3292, %v2462
        %v3294 = vpop.permute.xlu0 %3293
        %3295 = vset.pattern.permute.xlu0 0
        %3296 = vperm.xlu0 %3295, %v2463
        %v3297 = vpop.permute.xlu0 %3296
        %3298 = vset.pattern.permute.xlu0 0
        %3299 = vperm.xlu0 %3298, %v2464
        %v3300 = vpop.permute.xlu0 %3299
        %3301 = vset.pattern.permute.xlu0 0
        %3302 = vperm.xlu0 %3301, %v2465
        %v3303 = vpop.permute.xlu0 %3302
        %3304 = vset.pattern.permute.xlu0 0
        %3305 = vperm.xlu0 %3304, %v2466
        %v3306 = vpop.permute.xlu0 %3305
        %3307 = vset.pattern.permute.xlu0 0
        %3308 = vperm.xlu0 %3307, %v2467
        %v3309 = vpop.permute.xlu0 %3308
        %3310 = vset.pattern.permute.xlu0 0
        %3311 = vperm.xlu0 %3310, %v2468
        %v3312 = vpop.permute.xlu0 %3311
        %3313 = vset.pattern.permute.xlu0 0
        %3314 = vperm.xlu0 %3313, %v2469
        %v3315 = vpop.permute.xlu0 %3314
        %3316 = vset.pattern.permute.xlu0 0
        %3317 = vperm.xlu0 %3316, %v2470
        %v3318 = vpop.permute.xlu0 %3317
        %3319 = vset.pattern.permute.xlu0 0
        %3320 = vperm.xlu0 %3319, %v2471
        %v3321 = vpop.permute.xlu0 %3320
        %3322 = vset.pattern.permute.xlu0 0
        %3323 = vperm.xlu0 %3322, %v2472
        %v3324 = vpop.permute.xlu0 %3323
        %3325 = vset.pattern.permute.xlu0 0
        %3326 = vperm.xlu0 %3325, %v2473
        %v3327 = vpop.permute.xlu0 %3326
        %3328 = vset.pattern.permute.xlu0 0
        %3329 = vperm.xlu0 %3328, %v2474
        %v3330 = vpop.permute.xlu0 %3329
        %3331 = vset.pattern.permute.xlu0 0
        %3332 = vperm.xlu0 %3331, %v2475
        %v3333 = vpop.permute.xlu0 %3332
        %3334 = vset.pattern.permute.xlu0 0
        %3335 = vperm.xlu0 %3334, %v2476
        %v3336 = vpop.permute.xlu0 %3335
        %3337 = vset.pattern.permute.xlu0 0
        %3338 = vperm.xlu0 %3337, %v2477
        %v3339 = vpop.permute.xlu0 %3338
        %3340 = vset.pattern.permute.xlu0 0
        %3341 = vperm.xlu0 %3340, %v2478
        %v3342 = vpop.permute.xlu0 %3341
        %3343 = vset.pattern.permute.xlu0 0
        %3344 = vperm.xlu0 %3343, %v2479
        %v3345 = vpop.permute.xlu0 %3344
        %3346 = vset.pattern.permute.xlu0 0
        %3347 = vperm.xlu0 %3346, %v2480
        %v3348 = vpop.permute.xlu0 %3347
        %3349 = vset.pattern.permute.xlu0 0
        %3350 = vperm.xlu0 %3349, %v2481
        %v3351 = vpop.permute.xlu0 %3350
        %3352 = vset.pattern.permute.xlu0 0
        %3353 = vperm.xlu0 %3352, %v2482
        %v3354 = vpop.permute.xlu0 %3353
        %3355 = vset.pattern.permute.xlu0 0
        %3356 = vperm.xlu0 %3355, %v2483
        %v3357 = vpop.permute.xlu0 %3356
        %3358 = vset.pattern.permute.xlu0 0
        %3359 = vperm.xlu0 %3358, %v2484
        %v3360 = vpop.permute.xlu0 %3359
        %3361 = vset.pattern.permute.xlu0 0
        %3362 = vperm.xlu0 %3361, %v2485
        %v3363 = vpop.permute.xlu0 %3362
        %3364 = vset.pattern.permute.xlu0 0
        %3365 = vperm.xlu0 %3364, %v2486
        %v3366 = vpop.permute.xlu0 %3365
        %3367 = vset.pattern.permute.xlu0 0
        %3368 = vperm.xlu0 %3367, %v2487
        %v3369 = vpop.permute.xlu0 %3368
        %3370 = vset.pattern.permute.xlu0 0
        %3371 = vperm.xlu0 %3370, %v2488
        %v3372 = vpop.permute.xlu0 %3371
        %3373 = vset.pattern.permute.xlu0 0
        %3374 = vperm.xlu0 %3373, %v2489
        %v3375 = vpop.permute.xlu0 %3374
        %3376 = vset.pattern.permute.xlu0 0
        %3377 = vperm.xlu0 %3376, %v2490
        %v3378 = vpop.permute.xlu0 %3377
        %3379 = vset.pattern.permute.xlu0 0
        %3380 = vperm.xlu0 %3379, %v2491
        %v3381 = vpop.permute.xlu0 %3380
        %3382 = vset.pattern.permute.xlu0 0
        %3383 = vperm.xlu0 %3382, %v2492
        %v3384 = vpop.permute.xlu0 %3383
        %3385 = vset.pattern.permute.xlu0 0
        %3386 = vperm.xlu0 %3385, %v2493
        %v3387 = vpop.permute.xlu0 %3386
        %3388 = vset.pattern.permute.xlu0 0
        %3389 = vperm.xlu0 %3388, %v2494
        %v3390 = vpop.permute.xlu0 %3389
        %3391 = vset.pattern.permute.xlu0 0
        %3392 = vperm.xlu0 %3391, %v2495
        %v3393 = vpop.permute.xlu0 %3392
        %3394 = vset.pattern.permute.xlu0 0
        %3395 = vperm.xlu0 %3394, %v2496
        %v3396 = vpop.permute.xlu0 %3395
        %3397 = vset.pattern.permute.xlu0 0
        %3398 = vperm.xlu0 %3397, %v2497
        %v3399 = vpop.permute.xlu0 %3398
        %3400 = vset.pattern.permute.xlu0 0
        %3401 = vperm.xlu0 %3400, %v2498
        %v3402 = vpop.permute.xlu0 %3401
        %3403 = vset.pattern.permute.xlu0 0
        %3404 = vperm.xlu0 %3403, %v2499
        %v3405 = vpop.permute.xlu0 %3404
        %3406 = vset.pattern.permute.xlu0 0
        %3407 = vperm.xlu0 %3406, %v2500
        %v3408 = vpop.permute.xlu0 %3407
        %3409 = vset.pattern.permute.xlu0 0
        %3410 = vperm.xlu0 %3409, %v2501
        %v3411 = vpop.permute.xlu0 %3410
        %3412 = vset.pattern.permute.xlu0 0
        %3413 = vperm.xlu0 %3412, %v2502
        %v3414 = vpop.permute.xlu0 %3413
        %3415 = vset.pattern.permute.xlu0 0
        %3416 = vperm.xlu0 %3415, %v2503
        %v3417 = vpop.permute.xlu0 %3416
        %3418 = vset.pattern.permute.xlu0 0
        %3419 = vperm.xlu0 %3418, %v2504
        %v3420 = vpop.permute.xlu0 %3419
        %3421 = vset.pattern.permute.xlu0 0
        %3422 = vperm.xlu0 %3421, %v2505
        %v3423 = vpop.permute.xlu0 %3422
        %3424 = vset.pattern.permute.xlu0 0
        %3425 = vperm.xlu0 %3424, %v2506
        %v3426 = vpop.permute.xlu0 %3425
        %3427 = vset.pattern.permute.xlu0 0
        %3428 = vperm.xlu0 %3427, %v2507
        %v3429 = vpop.permute.xlu0 %3428
        %3430 = vset.pattern.permute.xlu0 0
        %3431 = vperm.xlu0 %3430, %v2508
        %v3432 = vpop.permute.xlu0 %3431
        %3433 = vset.pattern.permute.xlu0 0
        %3434 = vperm.xlu0 %3433, %v2509
        %v3435 = vpop.permute.xlu0 %3434
        %3436 = vset.pattern.permute.xlu0 0
        %3437 = vperm.xlu0 %3436, %v2510
        %v3438 = vpop.permute.xlu0 %3437
        %3439 = vset.pattern.permute.xlu0 0
        %3440 = vperm.xlu0 %3439, %v2511
        %v3441 = vpop.permute.xlu0 %3440
        %3442 = vset.pattern.permute.xlu0 0
        %3443 = vperm.xlu0 %3442, %v2512
        %v3444 = vpop.permute.xlu0 %3443
        %3445 = vset.pattern.permute.xlu0 0
        %3446 = vperm.xlu0 %3445, %v2513
        %v3447 = vpop.permute.xlu0 %3446
        %3448 = vset.pattern.permute.xlu0 0
        %3449 = vperm.xlu0 %3448, %v2514
        %v3450 = vpop.permute.xlu0 %3449
        %3451 = vset.pattern.permute.xlu0 0
        %3452 = vperm.xlu0 %3451, %v2515
        %v3453 = vpop.permute.xlu0 %3452
        %3454 = vset.pattern.permute.xlu0 0
        %3455 = vperm.xlu0 %3454, %v2516
        %v3456 = vpop.permute.xlu0 %3455
        %3457 = vset.pattern.permute.xlu0 0
        %3458 = vperm.xlu0 %3457, %v2517
        %v3459 = vpop.permute.xlu0 %3458
        %3460 = vset.pattern.permute.xlu0 0
        %3461 = vperm.xlu0 %3460, %v2518
        %v3462 = vpop.permute.xlu0 %3461
        %3463 = vset.pattern.permute.xlu0 0
        %3464 = vperm.xlu0 %3463, %v2519
        %v3465 = vpop.permute.xlu0 %3464
        %3466 = vset.pattern.permute.xlu0 0
        %3467 = vperm.xlu0 %3466, %v2520
        %v3468 = vpop.permute.xlu0 %3467
        %3469 = vset.pattern.permute.xlu0 0
        %3470 = vperm.xlu0 %3469, %v2521
        %v3471 = vpop.permute.xlu0 %3470
        %3472 = vset.pattern.permute.xlu0 0
        %3473 = vperm.xlu0 %3472, %v2522
        %v3474 = vpop.permute.xlu0 %3473
        %3475 = vset.pattern.permute.xlu0 0
        %3476 = vperm.xlu0 %3475, %v2523
        %v3477 = vpop.permute.xlu0 %3476
        %3478 = vset.pattern.permute.xlu0 0
        %3479 = vperm.xlu0 %3478, %v2524
        %v3480 = vpop.permute.xlu0 %3479
        %3481 = vset.pattern.permute.xlu0 0
        %3482 = vperm.xlu0 %3481, %v2525
        %v3483 = vpop.permute.xlu0 %3482
        %3484 = vset.pattern.permute.xlu0 0
        %3485 = vperm.xlu0 %3484, %v2526
        %v3486 = vpop.permute.xlu0 %3485
        %3487 = vset.pattern.permute.xlu0 0
        %3488 = vperm.xlu0 %3487, %v2527
        %v3489 = vpop.permute.xlu0 %3488
        %3490 = vset.pattern.permute.xlu0 0
        %3491 = vperm.xlu0 %3490, %v2528
        %v3492 = vpop.permute.xlu0 %3491
        %3493 = vset.pattern.permute.xlu0 0
        %3494 = vperm.xlu0 %3493, %v2529
        %v3495 = vpop.permute.xlu0 %3494
        %3496 = vset.pattern.permute.xlu0 0
        %3497 = vperm.xlu0 %3496, %v2530
        %v3498 = vpop.permute.xlu0 %3497
        %3499 = vset.pattern.permute.xlu0 0
        %3500 = vperm.xlu0 %3499, %v2531
        %v3501 = vpop.permute.xlu0 %3500
        %3502 = vset.pattern.permute.xlu0 0
        %3503 = vperm.xlu0 %3502, %v2532
        %v3504 = vpop.permute.xlu0 %3503
        %3505 = vset.pattern.permute.xlu0 0
        %3506 = vperm.xlu0 %3505, %v2533
        %v3507 = vpop.permute.xlu0 %3506
        %3508 = vset.pattern.permute.xlu0 0
        %3509 = vperm.xlu0 %3508, %v2534
        %v3510 = vpop.permute.xlu0 %3509
        %3511 = vset.pattern.permute.xlu0 0
        %3512 = vperm.xlu0 %3511, %v2535
        %v3513 = vpop.permute.xlu0 %3512
        %3514 = vset.pattern.permute.xlu0 0
        %3515 = vperm.xlu0 %3514, %v2536
        %v3516 = vpop.permute.xlu0 %3515
        %3517 = vset.pattern.permute.xlu0 0
        %3518 = vperm.xlu0 %3517, %v2537
        %v3519 = vpop.permute.xlu0 %3518
        %3520 = vset.pattern.permute.xlu0 0
        %3521 = vperm.xlu0 %3520, %v2538
        %v3522 = vpop.permute.xlu0 %3521
        %3523 = vset.pattern.permute.xlu0 0
        %3524 = vperm.xlu0 %3523, %v2539
        %v3525 = vpop.permute.xlu0 %3524
        %3526 = vset.pattern.permute.xlu0 0
        %3527 = vperm.xlu0 %3526, %v2540
        %v3528 = vpop.permute.xlu0 %3527
        %3529 = vset.pattern.permute.xlu0 0
        %3530 = vperm.xlu0 %3529, %v2541
        %v3531 = vpop.permute.xlu0 %3530
        %3532 = vset.pattern.permute.xlu0 0
        %3533 = vperm.xlu0 %3532, %v2542
        %v3534 = vpop.permute.xlu0 %3533
        %3535 = vset.pattern.permute.xlu0 0
        %3536 = vperm.xlu0 %3535, %v2543
        %v3537 = vpop.permute.xlu0 %3536
        %3538 = vset.pattern.permute.xlu0 0
        %3539 = vperm.xlu0 %3538, %v2544
        %v3540 = vpop.permute.xlu0 %3539
        %3541 = vset.pattern.permute.xlu0 0
        %3542 = vperm.xlu0 %3541, %v2545
        %v3543 = vpop.permute.xlu0 %3542
        %3544 = vset.pattern.permute.xlu0 0
        %3545 = vperm.xlu0 %3544, %v2546
        %v3546 = vpop.permute.xlu0 %3545
        %3547 = vset.pattern.permute.xlu0 0
        %3548 = vperm.xlu0 %3547, %v2547
        %v3549 = vpop.permute.xlu0 %3548
        %3550 = vset.pattern.permute.xlu0 0
        %3551 = vperm.xlu0 %3550, %v2548
        %v3552 = vpop.permute.xlu0 %3551
        %3553 = vset.pattern.permute.xlu0 0
        %3554 = vperm.xlu0 %3553, %v2549
        %v3555 = vpop.permute.xlu0 %3554
        %3556 = vset.pattern.permute.xlu0 0
        %3557 = vperm.xlu0 %3556, %v2550
        %v3558 = vpop.permute.xlu0 %3557
        %3559 = vset.pattern.permute.xlu0 0
        %3560 = vperm.xlu0 %3559, %v2551
        %v3561 = vpop.permute.xlu0 %3560
        %3562 = vset.pattern.permute.xlu0 0
        %3563 = vperm.xlu0 %3562, %v2552
        %v3564 = vpop.permute.xlu0 %3563
        %3565 = vset.pattern.permute.xlu0 0
        %3566 = vperm.xlu0 %3565, %v2553
        %v3567 = vpop.permute.xlu0 %3566
        %3568 = vset.pattern.permute.xlu0 0
        %3569 = vperm.xlu0 %3568, %v2554
        %v3570 = vpop.permute.xlu0 %3569
        %3571 = vset.pattern.permute.xlu0 0
        %3572 = vperm.xlu0 %3571, %v2555
        %v3573 = vpop.permute.xlu0 %3572
        %3574 = vset.pattern.permute.xlu0 0
        %3575 = vperm.xlu0 %3574, %v2556
        %v3576 = vpop.permute.xlu0 %3575
        %3577 = vset.pattern.permute.xlu0 0
        %3578 = vperm.xlu0 %3577, %v2557
        %v3579 = vpop.permute.xlu0 %3578
        %3580 = vset.pattern.permute.xlu0 0
        %3581 = vperm.xlu0 %3580, %v2558
        %v3582 = vpop.permute.xlu0 %3581
        %v3583 = vlaneseq
        %v3584 = vand.u32 %v3583, 127
        %v3585 = vlaneseq
        %v3586 = vshrl.u32 %v3585, 7
        %v3587 = vsub.s32 %v3584, %v3586
        %v3588 = vrot.slane %v2817, %v3587
        %v3589 = vadd.s32 %v3584, 4294967288
        %v3590 = vlaneseq
        %v3591 = vshrl.u32 %v3590, 7
        %v3592 = vsub.s32 %v3589, %v3591
        %v3593 = vrot.slane %v2820, %v3592
        %vm3594 = vcmask 130112
        %v3595 = vsel %vm3594, %v3593, %v3588
        %v3596 = vadd.s32 %v3584, 4294967280
        %v3597 = vlaneseq
        %v3598 = vshrl.u32 %v3597, 7
        %v3599 = vsub.s32 %v3596, %v3598
        %v3600 = vrot.slane %v2823, %v3599
        %vm3601 = vcmask 195712
        %v3602 = vsel %vm3601, %v3600, %v3595
        %v3603 = vadd.s32 %v3584, 4294967272
        %v3604 = vlaneseq
        %v3605 = vshrl.u32 %v3604, 7
        %v3606 = vsub.s32 %v3603, %v3605
        %v3607 = vrot.slane %v2826, %v3606
        %vm3608 = vcmask 261312
        %v3609 = vsel %vm3608, %v3607, %v3602
        %v3610 = vadd.s32 %v3584, 4294967264
        %v3611 = vlaneseq
        %v3612 = vshrl.u32 %v3611, 7
        %v3613 = vsub.s32 %v3610, %v3612
        %v3614 = vrot.slane %v2829, %v3613
        %vm3615 = vcmask 326912
        %v3616 = vsel %vm3615, %v3614, %v3609
        %v3617 = vadd.s32 %v3584, 4294967256
        %v3618 = vlaneseq
        %v3619 = vshrl.u32 %v3618, 7
        %v3620 = vsub.s32 %v3617, %v3619
        %v3621 = vrot.slane %v2832, %v3620
        %vm3622 = vcmask 392512
        %v3623 = vsel %vm3622, %v3621, %v3616
        %v3624 = vadd.s32 %v3584, 4294967248
        %v3625 = vlaneseq
        %v3626 = vshrl.u32 %v3625, 7
        %v3627 = vsub.s32 %v3624, %v3626
        %v3628 = vrot.slane %v2835, %v3627
        %vm3629 = vcmask 458112
        %v3630 = vsel %vm3629, %v3628, %v3623
        %v3631 = vadd.s32 %v3584, 4294967240
        %v3632 = vlaneseq
        %v3633 = vshrl.u32 %v3632, 7
        %v3634 = vsub.s32 %v3631, %v3633
        %v3635 = vrot.slane %v2838, %v3634
        %vm3636 = vcmask 523712
        %v3637 = vsel %vm3636, %v3635, %v3630
        %v3638 = vadd.s32 %v3584, 4294967232
        %v3639 = vlaneseq
        %v3640 = vshrl.u32 %v3639, 7
        %v3641 = vsub.s32 %v3638, %v3640
        %v3642 = vrot.slane %v2841, %v3641
        %vm3643 = vcmask 589312
        %v3644 = vsel %vm3643, %v3642, %v3637
        %v3645 = vadd.s32 %v3584, 4294967224
        %v3646 = vlaneseq
        %v3647 = vshrl.u32 %v3646, 7
        %v3648 = vsub.s32 %v3645, %v3647
        %v3649 = vrot.slane %v2844, %v3648
        %vm3650 = vcmask 654912
        %v3651 = vsel %vm3650, %v3649, %v3644
        %v3652 = vadd.s32 %v3584, 4294967216
        %v3653 = vlaneseq
        %v3654 = vshrl.u32 %v3653, 7
        %v3655 = vsub.s32 %v3652, %v3654
        %v3656 = vrot.slane %v2847, %v3655
        %vm3657 = vcmask 720512
        %v3658 = vsel %vm3657, %v3656, %v3651
        %v3659 = vadd.s32 %v3584, 4294967208
        %v3660 = vlaneseq
        %v3661 = vshrl.u32 %v3660, 7
        %v3662 = vsub.s32 %v3659, %v3661
        %v3663 = vrot.slane %v2850, %v3662
        %vm3664 = vcmask 786112
        %v3665 = vsel %vm3664, %v3663, %v3658
        %v3666 = vadd.s32 %v3584, 4294967200
        %v3667 = vlaneseq
        %v3668 = vshrl.u32 %v3667, 7
        %v3669 = vsub.s32 %v3666, %v3668
        %v3670 = vrot.slane %v2853, %v3669
        %vm3671 = vcmask 851712
        %v3672 = vsel %vm3671, %v3670, %v3665
        %v3673 = vadd.s32 %v3584, 4294967192
        %v3674 = vlaneseq
        %v3675 = vshrl.u32 %v3674, 7
        %v3676 = vsub.s32 %v3673, %v3675
        %v3677 = vrot.slane %v2856, %v3676
        %vm3678 = vcmask 917312
        %v3679 = vsel %vm3678, %v3677, %v3672
        %v3680 = vadd.s32 %v3584, 4294967184
        %v3681 = vlaneseq
        %v3682 = vshrl.u32 %v3681, 7
        %v3683 = vsub.s32 %v3680, %v3682
        %v3684 = vrot.slane %v2859, %v3683
        %vm3685 = vcmask 982912
        %v3686 = vsel %vm3685, %v3684, %v3679
        %v3687 = vadd.s32 %v3584, 4294967176
        %v3688 = vlaneseq
        %v3689 = vshrl.u32 %v3688, 7
        %v3690 = vsub.s32 %v3687, %v3689
        %v3691 = vrot.slane %v2862, %v3690
        %vm3692 = vcmask 1048512
        %v3693 = vsel %vm3692, %v3691, %v3686
        %v3694 = vlaneseq
        %v3695 = vshrl.u32 %v3694, 7
        %v3696 = vsub.s32 %v3584, %v3695
        %v3697 = vrot.slane %v2865, %v3696
        %v3698 = vlaneseq
        %v3699 = vshrl.u32 %v3698, 7
        %v3700 = vsub.s32 %v3589, %v3699
        %v3701 = vrot.slane %v2868, %v3700
        %v3702 = vsel %vm3594, %v3701, %v3697
        %v3703 = vlaneseq
        %v3704 = vshrl.u32 %v3703, 7
        %v3705 = vsub.s32 %v3596, %v3704
        %v3706 = vrot.slane %v2871, %v3705
        %v3707 = vsel %vm3601, %v3706, %v3702
        %v3708 = vlaneseq
        %v3709 = vshrl.u32 %v3708, 7
        %v3710 = vsub.s32 %v3603, %v3709
        %v3711 = vrot.slane %v2874, %v3710
        %v3712 = vsel %vm3608, %v3711, %v3707
        %v3713 = vlaneseq
        %v3714 = vshrl.u32 %v3713, 7
        %v3715 = vsub.s32 %v3610, %v3714
        %v3716 = vrot.slane %v2877, %v3715
        %v3717 = vsel %vm3615, %v3716, %v3712
        %v3718 = vlaneseq
        %v3719 = vshrl.u32 %v3718, 7
        %v3720 = vsub.s32 %v3617, %v3719
        %v3721 = vrot.slane %v2880, %v3720
        %v3722 = vsel %vm3622, %v3721, %v3717
        %v3723 = vlaneseq
        %v3724 = vshrl.u32 %v3723, 7
        %v3725 = vsub.s32 %v3624, %v3724
        %v3726 = vrot.slane %v2883, %v3725
        %v3727 = vsel %vm3629, %v3726, %v3722
        %v3728 = vlaneseq
        %v3729 = vshrl.u32 %v3728, 7
        %v3730 = vsub.s32 %v3631, %v3729
        %v3731 = vrot.slane %v2886, %v3730
        %v3732 = vsel %vm3636, %v3731, %v3727
        %v3733 = vlaneseq
        %v3734 = vshrl.u32 %v3733, 7
        %v3735 = vsub.s32 %v3638, %v3734
        %v3736 = vrot.slane %v2889, %v3735
        %v3737 = vsel %vm3643, %v3736, %v3732
        %v3738 = vlaneseq
        %v3739 = vshrl.u32 %v3738, 7
        %v3740 = vsub.s32 %v3645, %v3739
        %v3741 = vrot.slane %v2892, %v3740
        %v3742 = vsel %vm3650, %v3741, %v3737
        %v3743 = vlaneseq
        %v3744 = vshrl.u32 %v3743, 7
        %v3745 = vsub.s32 %v3652, %v3744
        %v3746 = vrot.slane %v2895, %v3745
        %v3747 = vsel %vm3657, %v3746, %v3742
        %v3748 = vlaneseq
        %v3749 = vshrl.u32 %v3748, 7
        %v3750 = vsub.s32 %v3659, %v3749
        %v3751 = vrot.slane %v2898, %v3750
        %v3752 = vsel %vm3664, %v3751, %v3747
        %v3753 = vlaneseq
        %v3754 = vshrl.u32 %v3753, 7
        %v3755 = vsub.s32 %v3666, %v3754
        %v3756 = vrot.slane %v2901, %v3755
        %v3757 = vsel %vm3671, %v3756, %v3752
        %v3758 = vlaneseq
        %v3759 = vshrl.u32 %v3758, 7
        %v3760 = vsub.s32 %v3673, %v3759
        %v3761 = vrot.slane %v2904, %v3760
        %v3762 = vsel %vm3678, %v3761, %v3757
        %v3763 = vlaneseq
        %v3764 = vshrl.u32 %v3763, 7
        %v3765 = vsub.s32 %v3680, %v3764
        %v3766 = vrot.slane %v2907, %v3765
        %v3767 = vsel %vm3685, %v3766, %v3762
        %v3768 = vlaneseq
        %v3769 = vshrl.u32 %v3768, 7
        %v3770 = vsub.s32 %v3687, %v3769
        %v3771 = vrot.slane %v2910, %v3770
        %v3772 = vsel %vm3692, %v3771, %v3767
        %v3773 = vlaneseq
        %v3774 = vshrl.u32 %v3773, 7
        %v3775 = vsub.s32 %v3584, %v3774
        %v3776 = vrot.slane %v2913, %v3775
        %v3777 = vlaneseq
        %v3778 = vshrl.u32 %v3777, 7
        %v3779 = vsub.s32 %v3589, %v3778
        %v3780 = vrot.slane %v2916, %v3779
        %v3781 = vsel %vm3594, %v3780, %v3776
        %v3782 = vlaneseq
        %v3783 = vshrl.u32 %v3782, 7
        %v3784 = vsub.s32 %v3596, %v3783
        %v3785 = vrot.slane %v2919, %v3784
        %v3786 = vsel %vm3601, %v3785, %v3781
        %v3787 = vlaneseq
        %v3788 = vshrl.u32 %v3787, 7
        %v3789 = vsub.s32 %v3603, %v3788
        %v3790 = vrot.slane %v2922, %v3789
        %v3791 = vsel %vm3608, %v3790, %v3786
        %v3792 = vlaneseq
        %v3793 = vshrl.u32 %v3792, 7
        %v3794 = vsub.s32 %v3610, %v3793
        %v3795 = vrot.slane %v2925, %v3794
        %v3796 = vsel %vm3615, %v3795, %v3791
        %v3797 = vlaneseq
        %v3798 = vshrl.u32 %v3797, 7
        %v3799 = vsub.s32 %v3617, %v3798
        %v3800 = vrot.slane %v2928, %v3799
        %v3801 = vsel %vm3622, %v3800, %v3796
        %v3802 = vlaneseq
        %v3803 = vshrl.u32 %v3802, 7
        %v3804 = vsub.s32 %v3624, %v3803
        %v3805 = vrot.slane %v2931, %v3804
        %v3806 = vsel %vm3629, %v3805, %v3801
        %v3807 = vlaneseq
        %v3808 = vshrl.u32 %v3807, 7
        %v3809 = vsub.s32 %v3631, %v3808
        %v3810 = vrot.slane %v2934, %v3809
        %v3811 = vsel %vm3636, %v3810, %v3806
        %v3812 = vlaneseq
        %v3813 = vshrl.u32 %v3812, 7
        %v3814 = vsub.s32 %v3638, %v3813
        %v3815 = vrot.slane %v2937, %v3814
        %v3816 = vsel %vm3643, %v3815, %v3811
        %v3817 = vlaneseq
        %v3818 = vshrl.u32 %v3817, 7
        %v3819 = vsub.s32 %v3645, %v3818
        %v3820 = vrot.slane %v2940, %v3819
        %v3821 = vsel %vm3650, %v3820, %v3816
        %v3822 = vlaneseq
        %v3823 = vshrl.u32 %v3822, 7
        %v3824 = vsub.s32 %v3652, %v3823
        %v3825 = vrot.slane %v2943, %v3824
        %v3826 = vsel %vm3657, %v3825, %v3821
        %v3827 = vlaneseq
        %v3828 = vshrl.u32 %v3827, 7
        %v3829 = vsub.s32 %v3659, %v3828
        %v3830 = vrot.slane %v2946, %v3829
        %v3831 = vsel %vm3664, %v3830, %v3826
        %v3832 = vlaneseq
        %v3833 = vshrl.u32 %v3832, 7
        %v3834 = vsub.s32 %v3666, %v3833
        %v3835 = vrot.slane %v2949, %v3834
        %v3836 = vsel %vm3671, %v3835, %v3831
        %v3837 = vlaneseq
        %v3838 = vshrl.u32 %v3837, 7
        %v3839 = vsub.s32 %v3673, %v3838
        %v3840 = vrot.slane %v2952, %v3839
        %v3841 = vsel %vm3678, %v3840, %v3836
        %v3842 = vlaneseq
        %v3843 = vshrl.u32 %v3842, 7
        %v3844 = vsub.s32 %v3680, %v3843
        %v3845 = vrot.slane %v2955, %v3844
        %v3846 = vsel %vm3685, %v3845, %v3841
        %v3847 = vlaneseq
        %v3848 = vshrl.u32 %v3847, 7
        %v3849 = vsub.s32 %v3687, %v3848
        %v3850 = vrot.slane %v2958, %v3849
        %v3851 = vsel %vm3692, %v3850, %v3846
        %v3852 = vlaneseq
        %v3853 = vshrl.u32 %v3852, 7
        %v3854 = vsub.s32 %v3584, %v3853
        %v3855 = vrot.slane %v2961, %v3854
        %v3856 = vlaneseq
        %v3857 = vshrl.u32 %v3856, 7
        %v3858 = vsub.s32 %v3589, %v3857
        %v3859 = vrot.slane %v2964, %v3858
        %v3860 = vsel %vm3594, %v3859, %v3855
        %v3861 = vlaneseq
        %v3862 = vshrl.u32 %v3861, 7
        %v3863 = vsub.s32 %v3596, %v3862
        %v3864 = vrot.slane %v2967, %v3863
        %v3865 = vsel %vm3601, %v3864, %v3860
        %v3866 = vlaneseq
        %v3867 = vshrl.u32 %v3866, 7
        %v3868 = vsub.s32 %v3603, %v3867
        %v3869 = vrot.slane %v2970, %v3868
        %v3870 = vsel %vm3608, %v3869, %v3865
        %v3871 = vlaneseq
        %v3872 = vshrl.u32 %v3871, 7
        %v3873 = vsub.s32 %v3610, %v3872
        %v3874 = vrot.slane %v2973, %v3873
        %v3875 = vsel %vm3615, %v3874, %v3870
        %v3876 = vlaneseq
        %v3877 = vshrl.u32 %v3876, 7
        %v3878 = vsub.s32 %v3617, %v3877
        %v3879 = vrot.slane %v2976, %v3878
        %v3880 = vsel %vm3622, %v3879, %v3875
        %v3881 = vlaneseq
        %v3882 = vshrl.u32 %v3881, 7
        %v3883 = vsub.s32 %v3624, %v3882
        %v3884 = vrot.slane %v2979, %v3883
        %v3885 = vsel %vm3629, %v3884, %v3880
        %v3886 = vlaneseq
        %v3887 = vshrl.u32 %v3886, 7
        %v3888 = vsub.s32 %v3631, %v3887
        %v3889 = vrot.slane %v2982, %v3888
        %v3890 = vsel %vm3636, %v3889, %v3885
        %v3891 = vlaneseq
        %v3892 = vshrl.u32 %v3891, 7
        %v3893 = vsub.s32 %v3638, %v3892
        %v3894 = vrot.slane %v2985, %v3893
        %v3895 = vsel %vm3643, %v3894, %v3890
        %v3896 = vlaneseq
        %v3897 = vshrl.u32 %v3896, 7
        %v3898 = vsub.s32 %v3645, %v3897
        %v3899 = vrot.slane %v2988, %v3898
        %v3900 = vsel %vm3650, %v3899, %v3895
        %v3901 = vlaneseq
        %v3902 = vshrl.u32 %v3901, 7
        %v3903 = vsub.s32 %v3652, %v3902
        %v3904 = vrot.slane %v2991, %v3903
        %v3905 = vsel %vm3657, %v3904, %v3900
        %v3906 = vlaneseq
        %v3907 = vshrl.u32 %v3906, 7
        %v3908 = vsub.s32 %v3659, %v3907
        %v3909 = vrot.slane %v2994, %v3908
        %v3910 = vsel %vm3664, %v3909, %v3905
        %v3911 = vlaneseq
        %v3912 = vshrl.u32 %v3911, 7
        %v3913 = vsub.s32 %v3666, %v3912
        %v3914 = vrot.slane %v2997, %v3913
        %v3915 = vsel %vm3671, %v3914, %v3910
        %v3916 = vlaneseq
        %v3917 = vshrl.u32 %v3916, 7
        %v3918 = vsub.s32 %v3673, %v3917
        %v3919 = vrot.slane %v3000, %v3918
        %v3920 = vsel %vm3678, %v3919, %v3915
        %v3921 = vlaneseq
        %v3922 = vshrl.u32 %v3921, 7
        %v3923 = vsub.s32 %v3680, %v3922
        %v3924 = vrot.slane %v3003, %v3923
        %v3925 = vsel %vm3685, %v3924, %v3920
        %v3926 = vlaneseq
        %v3927 = vshrl.u32 %v3926, 7
        %v3928 = vsub.s32 %v3687, %v3927
        %v3929 = vrot.slane %v3006, %v3928
        %v3930 = vsel %vm3692, %v3929, %v3925
        %v3931 = vlaneseq
        %v3932 = vshrl.u32 %v3931, 7
        %v3933 = vsub.s32 %v3584, %v3932
        %v3934 = vrot.slane %v3009, %v3933
        %v3935 = vlaneseq
        %v3936 = vshrl.u32 %v3935, 7
        %v3937 = vsub.s32 %v3589, %v3936
        %v3938 = vrot.slane %v3012, %v3937
        %v3939 = vsel %vm3594, %v3938, %v3934
        %v3940 = vlaneseq
        %v3941 = vshrl.u32 %v3940, 7
        %v3942 = vsub.s32 %v3596, %v3941
        %v3943 = vrot.slane %v3015, %v3942
        %v3944 = vsel %vm3601, %v3943, %v3939
        %v3945 = vlaneseq
        %v3946 = vshrl.u32 %v3945, 7
        %v3947 = vsub.s32 %v3603, %v3946
        %v3948 = vrot.slane %v3018, %v3947
        %v3949 = vsel %vm3608, %v3948, %v3944
        %v3950 = vlaneseq
        %v3951 = vshrl.u32 %v3950, 7
        %v3952 = vsub.s32 %v3610, %v3951
        %v3953 = vrot.slane %v3021, %v3952
        %v3954 = vsel %vm3615, %v3953, %v3949
        %v3955 = vlaneseq
        %v3956 = vshrl.u32 %v3955, 7
        %v3957 = vsub.s32 %v3617, %v3956
        %v3958 = vrot.slane %v3024, %v3957
        %v3959 = vsel %vm3622, %v3958, %v3954
        %v3960 = vlaneseq
        %v3961 = vshrl.u32 %v3960, 7
        %v3962 = vsub.s32 %v3624, %v3961
        %v3963 = vrot.slane %v3027, %v3962
        %v3964 = vsel %vm3629, %v3963, %v3959
        %v3965 = vlaneseq
        %v3966 = vshrl.u32 %v3965, 7
        %v3967 = vsub.s32 %v3631, %v3966
        %v3968 = vrot.slane %v3030, %v3967
        %v3969 = vsel %vm3636, %v3968, %v3964
        %v3970 = vlaneseq
        %v3971 = vshrl.u32 %v3970, 7
        %v3972 = vsub.s32 %v3638, %v3971
        %v3973 = vrot.slane %v3033, %v3972
        %v3974 = vsel %vm3643, %v3973, %v3969
        %v3975 = vlaneseq
        %v3976 = vshrl.u32 %v3975, 7
        %v3977 = vsub.s32 %v3645, %v3976
        %v3978 = vrot.slane %v3036, %v3977
        %v3979 = vsel %vm3650, %v3978, %v3974
        %v3980 = vlaneseq
        %v3981 = vshrl.u32 %v3980, 7
        %v3982 = vsub.s32 %v3652, %v3981
        %v3983 = vrot.slane %v3039, %v3982
        %v3984 = vsel %vm3657, %v3983, %v3979
        %v3985 = vlaneseq
        %v3986 = vshrl.u32 %v3985, 7
        %v3987 = vsub.s32 %v3659, %v3986
        %v3988 = vrot.slane %v3042, %v3987
        %v3989 = vsel %vm3664, %v3988, %v3984
        %v3990 = vlaneseq
        %v3991 = vshrl.u32 %v3990, 7
        %v3992 = vsub.s32 %v3666, %v3991
        %v3993 = vrot.slane %v3045, %v3992
        %v3994 = vsel %vm3671, %v3993, %v3989
        %v3995 = vlaneseq
        %v3996 = vshrl.u32 %v3995, 7
        %v3997 = vsub.s32 %v3673, %v3996
        %v3998 = vrot.slane %v3048, %v3997
        %v3999 = vsel %vm3678, %v3998, %v3994
        %v4000 = vlaneseq
        %v4001 = vshrl.u32 %v4000, 7
        %v4002 = vsub.s32 %v3680, %v4001
        %v4003 = vrot.slane %v3051, %v4002
        %v4004 = vsel %vm3685, %v4003, %v3999
        %v4005 = vlaneseq
        %v4006 = vshrl.u32 %v4005, 7
        %v4007 = vsub.s32 %v3687, %v4006
        %v4008 = vrot.slane %v3054, %v4007
        %v4009 = vsel %vm3692, %v4008, %v4004
        %v4010 = vlaneseq
        %v4011 = vshrl.u32 %v4010, 7
        %v4012 = vsub.s32 %v3584, %v4011
        %v4013 = vrot.slane %v3057, %v4012
        %v4014 = vlaneseq
        %v4015 = vshrl.u32 %v4014, 7
        %v4016 = vsub.s32 %v3589, %v4015
        %v4017 = vrot.slane %v3060, %v4016
        %v4018 = vsel %vm3594, %v4017, %v4013
        %v4019 = vlaneseq
        %v4020 = vshrl.u32 %v4019, 7
        %v4021 = vsub.s32 %v3596, %v4020
        %v4022 = vrot.slane %v3063, %v4021
        %v4023 = vsel %vm3601, %v4022, %v4018
        %v4024 = vlaneseq
        %v4025 = vshrl.u32 %v4024, 7
        %v4026 = vsub.s32 %v3603, %v4025
        %v4027 = vrot.slane %v3066, %v4026
        %v4028 = vsel %vm3608, %v4027, %v4023
        %v4029 = vlaneseq
        %v4030 = vshrl.u32 %v4029, 7
        %v4031 = vsub.s32 %v3610, %v4030
        %v4032 = vrot.slane %v3069, %v4031
        %v4033 = vsel %vm3615, %v4032, %v4028
        %v4034 = vlaneseq
        %v4035 = vshrl.u32 %v4034, 7
        %v4036 = vsub.s32 %v3617, %v4035
        %v4037 = vrot.slane %v3072, %v4036
        %v4038 = vsel %vm3622, %v4037, %v4033
        %v4039 = vlaneseq
        %v4040 = vshrl.u32 %v4039, 7
        %v4041 = vsub.s32 %v3624, %v4040
        %v4042 = vrot.slane %v3075, %v4041
        %v4043 = vsel %vm3629, %v4042, %v4038
        %v4044 = vlaneseq
        %v4045 = vshrl.u32 %v4044, 7
        %v4046 = vsub.s32 %v3631, %v4045
        %v4047 = vrot.slane %v3078, %v4046
        %v4048 = vsel %vm3636, %v4047, %v4043
        %v4049 = vlaneseq
        %v4050 = vshrl.u32 %v4049, 7
        %v4051 = vsub.s32 %v3638, %v4050
        %v4052 = vrot.slane %v3081, %v4051
        %v4053 = vsel %vm3643, %v4052, %v4048
        %v4054 = vlaneseq
        %v4055 = vshrl.u32 %v4054, 7
        %v4056 = vsub.s32 %v3645, %v4055
        %v4057 = vrot.slane %v3084, %v4056
        %v4058 = vsel %vm3650, %v4057, %v4053
        %v4059 = vlaneseq
        %v4060 = vshrl.u32 %v4059, 7
        %v4061 = vsub.s32 %v3652, %v4060
        %v4062 = vrot.slane %v3087, %v4061
        %v4063 = vsel %vm3657, %v4062, %v4058
        %v4064 = vlaneseq
        %v4065 = vshrl.u32 %v4064, 7
        %v4066 = vsub.s32 %v3659, %v4065
        %v4067 = vrot.slane %v3090, %v4066
        %v4068 = vsel %vm3664, %v4067, %v4063
        %v4069 = vlaneseq
        %v4070 = vshrl.u32 %v4069, 7
        %v4071 = vsub.s32 %v3666, %v4070
        %v4072 = vrot.slane %v3093, %v4071
        %v4073 = vsel %vm3671, %v4072, %v4068
        %v4074 = vlaneseq
        %v4075 = vshrl.u32 %v4074, 7
        %v4076 = vsub.s32 %v3673, %v4075
        %v4077 = vrot.slane %v3096, %v4076
        %v4078 = vsel %vm3678, %v4077, %v4073
        %v4079 = vlaneseq
        %v4080 = vshrl.u32 %v4079, 7
        %v4081 = vsub.s32 %v3680, %v4080
        %v4082 = vrot.slane %v3099, %v4081
        %v4083 = vsel %vm3685, %v4082, %v4078
        %v4084 = vlaneseq
        %v4085 = vshrl.u32 %v4084, 7
        %v4086 = vsub.s32 %v3687, %v4085
        %v4087 = vrot.slane %v3102, %v4086
        %v4088 = vsel %vm3692, %v4087, %v4083
        %v4089 = vlaneseq
        %v4090 = vshrl.u32 %v4089, 7
        %v4091 = vsub.s32 %v3584, %v4090
        %v4092 = vrot.slane %v3105, %v4091
        %v4093 = vlaneseq
        %v4094 = vshrl.u32 %v4093, 7
        %v4095 = vsub.s32 %v3589, %v4094
        %v4096 = vrot.slane %v3108, %v4095
        %v4097 = vsel %vm3594, %v4096, %v4092
        %v4098 = vlaneseq
        %v4099 = vshrl.u32 %v4098, 7
        %v4100 = vsub.s32 %v3596, %v4099
        %v4101 = vrot.slane %v3111, %v4100
        %v4102 = vsel %vm3601, %v4101, %v4097
        %v4103 = vlaneseq
        %v4104 = vshrl.u32 %v4103, 7
        %v4105 = vsub.s32 %v3603, %v4104
        %v4106 = vrot.slane %v3114, %v4105
        %v4107 = vsel %vm3608, %v4106, %v4102
        %v4108 = vlaneseq
        %v4109 = vshrl.u32 %v4108, 7
        %v4110 = vsub.s32 %v3610, %v4109
        %v4111 = vrot.slane %v3117, %v4110
        %v4112 = vsel %vm3615, %v4111, %v4107
        %v4113 = vlaneseq
        %v4114 = vshrl.u32 %v4113, 7
        %v4115 = vsub.s32 %v3617, %v4114
        %v4116 = vrot.slane %v3120, %v4115
        %v4117 = vsel %vm3622, %v4116, %v4112
        %v4118 = vlaneseq
        %v4119 = vshrl.u32 %v4118, 7
        %v4120 = vsub.s32 %v3624, %v4119
        %v4121 = vrot.slane %v3123, %v4120
        %v4122 = vsel %vm3629, %v4121, %v4117
        %v4123 = vlaneseq
        %v4124 = vshrl.u32 %v4123, 7
        %v4125 = vsub.s32 %v3631, %v4124
        %v4126 = vrot.slane %v3126, %v4125
        %v4127 = vsel %vm3636, %v4126, %v4122
        %v4128 = vlaneseq
        %v4129 = vshrl.u32 %v4128, 7
        %v4130 = vsub.s32 %v3638, %v4129
        %v4131 = vrot.slane %v3129, %v4130
        %v4132 = vsel %vm3643, %v4131, %v4127
        %v4133 = vlaneseq
        %v4134 = vshrl.u32 %v4133, 7
        %v4135 = vsub.s32 %v3645, %v4134
        %v4136 = vrot.slane %v3132, %v4135
        %v4137 = vsel %vm3650, %v4136, %v4132
        %v4138 = vlaneseq
        %v4139 = vshrl.u32 %v4138, 7
        %v4140 = vsub.s32 %v3652, %v4139
        %v4141 = vrot.slane %v3135, %v4140
        %v4142 = vsel %vm3657, %v4141, %v4137
        %v4143 = vlaneseq
        %v4144 = vshrl.u32 %v4143, 7
        %v4145 = vsub.s32 %v3659, %v4144
        %v4146 = vrot.slane %v3138, %v4145
        %v4147 = vsel %vm3664, %v4146, %v4142
        %v4148 = vlaneseq
        %v4149 = vshrl.u32 %v4148, 7
        %v4150 = vsub.s32 %v3666, %v4149
        %v4151 = vrot.slane %v3141, %v4150
        %v4152 = vsel %vm3671, %v4151, %v4147
        %v4153 = vlaneseq
        %v4154 = vshrl.u32 %v4153, 7
        %v4155 = vsub.s32 %v3673, %v4154
        %v4156 = vrot.slane %v3144, %v4155
        %v4157 = vsel %vm3678, %v4156, %v4152
        %v4158 = vlaneseq
        %v4159 = vshrl.u32 %v4158, 7
        %v4160 = vsub.s32 %v3680, %v4159
        %v4161 = vrot.slane %v3147, %v4160
        %v4162 = vsel %vm3685, %v4161, %v4157
        %v4163 = vlaneseq
        %v4164 = vshrl.u32 %v4163, 7
        %v4165 = vsub.s32 %v3687, %v4164
        %v4166 = vrot.slane %v3150, %v4165
        %v4167 = vsel %vm3692, %v4166, %v4162
        %v4168 = vlaneseq
        %v4169 = vshrl.u32 %v4168, 7
        %v4170 = vsub.s32 %v3584, %v4169
        %v4171 = vrot.slane %v3153, %v4170
        %v4172 = vlaneseq
        %v4173 = vshrl.u32 %v4172, 7
        %v4174 = vsub.s32 %v3589, %v4173
        %v4175 = vrot.slane %v3156, %v4174
        %v4176 = vsel %vm3594, %v4175, %v4171
        %v4177 = vlaneseq
        %v4178 = vshrl.u32 %v4177, 7
        %v4179 = vsub.s32 %v3596, %v4178
        %v4180 = vrot.slane %v3159, %v4179
        %v4181 = vsel %vm3601, %v4180, %v4176
        %v4182 = vlaneseq
        %v4183 = vshrl.u32 %v4182, 7
        %v4184 = vsub.s32 %v3603, %v4183
        %v4185 = vrot.slane %v3162, %v4184
        %v4186 = vsel %vm3608, %v4185, %v4181
        %v4187 = vlaneseq
        %v4188 = vshrl.u32 %v4187, 7
        %v4189 = vsub.s32 %v3610, %v4188
        %v4190 = vrot.slane %v3165, %v4189
        %v4191 = vsel %vm3615, %v4190, %v4186
        %v4192 = vlaneseq
        %v4193 = vshrl.u32 %v4192, 7
        %v4194 = vsub.s32 %v3617, %v4193
        %v4195 = vrot.slane %v3168, %v4194
        %v4196 = vsel %vm3622, %v4195, %v4191
        %v4197 = vlaneseq
        %v4198 = vshrl.u32 %v4197, 7
        %v4199 = vsub.s32 %v3624, %v4198
        %v4200 = vrot.slane %v3171, %v4199
        %v4201 = vsel %vm3629, %v4200, %v4196
        %v4202 = vlaneseq
        %v4203 = vshrl.u32 %v4202, 7
        %v4204 = vsub.s32 %v3631, %v4203
        %v4205 = vrot.slane %v3174, %v4204
        %v4206 = vsel %vm3636, %v4205, %v4201
        %v4207 = vlaneseq
        %v4208 = vshrl.u32 %v4207, 7
        %v4209 = vsub.s32 %v3638, %v4208
        %v4210 = vrot.slane %v3177, %v4209
        %v4211 = vsel %vm3643, %v4210, %v4206
        %v4212 = vlaneseq
        %v4213 = vshrl.u32 %v4212, 7
        %v4214 = vsub.s32 %v3645, %v4213
        %v4215 = vrot.slane %v3180, %v4214
        %v4216 = vsel %vm3650, %v4215, %v4211
        %v4217 = vlaneseq
        %v4218 = vshrl.u32 %v4217, 7
        %v4219 = vsub.s32 %v3652, %v4218
        %v4220 = vrot.slane %v3183, %v4219
        %v4221 = vsel %vm3657, %v4220, %v4216
        %v4222 = vlaneseq
        %v4223 = vshrl.u32 %v4222, 7
        %v4224 = vsub.s32 %v3659, %v4223
        %v4225 = vrot.slane %v3186, %v4224
        %v4226 = vsel %vm3664, %v4225, %v4221
        %v4227 = vlaneseq
        %v4228 = vshrl.u32 %v4227, 7
        %v4229 = vsub.s32 %v3666, %v4228
        %v4230 = vrot.slane %v3189, %v4229
        %v4231 = vsel %vm3671, %v4230, %v4226
        %v4232 = vlaneseq
        %v4233 = vshrl.u32 %v4232, 7
        %v4234 = vsub.s32 %v3673, %v4233
        %v4235 = vrot.slane %v3192, %v4234
        %v4236 = vsel %vm3678, %v4235, %v4231
        %v4237 = vlaneseq
        %v4238 = vshrl.u32 %v4237, 7
        %v4239 = vsub.s32 %v3680, %v4238
        %v4240 = vrot.slane %v3195, %v4239
        %v4241 = vsel %vm3685, %v4240, %v4236
        %v4242 = vlaneseq
        %v4243 = vshrl.u32 %v4242, 7
        %v4244 = vsub.s32 %v3687, %v4243
        %v4245 = vrot.slane %v3198, %v4244
        %v4246 = vsel %vm3692, %v4245, %v4241
        %v4247 = vlaneseq
        %v4248 = vshrl.u32 %v4247, 7
        %v4249 = vsub.s32 %v3584, %v4248
        %v4250 = vrot.slane %v3201, %v4249
        %v4251 = vlaneseq
        %v4252 = vshrl.u32 %v4251, 7
        %v4253 = vsub.s32 %v3589, %v4252
        %v4254 = vrot.slane %v3204, %v4253
        %v4255 = vsel %vm3594, %v4254, %v4250
        %v4256 = vlaneseq
        %v4257 = vshrl.u32 %v4256, 7
        %v4258 = vsub.s32 %v3596, %v4257
        %v4259 = vrot.slane %v3207, %v4258
        %v4260 = vsel %vm3601, %v4259, %v4255
        %v4261 = vlaneseq
        %v4262 = vshrl.u32 %v4261, 7
        %v4263 = vsub.s32 %v3603, %v4262
        %v4264 = vrot.slane %v3210, %v4263
        %v4265 = vsel %vm3608, %v4264, %v4260
        %v4266 = vlaneseq
        %v4267 = vshrl.u32 %v4266, 7
        %v4268 = vsub.s32 %v3610, %v4267
        %v4269 = vrot.slane %v3213, %v4268
        %v4270 = vsel %vm3615, %v4269, %v4265
        %v4271 = vlaneseq
        %v4272 = vshrl.u32 %v4271, 7
        %v4273 = vsub.s32 %v3617, %v4272
        %v4274 = vrot.slane %v3216, %v4273
        %v4275 = vsel %vm3622, %v4274, %v4270
        %v4276 = vlaneseq
        %v4277 = vshrl.u32 %v4276, 7
        %v4278 = vsub.s32 %v3624, %v4277
        %v4279 = vrot.slane %v3219, %v4278
        %v4280 = vsel %vm3629, %v4279, %v4275
        %v4281 = vlaneseq
        %v4282 = vshrl.u32 %v4281, 7
        %v4283 = vsub.s32 %v3631, %v4282
        %v4284 = vrot.slane %v3222, %v4283
        %v4285 = vsel %vm3636, %v4284, %v4280
        %v4286 = vlaneseq
        %v4287 = vshrl.u32 %v4286, 7
        %v4288 = vsub.s32 %v3638, %v4287
        %v4289 = vrot.slane %v3225, %v4288
        %v4290 = vsel %vm3643, %v4289, %v4285
        %v4291 = vlaneseq
        %v4292 = vshrl.u32 %v4291, 7
        %v4293 = vsub.s32 %v3645, %v4292
        %v4294 = vrot.slane %v3228, %v4293
        %v4295 = vsel %vm3650, %v4294, %v4290
        %v4296 = vlaneseq
        %v4297 = vshrl.u32 %v4296, 7
        %v4298 = vsub.s32 %v3652, %v4297
        %v4299 = vrot.slane %v3231, %v4298
        %v4300 = vsel %vm3657, %v4299, %v4295
        %v4301 = vlaneseq
        %v4302 = vshrl.u32 %v4301, 7
        %v4303 = vsub.s32 %v3659, %v4302
        %v4304 = vrot.slane %v3234, %v4303
        %v4305 = vsel %vm3664, %v4304, %v4300
        %v4306 = vlaneseq
        %v4307 = vshrl.u32 %v4306, 7
        %v4308 = vsub.s32 %v3666, %v4307
        %v4309 = vrot.slane %v3237, %v4308
        %v4310 = vsel %vm3671, %v4309, %v4305
        %v4311 = vlaneseq
        %v4312 = vshrl.u32 %v4311, 7
        %v4313 = vsub.s32 %v3673, %v4312
        %v4314 = vrot.slane %v3240, %v4313
        %v4315 = vsel %vm3678, %v4314, %v4310
        %v4316 = vlaneseq
        %v4317 = vshrl.u32 %v4316, 7
        %v4318 = vsub.s32 %v3680, %v4317
        %v4319 = vrot.slane %v3243, %v4318
        %v4320 = vsel %vm3685, %v4319, %v4315
        %v4321 = vlaneseq
        %v4322 = vshrl.u32 %v4321, 7
        %v4323 = vsub.s32 %v3687, %v4322
        %v4324 = vrot.slane %v3246, %v4323
        %v4325 = vsel %vm3692, %v4324, %v4320
        %v4326 = vlaneseq
        %v4327 = vshrl.u32 %v4326, 7
        %v4328 = vsub.s32 %v3584, %v4327
        %v4329 = vrot.slane %v3249, %v4328
        %v4330 = vlaneseq
        %v4331 = vshrl.u32 %v4330, 7
        %v4332 = vsub.s32 %v3589, %v4331
        %v4333 = vrot.slane %v3252, %v4332
        %v4334 = vsel %vm3594, %v4333, %v4329
        %v4335 = vlaneseq
        %v4336 = vshrl.u32 %v4335, 7
        %v4337 = vsub.s32 %v3596, %v4336
        %v4338 = vrot.slane %v3255, %v4337
        %v4339 = vsel %vm3601, %v4338, %v4334
        %v4340 = vlaneseq
        %v4341 = vshrl.u32 %v4340, 7
        %v4342 = vsub.s32 %v3603, %v4341
        %v4343 = vrot.slane %v3258, %v4342
        %v4344 = vsel %vm3608, %v4343, %v4339
        %v4345 = vlaneseq
        %v4346 = vshrl.u32 %v4345, 7
        %v4347 = vsub.s32 %v3610, %v4346
        %v4348 = vrot.slane %v3261, %v4347
        %v4349 = vsel %vm3615, %v4348, %v4344
        %v4350 = vlaneseq
        %v4351 = vshrl.u32 %v4350, 7
        %v4352 = vsub.s32 %v3617, %v4351
        %v4353 = vrot.slane %v3264, %v4352
        %v4354 = vsel %vm3622, %v4353, %v4349
        %v4355 = vlaneseq
        %v4356 = vshrl.u32 %v4355, 7
        %v4357 = vsub.s32 %v3624, %v4356
        %v4358 = vrot.slane %v3267, %v4357
        %v4359 = vsel %vm3629, %v4358, %v4354
        %v4360 = vlaneseq
        %v4361 = vshrl.u32 %v4360, 7
        %v4362 = vsub.s32 %v3631, %v4361
        %v4363 = vrot.slane %v3270, %v4362
        %v4364 = vsel %vm3636, %v4363, %v4359
        %v4365 = vlaneseq
        %v4366 = vshrl.u32 %v4365, 7
        %v4367 = vsub.s32 %v3638, %v4366
        %v4368 = vrot.slane %v3273, %v4367
        %v4369 = vsel %vm3643, %v4368, %v4364
        %v4370 = vlaneseq
        %v4371 = vshrl.u32 %v4370, 7
        %v4372 = vsub.s32 %v3645, %v4371
        %v4373 = vrot.slane %v3276, %v4372
        %v4374 = vsel %vm3650, %v4373, %v4369
        %v4375 = vlaneseq
        %v4376 = vshrl.u32 %v4375, 7
        %v4377 = vsub.s32 %v3652, %v4376
        %v4378 = vrot.slane %v3279, %v4377
        %v4379 = vsel %vm3657, %v4378, %v4374
        %v4380 = vlaneseq
        %v4381 = vshrl.u32 %v4380, 7
        %v4382 = vsub.s32 %v3659, %v4381
        %v4383 = vrot.slane %v3282, %v4382
        %v4384 = vsel %vm3664, %v4383, %v4379
        %v4385 = vlaneseq
        %v4386 = vshrl.u32 %v4385, 7
        %v4387 = vsub.s32 %v3666, %v4386
        %v4388 = vrot.slane %v3285, %v4387
        %v4389 = vsel %vm3671, %v4388, %v4384
        %v4390 = vlaneseq
        %v4391 = vshrl.u32 %v4390, 7
        %v4392 = vsub.s32 %v3673, %v4391
        %v4393 = vrot.slane %v3288, %v4392
        %v4394 = vsel %vm3678, %v4393, %v4389
        %v4395 = vlaneseq
        %v4396 = vshrl.u32 %v4395, 7
        %v4397 = vsub.s32 %v3680, %v4396
        %v4398 = vrot.slane %v3291, %v4397
        %v4399 = vsel %vm3685, %v4398, %v4394
        %v4400 = vlaneseq
        %v4401 = vshrl.u32 %v4400, 7
        %v4402 = vsub.s32 %v3687, %v4401
        %v4403 = vrot.slane %v3294, %v4402
        %v4404 = vsel %vm3692, %v4403, %v4399
        %v4405 = vlaneseq
        %v4406 = vshrl.u32 %v4405, 7
        %v4407 = vsub.s32 %v3584, %v4406
        %v4408 = vrot.slane %v3297, %v4407
        %v4409 = vlaneseq
        %v4410 = vshrl.u32 %v4409, 7
        %v4411 = vsub.s32 %v3589, %v4410
        %v4412 = vrot.slane %v3300, %v4411
        %v4413 = vsel %vm3594, %v4412, %v4408
        %v4414 = vlaneseq
        %v4415 = vshrl.u32 %v4414, 7
        %v4416 = vsub.s32 %v3596, %v4415
        %v4417 = vrot.slane %v3303, %v4416
        %v4418 = vsel %vm3601, %v4417, %v4413
        %v4419 = vlaneseq
        %v4420 = vshrl.u32 %v4419, 7
        %v4421 = vsub.s32 %v3603, %v4420
        %v4422 = vrot.slane %v3306, %v4421
        %v4423 = vsel %vm3608, %v4422, %v4418
        %v4424 = vlaneseq
        %v4425 = vshrl.u32 %v4424, 7
        %v4426 = vsub.s32 %v3610, %v4425
        %v4427 = vrot.slane %v3309, %v4426
        %v4428 = vsel %vm3615, %v4427, %v4423
        %v4429 = vlaneseq
        %v4430 = vshrl.u32 %v4429, 7
        %v4431 = vsub.s32 %v3617, %v4430
        %v4432 = vrot.slane %v3312, %v4431
        %v4433 = vsel %vm3622, %v4432, %v4428
        %v4434 = vlaneseq
        %v4435 = vshrl.u32 %v4434, 7
        %v4436 = vsub.s32 %v3624, %v4435
        %v4437 = vrot.slane %v3315, %v4436
        %v4438 = vsel %vm3629, %v4437, %v4433
        %v4439 = vlaneseq
        %v4440 = vshrl.u32 %v4439, 7
        %v4441 = vsub.s32 %v3631, %v4440
        %v4442 = vrot.slane %v3318, %v4441
        %v4443 = vsel %vm3636, %v4442, %v4438
        %v4444 = vlaneseq
        %v4445 = vshrl.u32 %v4444, 7
        %v4446 = vsub.s32 %v3638, %v4445
        %v4447 = vrot.slane %v3321, %v4446
        %v4448 = vsel %vm3643, %v4447, %v4443
        %v4449 = vlaneseq
        %v4450 = vshrl.u32 %v4449, 7
        %v4451 = vsub.s32 %v3645, %v4450
        %v4452 = vrot.slane %v3324, %v4451
        %v4453 = vsel %vm3650, %v4452, %v4448
        %v4454 = vlaneseq
        %v4455 = vshrl.u32 %v4454, 7
        %v4456 = vsub.s32 %v3652, %v4455
        %v4457 = vrot.slane %v3327, %v4456
        %v4458 = vsel %vm3657, %v4457, %v4453
        %v4459 = vlaneseq
        %v4460 = vshrl.u32 %v4459, 7
        %v4461 = vsub.s32 %v3659, %v4460
        %v4462 = vrot.slane %v3330, %v4461
        %v4463 = vsel %vm3664, %v4462, %v4458
        %v4464 = vlaneseq
        %v4465 = vshrl.u32 %v4464, 7
        %v4466 = vsub.s32 %v3666, %v4465
        %v4467 = vrot.slane %v3333, %v4466
        %v4468 = vsel %vm3671, %v4467, %v4463
        %v4469 = vlaneseq
        %v4470 = vshrl.u32 %v4469, 7
        %v4471 = vsub.s32 %v3673, %v4470
        %v4472 = vrot.slane %v3336, %v4471
        %v4473 = vsel %vm3678, %v4472, %v4468
        %v4474 = vlaneseq
        %v4475 = vshrl.u32 %v4474, 7
        %v4476 = vsub.s32 %v3680, %v4475
        %v4477 = vrot.slane %v3339, %v4476
        %v4478 = vsel %vm3685, %v4477, %v4473
        %v4479 = vlaneseq
        %v4480 = vshrl.u32 %v4479, 7
        %v4481 = vsub.s32 %v3687, %v4480
        %v4482 = vrot.slane %v3342, %v4481
        %v4483 = vsel %vm3692, %v4482, %v4478
        %v4484 = vlaneseq
        %v4485 = vshrl.u32 %v4484, 7
        %v4486 = vsub.s32 %v3584, %v4485
        %v4487 = vrot.slane %v3345, %v4486
        %v4488 = vlaneseq
        %v4489 = vshrl.u32 %v4488, 7
        %v4490 = vsub.s32 %v3589, %v4489
        %v4491 = vrot.slane %v3348, %v4490
        %v4492 = vsel %vm3594, %v4491, %v4487
        %v4493 = vlaneseq
        %v4494 = vshrl.u32 %v4493, 7
        %v4495 = vsub.s32 %v3596, %v4494
        %v4496 = vrot.slane %v3351, %v4495
        %v4497 = vsel %vm3601, %v4496, %v4492
        %v4498 = vlaneseq
        %v4499 = vshrl.u32 %v4498, 7
        %v4500 = vsub.s32 %v3603, %v4499
        %v4501 = vrot.slane %v3354, %v4500
        %v4502 = vsel %vm3608, %v4501, %v4497
        %v4503 = vlaneseq
        %v4504 = vshrl.u32 %v4503, 7
        %v4505 = vsub.s32 %v3610, %v4504
        %v4506 = vrot.slane %v3357, %v4505
        %v4507 = vsel %vm3615, %v4506, %v4502
        %v4508 = vlaneseq
        %v4509 = vshrl.u32 %v4508, 7
        %v4510 = vsub.s32 %v3617, %v4509
        %v4511 = vrot.slane %v3360, %v4510
        %v4512 = vsel %vm3622, %v4511, %v4507
        %v4513 = vlaneseq
        %v4514 = vshrl.u32 %v4513, 7
        %v4515 = vsub.s32 %v3624, %v4514
        %v4516 = vrot.slane %v3363, %v4515
        %v4517 = vsel %vm3629, %v4516, %v4512
        %v4518 = vlaneseq
        %v4519 = vshrl.u32 %v4518, 7
        %v4520 = vsub.s32 %v3631, %v4519
        %v4521 = vrot.slane %v3366, %v4520
        %v4522 = vsel %vm3636, %v4521, %v4517
        %v4523 = vlaneseq
        %v4524 = vshrl.u32 %v4523, 7
        %v4525 = vsub.s32 %v3638, %v4524
        %v4526 = vrot.slane %v3369, %v4525
        %v4527 = vsel %vm3643, %v4526, %v4522
        %v4528 = vlaneseq
        %v4529 = vshrl.u32 %v4528, 7
        %v4530 = vsub.s32 %v3645, %v4529
        %v4531 = vrot.slane %v3372, %v4530
        %v4532 = vsel %vm3650, %v4531, %v4527
        %v4533 = vlaneseq
        %v4534 = vshrl.u32 %v4533, 7
        %v4535 = vsub.s32 %v3652, %v4534
        %v4536 = vrot.slane %v3375, %v4535
        %v4537 = vsel %vm3657, %v4536, %v4532
        %v4538 = vlaneseq
        %v4539 = vshrl.u32 %v4538, 7
        %v4540 = vsub.s32 %v3659, %v4539
        %v4541 = vrot.slane %v3378, %v4540
        %v4542 = vsel %vm3664, %v4541, %v4537
        %v4543 = vlaneseq
        %v4544 = vshrl.u32 %v4543, 7
        %v4545 = vsub.s32 %v3666, %v4544
        %v4546 = vrot.slane %v3381, %v4545
        %v4547 = vsel %vm3671, %v4546, %v4542
        %v4548 = vlaneseq
        %v4549 = vshrl.u32 %v4548, 7
        %v4550 = vsub.s32 %v3673, %v4549
        %v4551 = vrot.slane %v3384, %v4550
        %v4552 = vsel %vm3678, %v4551, %v4547
        %v4553 = vlaneseq
        %v4554 = vshrl.u32 %v4553, 7
        %v4555 = vsub.s32 %v3680, %v4554
        %v4556 = vrot.slane %v3387, %v4555
        %v4557 = vsel %vm3685, %v4556, %v4552
        %v4558 = vlaneseq
        %v4559 = vshrl.u32 %v4558, 7
        %v4560 = vsub.s32 %v3687, %v4559
        %v4561 = vrot.slane %v3390, %v4560
        %v4562 = vsel %vm3692, %v4561, %v4557
        %v4563 = vlaneseq
        %v4564 = vshrl.u32 %v4563, 7
        %v4565 = vsub.s32 %v3584, %v4564
        %v4566 = vrot.slane %v3393, %v4565
        %v4567 = vlaneseq
        %v4568 = vshrl.u32 %v4567, 7
        %v4569 = vsub.s32 %v3589, %v4568
        %v4570 = vrot.slane %v3396, %v4569
        %v4571 = vsel %vm3594, %v4570, %v4566
        %v4572 = vlaneseq
        %v4573 = vshrl.u32 %v4572, 7
        %v4574 = vsub.s32 %v3596, %v4573
        %v4575 = vrot.slane %v3399, %v4574
        %v4576 = vsel %vm3601, %v4575, %v4571
        %v4577 = vlaneseq
        %v4578 = vshrl.u32 %v4577, 7
        %v4579 = vsub.s32 %v3603, %v4578
        %v4580 = vrot.slane %v3402, %v4579
        %v4581 = vsel %vm3608, %v4580, %v4576
        %v4582 = vlaneseq
        %v4583 = vshrl.u32 %v4582, 7
        %v4584 = vsub.s32 %v3610, %v4583
        %v4585 = vrot.slane %v3405, %v4584
        %v4586 = vsel %vm3615, %v4585, %v4581
        %v4587 = vlaneseq
        %v4588 = vshrl.u32 %v4587, 7
        %v4589 = vsub.s32 %v3617, %v4588
        %v4590 = vrot.slane %v3408, %v4589
        %v4591 = vsel %vm3622, %v4590, %v4586
        %v4592 = vlaneseq
        %v4593 = vshrl.u32 %v4592, 7
        %v4594 = vsub.s32 %v3624, %v4593
        %v4595 = vrot.slane %v3411, %v4594
        %v4596 = vsel %vm3629, %v4595, %v4591
        %v4597 = vlaneseq
        %v4598 = vshrl.u32 %v4597, 7
        %v4599 = vsub.s32 %v3631, %v4598
        %v4600 = vrot.slane %v3414, %v4599
        %v4601 = vsel %vm3636, %v4600, %v4596
        %v4602 = vlaneseq
        %v4603 = vshrl.u32 %v4602, 7
        %v4604 = vsub.s32 %v3638, %v4603
        %v4605 = vrot.slane %v3417, %v4604
        %v4606 = vsel %vm3643, %v4605, %v4601
        %v4607 = vlaneseq
        %v4608 = vshrl.u32 %v4607, 7
        %v4609 = vsub.s32 %v3645, %v4608
        %v4610 = vrot.slane %v3420, %v4609
        %v4611 = vsel %vm3650, %v4610, %v4606
        %v4612 = vlaneseq
        %v4613 = vshrl.u32 %v4612, 7
        %v4614 = vsub.s32 %v3652, %v4613
        %v4615 = vrot.slane %v3423, %v4614
        %v4616 = vsel %vm3657, %v4615, %v4611
        %v4617 = vlaneseq
        %v4618 = vshrl.u32 %v4617, 7
        %v4619 = vsub.s32 %v3659, %v4618
        %v4620 = vrot.slane %v3426, %v4619
        %v4621 = vsel %vm3664, %v4620, %v4616
        %v4622 = vlaneseq
        %v4623 = vshrl.u32 %v4622, 7
        %v4624 = vsub.s32 %v3666, %v4623
        %v4625 = vrot.slane %v3429, %v4624
        %v4626 = vsel %vm3671, %v4625, %v4621
        %v4627 = vlaneseq
        %v4628 = vshrl.u32 %v4627, 7
        %v4629 = vsub.s32 %v3673, %v4628
        %v4630 = vrot.slane %v3432, %v4629
        %v4631 = vsel %vm3678, %v4630, %v4626
        %v4632 = vlaneseq
        %v4633 = vshrl.u32 %v4632, 7
        %v4634 = vsub.s32 %v3680, %v4633
        %v4635 = vrot.slane %v3435, %v4634
        %v4636 = vsel %vm3685, %v4635, %v4631
        %v4637 = vlaneseq
        %v4638 = vshrl.u32 %v4637, 7
        %v4639 = vsub.s32 %v3687, %v4638
        %v4640 = vrot.slane %v3438, %v4639
        %v4641 = vsel %vm3692, %v4640, %v4636
        %v4642 = vlaneseq
        %v4643 = vshrl.u32 %v4642, 7
        %v4644 = vsub.s32 %v3584, %v4643
        %v4645 = vrot.slane %v3441, %v4644
        %v4646 = vlaneseq
        %v4647 = vshrl.u32 %v4646, 7
        %v4648 = vsub.s32 %v3589, %v4647
        %v4649 = vrot.slane %v3444, %v4648
        %v4650 = vsel %vm3594, %v4649, %v4645
        %v4651 = vlaneseq
        %v4652 = vshrl.u32 %v4651, 7
        %v4653 = vsub.s32 %v3596, %v4652
        %v4654 = vrot.slane %v3447, %v4653
        %v4655 = vsel %vm3601, %v4654, %v4650
        %v4656 = vlaneseq
        %v4657 = vshrl.u32 %v4656, 7
        %v4658 = vsub.s32 %v3603, %v4657
        %v4659 = vrot.slane %v3450, %v4658
        %v4660 = vsel %vm3608, %v4659, %v4655
        %v4661 = vlaneseq
        %v4662 = vshrl.u32 %v4661, 7
        %v4663 = vsub.s32 %v3610, %v4662
        %v4664 = vrot.slane %v3453, %v4663
        %v4665 = vsel %vm3615, %v4664, %v4660
        %v4666 = vlaneseq
        %v4667 = vshrl.u32 %v4666, 7
        %v4668 = vsub.s32 %v3617, %v4667
        %v4669 = vrot.slane %v3456, %v4668
        %v4670 = vsel %vm3622, %v4669, %v4665
        %v4671 = vlaneseq
        %v4672 = vshrl.u32 %v4671, 7
        %v4673 = vsub.s32 %v3624, %v4672
        %v4674 = vrot.slane %v3459, %v4673
        %v4675 = vsel %vm3629, %v4674, %v4670
        %v4676 = vlaneseq
        %v4677 = vshrl.u32 %v4676, 7
        %v4678 = vsub.s32 %v3631, %v4677
        %v4679 = vrot.slane %v3462, %v4678
        %v4680 = vsel %vm3636, %v4679, %v4675
        %v4681 = vlaneseq
        %v4682 = vshrl.u32 %v4681, 7
        %v4683 = vsub.s32 %v3638, %v4682
        %v4684 = vrot.slane %v3465, %v4683
        %v4685 = vsel %vm3643, %v4684, %v4680
        %v4686 = vlaneseq
        %v4687 = vshrl.u32 %v4686, 7
        %v4688 = vsub.s32 %v3645, %v4687
        %v4689 = vrot.slane %v3468, %v4688
        %v4690 = vsel %vm3650, %v4689, %v4685
        %v4691 = vlaneseq
        %v4692 = vshrl.u32 %v4691, 7
        %v4693 = vsub.s32 %v3652, %v4692
        %v4694 = vrot.slane %v3471, %v4693
        %v4695 = vsel %vm3657, %v4694, %v4690
        %v4696 = vlaneseq
        %v4697 = vshrl.u32 %v4696, 7
        %v4698 = vsub.s32 %v3659, %v4697
        %v4699 = vrot.slane %v3474, %v4698
        %v4700 = vsel %vm3664, %v4699, %v4695
        %v4701 = vlaneseq
        %v4702 = vshrl.u32 %v4701, 7
        %v4703 = vsub.s32 %v3666, %v4702
        %v4704 = vrot.slane %v3477, %v4703
        %v4705 = vsel %vm3671, %v4704, %v4700
        %v4706 = vlaneseq
        %v4707 = vshrl.u32 %v4706, 7
        %v4708 = vsub.s32 %v3673, %v4707
        %v4709 = vrot.slane %v3480, %v4708
        %v4710 = vsel %vm3678, %v4709, %v4705
        %v4711 = vlaneseq
        %v4712 = vshrl.u32 %v4711, 7
        %v4713 = vsub.s32 %v3680, %v4712
        %v4714 = vrot.slane %v3483, %v4713
        %v4715 = vsel %vm3685, %v4714, %v4710
        %v4716 = vlaneseq
        %v4717 = vshrl.u32 %v4716, 7
        %v4718 = vsub.s32 %v3687, %v4717
        %v4719 = vrot.slane %v3486, %v4718
        %v4720 = vsel %vm3692, %v4719, %v4715
        %v4721 = vlaneseq
        %v4722 = vshrl.u32 %v4721, 7
        %v4723 = vsub.s32 %v3584, %v4722
        %v4724 = vrot.slane %v3489, %v4723
        %v4725 = vlaneseq
        %v4726 = vshrl.u32 %v4725, 7
        %v4727 = vsub.s32 %v3589, %v4726
        %v4728 = vrot.slane %v3492, %v4727
        %v4729 = vsel %vm3594, %v4728, %v4724
        %v4730 = vlaneseq
        %v4731 = vshrl.u32 %v4730, 7
        %v4732 = vsub.s32 %v3596, %v4731
        %v4733 = vrot.slane %v3495, %v4732
        %v4734 = vsel %vm3601, %v4733, %v4729
        %v4735 = vlaneseq
        %v4736 = vshrl.u32 %v4735, 7
        %v4737 = vsub.s32 %v3603, %v4736
        %v4738 = vrot.slane %v3498, %v4737
        %v4739 = vsel %vm3608, %v4738, %v4734
        %v4740 = vlaneseq
        %v4741 = vshrl.u32 %v4740, 7
        %v4742 = vsub.s32 %v3610, %v4741
        %v4743 = vrot.slane %v3501, %v4742
        %v4744 = vsel %vm3615, %v4743, %v4739
        %v4745 = vlaneseq
        %v4746 = vshrl.u32 %v4745, 7
        %v4747 = vsub.s32 %v3617, %v4746
        %v4748 = vrot.slane %v3504, %v4747
        %v4749 = vsel %vm3622, %v4748, %v4744
        %v4750 = vlaneseq
        %v4751 = vshrl.u32 %v4750, 7
        %v4752 = vsub.s32 %v3624, %v4751
        %v4753 = vrot.slane %v3507, %v4752
        %v4754 = vsel %vm3629, %v4753, %v4749
        %v4755 = vlaneseq
        %v4756 = vshrl.u32 %v4755, 7
        %v4757 = vsub.s32 %v3631, %v4756
        %v4758 = vrot.slane %v3510, %v4757
        %v4759 = vsel %vm3636, %v4758, %v4754
        %v4760 = vlaneseq
        %v4761 = vshrl.u32 %v4760, 7
        %v4762 = vsub.s32 %v3638, %v4761
        %v4763 = vrot.slane %v3513, %v4762
        %v4764 = vsel %vm3643, %v4763, %v4759
        %v4765 = vlaneseq
        %v4766 = vshrl.u32 %v4765, 7
        %v4767 = vsub.s32 %v3645, %v4766
        %v4768 = vrot.slane %v3516, %v4767
        %v4769 = vsel %vm3650, %v4768, %v4764
        %v4770 = vlaneseq
        %v4771 = vshrl.u32 %v4770, 7
        %v4772 = vsub.s32 %v3652, %v4771
        %v4773 = vrot.slane %v3519, %v4772
        %v4774 = vsel %vm3657, %v4773, %v4769
        %v4775 = vlaneseq
        %v4776 = vshrl.u32 %v4775, 7
        %v4777 = vsub.s32 %v3659, %v4776
        %v4778 = vrot.slane %v3522, %v4777
        %v4779 = vsel %vm3664, %v4778, %v4774
        %v4780 = vlaneseq
        %v4781 = vshrl.u32 %v4780, 7
        %v4782 = vsub.s32 %v3666, %v4781
        %v4783 = vrot.slane %v3525, %v4782
        %v4784 = vsel %vm3671, %v4783, %v4779
        %v4785 = vlaneseq
        %v4786 = vshrl.u32 %v4785, 7
        %v4787 = vsub.s32 %v3673, %v4786
        %v4788 = vrot.slane %v3528, %v4787
        %v4789 = vsel %vm3678, %v4788, %v4784
        %v4790 = vlaneseq
        %v4791 = vshrl.u32 %v4790, 7
        %v4792 = vsub.s32 %v3680, %v4791
        %v4793 = vrot.slane %v3531, %v4792
        %v4794 = vsel %vm3685, %v4793, %v4789
        %v4795 = vlaneseq
        %v4796 = vshrl.u32 %v4795, 7
        %v4797 = vsub.s32 %v3687, %v4796
        %v4798 = vrot.slane %v3534, %v4797
        %v4799 = vsel %vm3692, %v4798, %v4794
        %v4800 = vlaneseq
        %v4801 = vshrl.u32 %v4800, 7
        %v4802 = vsub.s32 %v3584, %v4801
        %v4803 = vrot.slane %v3537, %v4802
        %v4804 = vlaneseq
        %v4805 = vshrl.u32 %v4804, 7
        %v4806 = vsub.s32 %v3589, %v4805
        %v4807 = vrot.slane %v3540, %v4806
        %v4808 = vsel %vm3594, %v4807, %v4803
        %v4809 = vlaneseq
        %v4810 = vshrl.u32 %v4809, 7
        %v4811 = vsub.s32 %v3596, %v4810
        %v4812 = vrot.slane %v3543, %v4811
        %v4813 = vsel %vm3601, %v4812, %v4808
        %v4814 = vlaneseq
        %v4815 = vshrl.u32 %v4814, 7
        %v4816 = vsub.s32 %v3603, %v4815
        %v4817 = vrot.slane %v3546, %v4816
        %v4818 = vsel %vm3608, %v4817, %v4813
        %v4819 = vlaneseq
        %v4820 = vshrl.u32 %v4819, 7
        %v4821 = vsub.s32 %v3610, %v4820
        %v4822 = vrot.slane %v3549, %v4821
        %v4823 = vsel %vm3615, %v4822, %v4818
        %v4824 = vlaneseq
        %v4825 = vshrl.u32 %v4824, 7
        %v4826 = vsub.s32 %v3617, %v4825
        %v4827 = vrot.slane %v3552, %v4826
        %v4828 = vsel %vm3622, %v4827, %v4823
        %v4829 = vlaneseq
        %v4830 = vshrl.u32 %v4829, 7
        %v4831 = vsub.s32 %v3624, %v4830
        %v4832 = vrot.slane %v3555, %v4831
        %v4833 = vsel %vm3629, %v4832, %v4828
        %v4834 = vlaneseq
        %v4835 = vshrl.u32 %v4834, 7
        %v4836 = vsub.s32 %v3631, %v4835
        %v4837 = vrot.slane %v3558, %v4836
        %v4838 = vsel %vm3636, %v4837, %v4833
        %v4839 = vlaneseq
        %v4840 = vshrl.u32 %v4839, 7
        %v4841 = vsub.s32 %v3638, %v4840
        %v4842 = vrot.slane %v3561, %v4841
        %v4843 = vsel %vm3643, %v4842, %v4838
        %v4844 = vlaneseq
        %v4845 = vshrl.u32 %v4844, 7
        %v4846 = vsub.s32 %v3645, %v4845
        %v4847 = vrot.slane %v3564, %v4846
        %v4848 = vsel %vm3650, %v4847, %v4843
        %v4849 = vlaneseq
        %v4850 = vshrl.u32 %v4849, 7
        %v4851 = vsub.s32 %v3652, %v4850
        %v4852 = vrot.slane %v3567, %v4851
        %v4853 = vsel %vm3657, %v4852, %v4848
        %v4854 = vlaneseq
        %v4855 = vshrl.u32 %v4854, 7
        %v4856 = vsub.s32 %v3659, %v4855
        %v4857 = vrot.slane %v3570, %v4856
        %v4858 = vsel %vm3664, %v4857, %v4853
        %v4859 = vlaneseq
        %v4860 = vshrl.u32 %v4859, 7
        %v4861 = vsub.s32 %v3666, %v4860
        %v4862 = vrot.slane %v3573, %v4861
        %v4863 = vsel %vm3671, %v4862, %v4858
        %v4864 = vlaneseq
        %v4865 = vshrl.u32 %v4864, 7
        %v4866 = vsub.s32 %v3673, %v4865
        %v4867 = vrot.slane %v3576, %v4866
        %v4868 = vsel %vm3678, %v4867, %v4863
        %v4869 = vlaneseq
        %v4870 = vshrl.u32 %v4869, 7
        %v4871 = vsub.s32 %v3680, %v4870
        %v4872 = vrot.slane %v3579, %v4871
        %v4873 = vsel %vm3685, %v4872, %v4868
        %v4874 = vlaneseq
        %v4875 = vshrl.u32 %v4874, 7
        %v4876 = vsub.s32 %v3687, %v4875
        %v4877 = vrot.slane %v3582, %v4876
        %v4878 = vsel %vm3692, %v4877, %v4873
        %vm4879 = vcmask 1041409
        %v4880 = vsel %vm4879, %v3851, %v3693
        %vm4881 = vcmask 1042434
        %v4882 = vsel %vm4881, %v4009, %v4880
        %vm4883 = vcmask 1043459
        %v4884 = vsel %vm4883, %v4167, %v4882
        %vm4885 = vcmask 1044484
        %v4886 = vsel %vm4885, %v4325, %v4884
        %vm4887 = vcmask 1045509
        %v4888 = vsel %vm4887, %v4483, %v4886
        %vm4889 = vcmask 1046534
        %v4890 = vsel %vm4889, %v4641, %v4888
        %vm4891 = vcmask 1047559
        %v4892 = vsel %vm4891, %v4799, %v4890
        %v4893 = vsel %vm4879, %v3930, %v3772
        %v4894 = vsel %vm4881, %v4088, %v4893
        %v4895 = vsel %vm4883, %v4246, %v4894
        %v4896 = vsel %vm4885, %v4404, %v4895
        %v4897 = vsel %vm4887, %v4562, %v4896
        %v4898 = vsel %vm4889, %v4720, %v4897
        %v4899 = vsel %vm4891, %v4878, %v4898
        %v4902 = vadd.f32 %v4892, %v4899
        %4903 = vadd.xlane.f32.xlu0 %v4902
        %v4904 = vpop.xlane.xlu0 %4903
        %v4905 = vmax.f32 %v4904, 1e-12
        %v4906 = vrsqrt.pop %v4905
        %v4908 = vlaneseq
        %v4909 = vshrl.u32 %v4908, 7
        %v4910 = vsub.s32 0, %v4909
        %v4911 = vrot.slane %v4906, %v4910
        %v4912 = vlaneseq
        %v4913 = vshrl.u32 %v4912, 7
        %v4914 = vsub.s32 1, %v4913
        %v4915 = vrot.slane %v4906, %v4914
        %v4916 = vlaneseq
        %v4917 = vshrl.u32 %v4916, 7
        %v4918 = vsub.s32 2, %v4917
        %v4919 = vrot.slane %v4906, %v4918
        %v4920 = vlaneseq
        %v4921 = vshrl.u32 %v4920, 7
        %v4922 = vsub.s32 3, %v4921
        %v4923 = vrot.slane %v4906, %v4922
        %v4924 = vlaneseq
        %v4925 = vshrl.u32 %v4924, 7
        %v4926 = vsub.s32 4, %v4925
        %v4927 = vrot.slane %v4906, %v4926
        %v4928 = vlaneseq
        %v4929 = vshrl.u32 %v4928, 7
        %v4930 = vsub.s32 5, %v4929
        %v4931 = vrot.slane %v4906, %v4930
        %v4932 = vlaneseq
        %v4933 = vshrl.u32 %v4932, 7
        %v4934 = vsub.s32 6, %v4933
        %v4935 = vrot.slane %v4906, %v4934
        %v4936 = vlaneseq
        %v4937 = vshrl.u32 %v4936, 7
        %v4938 = vsub.s32 7, %v4937
        %v4939 = vrot.slane %v4906, %v4938
        %v4948 = vmul.f32 %v2047, %v4911
        %v4949 = vmul.f32 %v2048, %v4911
        %v4950 = vmul.f32 %v2049, %v4911
        %v4951 = vmul.f32 %v2050, %v4911
        %v4952 = vmul.f32 %v2051, %v4911
        %v4953 = vmul.f32 %v2052, %v4911
        %v4954 = vmul.f32 %v2053, %v4911
        %v4955 = vmul.f32 %v2054, %v4911
        %v4956 = vmul.f32 %v2055, %v4911
        %v4957 = vmul.f32 %v2056, %v4911
        %v4958 = vmul.f32 %v2057, %v4911
        %v4959 = vmul.f32 %v2058, %v4911
        %v4960 = vmul.f32 %v2059, %v4911
        %v4961 = vmul.f32 %v2060, %v4911
        %v4962 = vmul.f32 %v2061, %v4911
        %v4963 = vmul.f32 %v2062, %v4911
        %v4964 = vmul.f32 %v2063, %v4911
        %v4965 = vmul.f32 %v2064, %v4911
        %v4966 = vmul.f32 %v2065, %v4911
        %v4967 = vmul.f32 %v2066, %v4911
        %v4968 = vmul.f32 %v2067, %v4911
        %v4969 = vmul.f32 %v2068, %v4911
        %v4970 = vmul.f32 %v2069, %v4911
        %v4971 = vmul.f32 %v2070, %v4911
        %v4972 = vmul.f32 %v2071, %v4911
        %v4973 = vmul.f32 %v2072, %v4911
        %v4974 = vmul.f32 %v2073, %v4911
        %v4975 = vmul.f32 %v2074, %v4911
        %v4976 = vmul.f32 %v2075, %v4911
        %v4977 = vmul.f32 %v2076, %v4911
        %v4978 = vmul.f32 %v2077, %v4911
        %v4979 = vmul.f32 %v2078, %v4911
        %v4980 = vmul.f32 %v2079, %v4915
        %v4981 = vmul.f32 %v2080, %v4915
        %v4982 = vmul.f32 %v2081, %v4915
        %v4983 = vmul.f32 %v2082, %v4915
        %v4984 = vmul.f32 %v2083, %v4915
        %v4985 = vmul.f32 %v2084, %v4915
        %v4986 = vmul.f32 %v2085, %v4915
        %v4987 = vmul.f32 %v2086, %v4915
        %v4988 = vmul.f32 %v2087, %v4915
        %v4989 = vmul.f32 %v2088, %v4915
        %v4990 = vmul.f32 %v2089, %v4915
        %v4991 = vmul.f32 %v2090, %v4915
        %v4992 = vmul.f32 %v2091, %v4915
        %v4993 = vmul.f32 %v2092, %v4915
        %v4994 = vmul.f32 %v2093, %v4915
        %v4995 = vmul.f32 %v2094, %v4915
        %v4996 = vmul.f32 %v2095, %v4915
        %v4997 = vmul.f32 %v2096, %v4915
        %v4998 = vmul.f32 %v2097, %v4915
        %v4999 = vmul.f32 %v2098, %v4915
        %v5000 = vmul.f32 %v2099, %v4915
        %v5001 = vmul.f32 %v2100, %v4915
        %v5002 = vmul.f32 %v2101, %v4915
        %v5003 = vmul.f32 %v2102, %v4915
        %v5004 = vmul.f32 %v2103, %v4915
        %v5005 = vmul.f32 %v2104, %v4915
        %v5006 = vmul.f32 %v2105, %v4915
        %v5007 = vmul.f32 %v2106, %v4915
        %v5008 = vmul.f32 %v2107, %v4915
        %v5009 = vmul.f32 %v2108, %v4915
        %v5010 = vmul.f32 %v2109, %v4915
        %v5011 = vmul.f32 %v2110, %v4915
        %v5012 = vmul.f32 %v2111, %v4919
        %v5013 = vmul.f32 %v2112, %v4919
        %v5014 = vmul.f32 %v2113, %v4919
        %v5015 = vmul.f32 %v2114, %v4919
        %v5016 = vmul.f32 %v2115, %v4919
        %v5017 = vmul.f32 %v2116, %v4919
        %v5018 = vmul.f32 %v2117, %v4919
        %v5019 = vmul.f32 %v2118, %v4919
        %v5020 = vmul.f32 %v2119, %v4919
        %v5021 = vmul.f32 %v2120, %v4919
        %v5022 = vmul.f32 %v2121, %v4919
        %v5023 = vmul.f32 %v2122, %v4919
        %v5024 = vmul.f32 %v2123, %v4919
        %v5025 = vmul.f32 %v2124, %v4919
        %v5026 = vmul.f32 %v2125, %v4919
        %v5027 = vmul.f32 %v2126, %v4919
        %v5028 = vmul.f32 %v2127, %v4919
        %v5029 = vmul.f32 %v2128, %v4919
        %v5030 = vmul.f32 %v2129, %v4919
        %v5031 = vmul.f32 %v2130, %v4919
        %v5032 = vmul.f32 %v2131, %v4919
        %v5033 = vmul.f32 %v2132, %v4919
        %v5034 = vmul.f32 %v2133, %v4919
        %v5035 = vmul.f32 %v2134, %v4919
        %v5036 = vmul.f32 %v2135, %v4919
        %v5037 = vmul.f32 %v2136, %v4919
        %v5038 = vmul.f32 %v2137, %v4919
        %v5039 = vmul.f32 %v2138, %v4919
        %v5040 = vmul.f32 %v2139, %v4919
        %v5041 = vmul.f32 %v2140, %v4919
        %v5042 = vmul.f32 %v2141, %v4919
        %v5043 = vmul.f32 %v2142, %v4919
        %v5044 = vmul.f32 %v2143, %v4923
        %v5045 = vmul.f32 %v2144, %v4923
        %v5046 = vmul.f32 %v2145, %v4923
        %v5047 = vmul.f32 %v2146, %v4923
        %v5048 = vmul.f32 %v2147, %v4923
        %v5049 = vmul.f32 %v2148, %v4923
        %v5050 = vmul.f32 %v2149, %v4923
        %v5051 = vmul.f32 %v2150, %v4923
        %v5052 = vmul.f32 %v2151, %v4923
        %v5053 = vmul.f32 %v2152, %v4923
        %v5054 = vmul.f32 %v2153, %v4923
        %v5055 = vmul.f32 %v2154, %v4923
        %v5056 = vmul.f32 %v2155, %v4923
        %v5057 = vmul.f32 %v2156, %v4923
        %v5058 = vmul.f32 %v2157, %v4923
        %v5059 = vmul.f32 %v2158, %v4923
        %v5060 = vmul.f32 %v2159, %v4923
        %v5061 = vmul.f32 %v2160, %v4923
        %v5062 = vmul.f32 %v2161, %v4923
        %v5063 = vmul.f32 %v2162, %v4923
        %v5064 = vmul.f32 %v2163, %v4923
        %v5065 = vmul.f32 %v2164, %v4923
        %v5066 = vmul.f32 %v2165, %v4923
        %v5067 = vmul.f32 %v2166, %v4923
        %v5068 = vmul.f32 %v2167, %v4923
        %v5069 = vmul.f32 %v2168, %v4923
        %v5070 = vmul.f32 %v2169, %v4923
        %v5071 = vmul.f32 %v2170, %v4923
        %v5072 = vmul.f32 %v2171, %v4923
        %v5073 = vmul.f32 %v2172, %v4923
        %v5074 = vmul.f32 %v2173, %v4923
        %v5075 = vmul.f32 %v2174, %v4923
        %v5076 = vmul.f32 %v2175, %v4927
        %v5077 = vmul.f32 %v2176, %v4927
        %v5078 = vmul.f32 %v2177, %v4927
        %v5079 = vmul.f32 %v2178, %v4927
        %v5080 = vmul.f32 %v2179, %v4927
        %v5081 = vmul.f32 %v2180, %v4927
        %v5082 = vmul.f32 %v2181, %v4927
        %v5083 = vmul.f32 %v2182, %v4927
        %v5084 = vmul.f32 %v2183, %v4927
        %v5085 = vmul.f32 %v2184, %v4927
        %v5086 = vmul.f32 %v2185, %v4927
        %v5087 = vmul.f32 %v2186, %v4927
        %v5088 = vmul.f32 %v2187, %v4927
        %v5089 = vmul.f32 %v2188, %v4927
        %v5090 = vmul.f32 %v2189, %v4927
        %v5091 = vmul.f32 %v2190, %v4927
        %v5092 = vmul.f32 %v2191, %v4927
        %v5093 = vmul.f32 %v2192, %v4927
        %v5094 = vmul.f32 %v2193, %v4927
        %v5095 = vmul.f32 %v2194, %v4927
        %v5096 = vmul.f32 %v2195, %v4927
        %v5097 = vmul.f32 %v2196, %v4927
        %v5098 = vmul.f32 %v2197, %v4927
        %v5099 = vmul.f32 %v2198, %v4927
        %v5100 = vmul.f32 %v2199, %v4927
        %v5101 = vmul.f32 %v2200, %v4927
        %v5102 = vmul.f32 %v2201, %v4927
        %v5103 = vmul.f32 %v2202, %v4927
        %v5104 = vmul.f32 %v2203, %v4927
        %v5105 = vmul.f32 %v2204, %v4927
        %v5106 = vmul.f32 %v2205, %v4927
        %v5107 = vmul.f32 %v2206, %v4927
        %v5108 = vmul.f32 %v2207, %v4931
        %v5109 = vmul.f32 %v2208, %v4931
        %v5110 = vmul.f32 %v2209, %v4931
        %v5111 = vmul.f32 %v2210, %v4931
        %v5112 = vmul.f32 %v2211, %v4931
        %v5113 = vmul.f32 %v2212, %v4931
        %v5114 = vmul.f32 %v2213, %v4931
        %v5115 = vmul.f32 %v2214, %v4931
        %v5116 = vmul.f32 %v2215, %v4931
        %v5117 = vmul.f32 %v2216, %v4931
        %v5118 = vmul.f32 %v2217, %v4931
        %v5119 = vmul.f32 %v2218, %v4931
        %v5120 = vmul.f32 %v2219, %v4931
        %v5121 = vmul.f32 %v2220, %v4931
        %v5122 = vmul.f32 %v2221, %v4931
        %v5123 = vmul.f32 %v2222, %v4931
        %v5124 = vmul.f32 %v2223, %v4931
        %v5125 = vmul.f32 %v2224, %v4931
        %v5126 = vmul.f32 %v2225, %v4931
        %v5127 = vmul.f32 %v2226, %v4931
        %v5128 = vmul.f32 %v2227, %v4931
        %v5129 = vmul.f32 %v2228, %v4931
        %v5130 = vmul.f32 %v2229, %v4931
        %v5131 = vmul.f32 %v2230, %v4931
        %v5132 = vmul.f32 %v2231, %v4931
        %v5133 = vmul.f32 %v2232, %v4931
        %v5134 = vmul.f32 %v2233, %v4931
        %v5135 = vmul.f32 %v2234, %v4931
        %v5136 = vmul.f32 %v2235, %v4931
        %v5137 = vmul.f32 %v2236, %v4931
        %v5138 = vmul.f32 %v2237, %v4931
        %v5139 = vmul.f32 %v2238, %v4931
        %v5140 = vmul.f32 %v2239, %v4935
        %v5141 = vmul.f32 %v2240, %v4935
        %v5142 = vmul.f32 %v2241, %v4935
        %v5143 = vmul.f32 %v2242, %v4935
        %v5144 = vmul.f32 %v2243, %v4935
        %v5145 = vmul.f32 %v2244, %v4935
        %v5146 = vmul.f32 %v2245, %v4935
        %v5147 = vmul.f32 %v2246, %v4935
        %v5148 = vmul.f32 %v2247, %v4935
        %v5149 = vmul.f32 %v2248, %v4935
        %v5150 = vmul.f32 %v2249, %v4935
        %v5151 = vmul.f32 %v2250, %v4935
        %v5152 = vmul.f32 %v2251, %v4935
        %v5153 = vmul.f32 %v2252, %v4935
        %v5154 = vmul.f32 %v2253, %v4935
        %v5155 = vmul.f32 %v2254, %v4935
        %v5156 = vmul.f32 %v2255, %v4935
        %v5157 = vmul.f32 %v2256, %v4935
        %v5158 = vmul.f32 %v2257, %v4935
        %v5159 = vmul.f32 %v2258, %v4935
        %v5160 = vmul.f32 %v2259, %v4935
        %v5161 = vmul.f32 %v2260, %v4935
        %v5162 = vmul.f32 %v2261, %v4935
        %v5163 = vmul.f32 %v2262, %v4935
        %v5164 = vmul.f32 %v2263, %v4935
        %v5165 = vmul.f32 %v2264, %v4935
        %v5166 = vmul.f32 %v2265, %v4935
        %v5167 = vmul.f32 %v2266, %v4935
        %v5168 = vmul.f32 %v2267, %v4935
        %v5169 = vmul.f32 %v2268, %v4935
        %v5170 = vmul.f32 %v2269, %v4935
        %v5171 = vmul.f32 %v2270, %v4935
        %v5172 = vmul.f32 %v2271, %v4939
        %v5173 = vmul.f32 %v2272, %v4939
        %v5174 = vmul.f32 %v2273, %v4939
        %v5175 = vmul.f32 %v2274, %v4939
        %v5176 = vmul.f32 %v2275, %v4939
        %v5177 = vmul.f32 %v2276, %v4939
        %v5178 = vmul.f32 %v2277, %v4939
        %v5179 = vmul.f32 %v2278, %v4939
        %v5180 = vmul.f32 %v2279, %v4939
        %v5181 = vmul.f32 %v2280, %v4939
        %v5182 = vmul.f32 %v2281, %v4939
        %v5183 = vmul.f32 %v2282, %v4939
        %v5184 = vmul.f32 %v2283, %v4939
        %v5185 = vmul.f32 %v2284, %v4939
        %v5186 = vmul.f32 %v2285, %v4939
        %v5187 = vmul.f32 %v2286, %v4939
        %v5188 = vmul.f32 %v2287, %v4939
        %v5189 = vmul.f32 %v2288, %v4939
        %v5190 = vmul.f32 %v2289, %v4939
        %v5191 = vmul.f32 %v2290, %v4939
        %v5192 = vmul.f32 %v2291, %v4939
        %v5193 = vmul.f32 %v2292, %v4939
        %v5194 = vmul.f32 %v2293, %v4939
        %v5195 = vmul.f32 %v2294, %v4939
        %v5196 = vmul.f32 %v2295, %v4939
        %v5197 = vmul.f32 %v2296, %v4939
        %v5198 = vmul.f32 %v2297, %v4939
        %v5199 = vmul.f32 %v2298, %v4939
        %v5200 = vmul.f32 %v2299, %v4939
        %v5201 = vmul.f32 %v2300, %v4939
        %v5202 = vmul.f32 %v2301, %v4939
        %v5203 = vmul.f32 %v2302, %v4939
        %5460 = vset.pattern.permute.xlu0 0
        %5461 = vperm.xlu0 %5460, %v4948
        %v5462 = vpop.permute.xlu0 %5461
        %5463 = vset.pattern.permute.xlu0 0
        %5464 = vperm.xlu0 %5463, %v4949
        %v5465 = vpop.permute.xlu0 %5464
        %5466 = vset.pattern.permute.xlu0 0
        %5467 = vperm.xlu0 %5466, %v4950
        %v5468 = vpop.permute.xlu0 %5467
        %5469 = vset.pattern.permute.xlu0 0
        %5470 = vperm.xlu0 %5469, %v4951
        %v5471 = vpop.permute.xlu0 %5470
        %5472 = vset.pattern.permute.xlu0 0
        %5473 = vperm.xlu0 %5472, %v4952
        %v5474 = vpop.permute.xlu0 %5473
        %5475 = vset.pattern.permute.xlu0 0
        %5476 = vperm.xlu0 %5475, %v4953
        %v5477 = vpop.permute.xlu0 %5476
        %5478 = vset.pattern.permute.xlu0 0
        %5479 = vperm.xlu0 %5478, %v4954
        %v5480 = vpop.permute.xlu0 %5479
        %5481 = vset.pattern.permute.xlu0 0
        %5482 = vperm.xlu0 %5481, %v4955
        %v5483 = vpop.permute.xlu0 %5482
        %5484 = vset.pattern.permute.xlu0 0
        %5485 = vperm.xlu0 %5484, %v4956
        %v5486 = vpop.permute.xlu0 %5485
        %5487 = vset.pattern.permute.xlu0 0
        %5488 = vperm.xlu0 %5487, %v4957
        %v5489 = vpop.permute.xlu0 %5488
        %5490 = vset.pattern.permute.xlu0 0
        %5491 = vperm.xlu0 %5490, %v4958
        %v5492 = vpop.permute.xlu0 %5491
        %5493 = vset.pattern.permute.xlu0 0
        %5494 = vperm.xlu0 %5493, %v4959
        %v5495 = vpop.permute.xlu0 %5494
        %5496 = vset.pattern.permute.xlu0 0
        %5497 = vperm.xlu0 %5496, %v4960
        %v5498 = vpop.permute.xlu0 %5497
        %5499 = vset.pattern.permute.xlu0 0
        %5500 = vperm.xlu0 %5499, %v4961
        %v5501 = vpop.permute.xlu0 %5500
        %5502 = vset.pattern.permute.xlu0 0
        %5503 = vperm.xlu0 %5502, %v4962
        %v5504 = vpop.permute.xlu0 %5503
        %5505 = vset.pattern.permute.xlu0 0
        %5506 = vperm.xlu0 %5505, %v4963
        %v5507 = vpop.permute.xlu0 %5506
        %5508 = vset.pattern.permute.xlu0 0
        %5509 = vperm.xlu0 %5508, %v4964
        %v5510 = vpop.permute.xlu0 %5509
        %5511 = vset.pattern.permute.xlu0 0
        %5512 = vperm.xlu0 %5511, %v4965
        %v5513 = vpop.permute.xlu0 %5512
        %5514 = vset.pattern.permute.xlu0 0
        %5515 = vperm.xlu0 %5514, %v4966
        %v5516 = vpop.permute.xlu0 %5515
        %5517 = vset.pattern.permute.xlu0 0
        %5518 = vperm.xlu0 %5517, %v4967
        %v5519 = vpop.permute.xlu0 %5518
        %5520 = vset.pattern.permute.xlu0 0
        %5521 = vperm.xlu0 %5520, %v4968
        %v5522 = vpop.permute.xlu0 %5521
        %5523 = vset.pattern.permute.xlu0 0
        %5524 = vperm.xlu0 %5523, %v4969
        %v5525 = vpop.permute.xlu0 %5524
        %5526 = vset.pattern.permute.xlu0 0
        %5527 = vperm.xlu0 %5526, %v4970
        %v5528 = vpop.permute.xlu0 %5527
        %5529 = vset.pattern.permute.xlu0 0
        %5530 = vperm.xlu0 %5529, %v4971
        %v5531 = vpop.permute.xlu0 %5530
        %5532 = vset.pattern.permute.xlu0 0
        %5533 = vperm.xlu0 %5532, %v4972
        %v5534 = vpop.permute.xlu0 %5533
        %5535 = vset.pattern.permute.xlu0 0
        %5536 = vperm.xlu0 %5535, %v4973
        %v5537 = vpop.permute.xlu0 %5536
        %5538 = vset.pattern.permute.xlu0 0
        %5539 = vperm.xlu0 %5538, %v4974
        %v5540 = vpop.permute.xlu0 %5539
        %5541 = vset.pattern.permute.xlu0 0
        %5542 = vperm.xlu0 %5541, %v4975
        %v5543 = vpop.permute.xlu0 %5542
        %5544 = vset.pattern.permute.xlu0 0
        %5545 = vperm.xlu0 %5544, %v4976
        %v5546 = vpop.permute.xlu0 %5545
        %5547 = vset.pattern.permute.xlu0 0
        %5548 = vperm.xlu0 %5547, %v4977
        %v5549 = vpop.permute.xlu0 %5548
        %5550 = vset.pattern.permute.xlu0 0
        %5551 = vperm.xlu0 %5550, %v4978
        %v5552 = vpop.permute.xlu0 %5551
        %5553 = vset.pattern.permute.xlu0 0
        %5554 = vperm.xlu0 %5553, %v4979
        %v5555 = vpop.permute.xlu0 %5554
        %5556 = vset.pattern.permute.xlu0 0
        %5557 = vperm.xlu0 %5556, %v4980
        %v5558 = vpop.permute.xlu0 %5557
        %5559 = vset.pattern.permute.xlu0 0
        %5560 = vperm.xlu0 %5559, %v4981
        %v5561 = vpop.permute.xlu0 %5560
        %5562 = vset.pattern.permute.xlu0 0
        %5563 = vperm.xlu0 %5562, %v4982
        %v5564 = vpop.permute.xlu0 %5563
        %5565 = vset.pattern.permute.xlu0 0
        %5566 = vperm.xlu0 %5565, %v4983
        %v5567 = vpop.permute.xlu0 %5566
        %5568 = vset.pattern.permute.xlu0 0
        %5569 = vperm.xlu0 %5568, %v4984
        %v5570 = vpop.permute.xlu0 %5569
        %5571 = vset.pattern.permute.xlu0 0
        %5572 = vperm.xlu0 %5571, %v4985
        %v5573 = vpop.permute.xlu0 %5572
        %5574 = vset.pattern.permute.xlu0 0
        %5575 = vperm.xlu0 %5574, %v4986
        %v5576 = vpop.permute.xlu0 %5575
        %5577 = vset.pattern.permute.xlu0 0
        %5578 = vperm.xlu0 %5577, %v4987
        %v5579 = vpop.permute.xlu0 %5578
        %5580 = vset.pattern.permute.xlu0 0
        %5581 = vperm.xlu0 %5580, %v4988
        %v5582 = vpop.permute.xlu0 %5581
        %5583 = vset.pattern.permute.xlu0 0
        %5584 = vperm.xlu0 %5583, %v4989
        %v5585 = vpop.permute.xlu0 %5584
        %5586 = vset.pattern.permute.xlu0 0
        %5587 = vperm.xlu0 %5586, %v4990
        %v5588 = vpop.permute.xlu0 %5587
        %5589 = vset.pattern.permute.xlu0 0
        %5590 = vperm.xlu0 %5589, %v4991
        %v5591 = vpop.permute.xlu0 %5590
        %5592 = vset.pattern.permute.xlu0 0
        %5593 = vperm.xlu0 %5592, %v4992
        %v5594 = vpop.permute.xlu0 %5593
        %5595 = vset.pattern.permute.xlu0 0
        %5596 = vperm.xlu0 %5595, %v4993
        %v5597 = vpop.permute.xlu0 %5596
        %5598 = vset.pattern.permute.xlu0 0
        %5599 = vperm.xlu0 %5598, %v4994
        %v5600 = vpop.permute.xlu0 %5599
        %5601 = vset.pattern.permute.xlu0 0
        %5602 = vperm.xlu0 %5601, %v4995
        %v5603 = vpop.permute.xlu0 %5602
        %5604 = vset.pattern.permute.xlu0 0
        %5605 = vperm.xlu0 %5604, %v4996
        %v5606 = vpop.permute.xlu0 %5605
        %5607 = vset.pattern.permute.xlu0 0
        %5608 = vperm.xlu0 %5607, %v4997
        %v5609 = vpop.permute.xlu0 %5608
        %5610 = vset.pattern.permute.xlu0 0
        %5611 = vperm.xlu0 %5610, %v4998
        %v5612 = vpop.permute.xlu0 %5611
        %5613 = vset.pattern.permute.xlu0 0
        %5614 = vperm.xlu0 %5613, %v4999
        %v5615 = vpop.permute.xlu0 %5614
        %5616 = vset.pattern.permute.xlu0 0
        %5617 = vperm.xlu0 %5616, %v5000
        %v5618 = vpop.permute.xlu0 %5617
        %5619 = vset.pattern.permute.xlu0 0
        %5620 = vperm.xlu0 %5619, %v5001
        %v5621 = vpop.permute.xlu0 %5620
        %5622 = vset.pattern.permute.xlu0 0
        %5623 = vperm.xlu0 %5622, %v5002
        %v5624 = vpop.permute.xlu0 %5623
        %5625 = vset.pattern.permute.xlu0 0
        %5626 = vperm.xlu0 %5625, %v5003
        %v5627 = vpop.permute.xlu0 %5626
        %5628 = vset.pattern.permute.xlu0 0
        %5629 = vperm.xlu0 %5628, %v5004
        %v5630 = vpop.permute.xlu0 %5629
        %5631 = vset.pattern.permute.xlu0 0
        %5632 = vperm.xlu0 %5631, %v5005
        %v5633 = vpop.permute.xlu0 %5632
        %5634 = vset.pattern.permute.xlu0 0
        %5635 = vperm.xlu0 %5634, %v5006
        %v5636 = vpop.permute.xlu0 %5635
        %5637 = vset.pattern.permute.xlu0 0
        %5638 = vperm.xlu0 %5637, %v5007
        %v5639 = vpop.permute.xlu0 %5638
        %5640 = vset.pattern.permute.xlu0 0
        %5641 = vperm.xlu0 %5640, %v5008
        %v5642 = vpop.permute.xlu0 %5641
        %5643 = vset.pattern.permute.xlu0 0
        %5644 = vperm.xlu0 %5643, %v5009
        %v5645 = vpop.permute.xlu0 %5644
        %5646 = vset.pattern.permute.xlu0 0
        %5647 = vperm.xlu0 %5646, %v5010
        %v5648 = vpop.permute.xlu0 %5647
        %5649 = vset.pattern.permute.xlu0 0
        %5650 = vperm.xlu0 %5649, %v5011
        %v5651 = vpop.permute.xlu0 %5650
        %5652 = vset.pattern.permute.xlu0 0
        %5653 = vperm.xlu0 %5652, %v5012
        %v5654 = vpop.permute.xlu0 %5653
        %5655 = vset.pattern.permute.xlu0 0
        %5656 = vperm.xlu0 %5655, %v5013
        %v5657 = vpop.permute.xlu0 %5656
        %5658 = vset.pattern.permute.xlu0 0
        %5659 = vperm.xlu0 %5658, %v5014
        %v5660 = vpop.permute.xlu0 %5659
        %5661 = vset.pattern.permute.xlu0 0
        %5662 = vperm.xlu0 %5661, %v5015
        %v5663 = vpop.permute.xlu0 %5662
        %5664 = vset.pattern.permute.xlu0 0
        %5665 = vperm.xlu0 %5664, %v5016
        %v5666 = vpop.permute.xlu0 %5665
        %5667 = vset.pattern.permute.xlu0 0
        %5668 = vperm.xlu0 %5667, %v5017
        %v5669 = vpop.permute.xlu0 %5668
        %5670 = vset.pattern.permute.xlu0 0
        %5671 = vperm.xlu0 %5670, %v5018
        %v5672 = vpop.permute.xlu0 %5671
        %5673 = vset.pattern.permute.xlu0 0
        %5674 = vperm.xlu0 %5673, %v5019
        %v5675 = vpop.permute.xlu0 %5674
        %5676 = vset.pattern.permute.xlu0 0
        %5677 = vperm.xlu0 %5676, %v5020
        %v5678 = vpop.permute.xlu0 %5677
        %5679 = vset.pattern.permute.xlu0 0
        %5680 = vperm.xlu0 %5679, %v5021
        %v5681 = vpop.permute.xlu0 %5680
        %5682 = vset.pattern.permute.xlu0 0
        %5683 = vperm.xlu0 %5682, %v5022
        %v5684 = vpop.permute.xlu0 %5683
        %5685 = vset.pattern.permute.xlu0 0
        %5686 = vperm.xlu0 %5685, %v5023
        %v5687 = vpop.permute.xlu0 %5686
        %5688 = vset.pattern.permute.xlu0 0
        %5689 = vperm.xlu0 %5688, %v5024
        %v5690 = vpop.permute.xlu0 %5689
        %5691 = vset.pattern.permute.xlu0 0
        %5692 = vperm.xlu0 %5691, %v5025
        %v5693 = vpop.permute.xlu0 %5692
        %5694 = vset.pattern.permute.xlu0 0
        %5695 = vperm.xlu0 %5694, %v5026
        %v5696 = vpop.permute.xlu0 %5695
        %5697 = vset.pattern.permute.xlu0 0
        %5698 = vperm.xlu0 %5697, %v5027
        %v5699 = vpop.permute.xlu0 %5698
        %5700 = vset.pattern.permute.xlu0 0
        %5701 = vperm.xlu0 %5700, %v5028
        %v5702 = vpop.permute.xlu0 %5701
        %5703 = vset.pattern.permute.xlu0 0
        %5704 = vperm.xlu0 %5703, %v5029
        %v5705 = vpop.permute.xlu0 %5704
        %5706 = vset.pattern.permute.xlu0 0
        %5707 = vperm.xlu0 %5706, %v5030
        %v5708 = vpop.permute.xlu0 %5707
        %5709 = vset.pattern.permute.xlu0 0
        %5710 = vperm.xlu0 %5709, %v5031
        %v5711 = vpop.permute.xlu0 %5710
        %5712 = vset.pattern.permute.xlu0 0
        %5713 = vperm.xlu0 %5712, %v5032
        %v5714 = vpop.permute.xlu0 %5713
        %5715 = vset.pattern.permute.xlu0 0
        %5716 = vperm.xlu0 %5715, %v5033
        %v5717 = vpop.permute.xlu0 %5716
        %5718 = vset.pattern.permute.xlu0 0
        %5719 = vperm.xlu0 %5718, %v5034
        %v5720 = vpop.permute.xlu0 %5719
        %5721 = vset.pattern.permute.xlu0 0
        %5722 = vperm.xlu0 %5721, %v5035
        %v5723 = vpop.permute.xlu0 %5722
        %5724 = vset.pattern.permute.xlu0 0
        %5725 = vperm.xlu0 %5724, %v5036
        %v5726 = vpop.permute.xlu0 %5725
        %5727 = vset.pattern.permute.xlu0 0
        %5728 = vperm.xlu0 %5727, %v5037
        %v5729 = vpop.permute.xlu0 %5728
        %5730 = vset.pattern.permute.xlu0 0
        %5731 = vperm.xlu0 %5730, %v5038
        %v5732 = vpop.permute.xlu0 %5731
        %5733 = vset.pattern.permute.xlu0 0
        %5734 = vperm.xlu0 %5733, %v5039
        %v5735 = vpop.permute.xlu0 %5734
        %5736 = vset.pattern.permute.xlu0 0
        %5737 = vperm.xlu0 %5736, %v5040
        %v5738 = vpop.permute.xlu0 %5737
        %5739 = vset.pattern.permute.xlu0 0
        %5740 = vperm.xlu0 %5739, %v5041
        %v5741 = vpop.permute.xlu0 %5740
        %5742 = vset.pattern.permute.xlu0 0
        %5743 = vperm.xlu0 %5742, %v5042
        %v5744 = vpop.permute.xlu0 %5743
        %5745 = vset.pattern.permute.xlu0 0
        %5746 = vperm.xlu0 %5745, %v5043
        %v5747 = vpop.permute.xlu0 %5746
        %5748 = vset.pattern.permute.xlu0 0
        %5749 = vperm.xlu0 %5748, %v5044
        %v5750 = vpop.permute.xlu0 %5749
        %5751 = vset.pattern.permute.xlu0 0
        %5752 = vperm.xlu0 %5751, %v5045
        %v5753 = vpop.permute.xlu0 %5752
        %5754 = vset.pattern.permute.xlu0 0
        %5755 = vperm.xlu0 %5754, %v5046
        %v5756 = vpop.permute.xlu0 %5755
        %5757 = vset.pattern.permute.xlu0 0
        %5758 = vperm.xlu0 %5757, %v5047
        %v5759 = vpop.permute.xlu0 %5758
        %5760 = vset.pattern.permute.xlu0 0
        %5761 = vperm.xlu0 %5760, %v5048
        %v5762 = vpop.permute.xlu0 %5761
        %5763 = vset.pattern.permute.xlu0 0
        %5764 = vperm.xlu0 %5763, %v5049
        %v5765 = vpop.permute.xlu0 %5764
        %5766 = vset.pattern.permute.xlu0 0
        %5767 = vperm.xlu0 %5766, %v5050
        %v5768 = vpop.permute.xlu0 %5767
        %5769 = vset.pattern.permute.xlu0 0
        %5770 = vperm.xlu0 %5769, %v5051
        %v5771 = vpop.permute.xlu0 %5770
        %5772 = vset.pattern.permute.xlu0 0
        %5773 = vperm.xlu0 %5772, %v5052
        %v5774 = vpop.permute.xlu0 %5773
        %5775 = vset.pattern.permute.xlu0 0
        %5776 = vperm.xlu0 %5775, %v5053
        %v5777 = vpop.permute.xlu0 %5776
        %5778 = vset.pattern.permute.xlu0 0
        %5779 = vperm.xlu0 %5778, %v5054
        %v5780 = vpop.permute.xlu0 %5779
        %5781 = vset.pattern.permute.xlu0 0
        %5782 = vperm.xlu0 %5781, %v5055
        %v5783 = vpop.permute.xlu0 %5782
        %5784 = vset.pattern.permute.xlu0 0
        %5785 = vperm.xlu0 %5784, %v5056
        %v5786 = vpop.permute.xlu0 %5785
        %5787 = vset.pattern.permute.xlu0 0
        %5788 = vperm.xlu0 %5787, %v5057
        %v5789 = vpop.permute.xlu0 %5788
        %5790 = vset.pattern.permute.xlu0 0
        %5791 = vperm.xlu0 %5790, %v5058
        %v5792 = vpop.permute.xlu0 %5791
        %5793 = vset.pattern.permute.xlu0 0
        %5794 = vperm.xlu0 %5793, %v5059
        %v5795 = vpop.permute.xlu0 %5794
        %5796 = vset.pattern.permute.xlu0 0
        %5797 = vperm.xlu0 %5796, %v5060
        %v5798 = vpop.permute.xlu0 %5797
        %5799 = vset.pattern.permute.xlu0 0
        %5800 = vperm.xlu0 %5799, %v5061
        %v5801 = vpop.permute.xlu0 %5800
        %5802 = vset.pattern.permute.xlu0 0
        %5803 = vperm.xlu0 %5802, %v5062
        %v5804 = vpop.permute.xlu0 %5803
        %5805 = vset.pattern.permute.xlu0 0
        %5806 = vperm.xlu0 %5805, %v5063
        %v5807 = vpop.permute.xlu0 %5806
        %5808 = vset.pattern.permute.xlu0 0
        %5809 = vperm.xlu0 %5808, %v5064
        %v5810 = vpop.permute.xlu0 %5809
        %5811 = vset.pattern.permute.xlu0 0
        %5812 = vperm.xlu0 %5811, %v5065
        %v5813 = vpop.permute.xlu0 %5812
        %5814 = vset.pattern.permute.xlu0 0
        %5815 = vperm.xlu0 %5814, %v5066
        %v5816 = vpop.permute.xlu0 %5815
        %5817 = vset.pattern.permute.xlu0 0
        %5818 = vperm.xlu0 %5817, %v5067
        %v5819 = vpop.permute.xlu0 %5818
        %5820 = vset.pattern.permute.xlu0 0
        %5821 = vperm.xlu0 %5820, %v5068
        %v5822 = vpop.permute.xlu0 %5821
        %5823 = vset.pattern.permute.xlu0 0
        %5824 = vperm.xlu0 %5823, %v5069
        %v5825 = vpop.permute.xlu0 %5824
        %5826 = vset.pattern.permute.xlu0 0
        %5827 = vperm.xlu0 %5826, %v5070
        %v5828 = vpop.permute.xlu0 %5827
        %5829 = vset.pattern.permute.xlu0 0
        %5830 = vperm.xlu0 %5829, %v5071
        %v5831 = vpop.permute.xlu0 %5830
        %5832 = vset.pattern.permute.xlu0 0
        %5833 = vperm.xlu0 %5832, %v5072
        %v5834 = vpop.permute.xlu0 %5833
        %5835 = vset.pattern.permute.xlu0 0
        %5836 = vperm.xlu0 %5835, %v5073
        %v5837 = vpop.permute.xlu0 %5836
        %5838 = vset.pattern.permute.xlu0 0
        %5839 = vperm.xlu0 %5838, %v5074
        %v5840 = vpop.permute.xlu0 %5839
        %5841 = vset.pattern.permute.xlu0 0
        %5842 = vperm.xlu0 %5841, %v5075
        %v5843 = vpop.permute.xlu0 %5842
        %5844 = vset.pattern.permute.xlu0 0
        %5845 = vperm.xlu0 %5844, %v5076
        %v5846 = vpop.permute.xlu0 %5845
        %5847 = vset.pattern.permute.xlu0 0
        %5848 = vperm.xlu0 %5847, %v5077
        %v5849 = vpop.permute.xlu0 %5848
        %5850 = vset.pattern.permute.xlu0 0
        %5851 = vperm.xlu0 %5850, %v5078
        %v5852 = vpop.permute.xlu0 %5851
        %5853 = vset.pattern.permute.xlu0 0
        %5854 = vperm.xlu0 %5853, %v5079
        %v5855 = vpop.permute.xlu0 %5854
        %5856 = vset.pattern.permute.xlu0 0
        %5857 = vperm.xlu0 %5856, %v5080
        %v5858 = vpop.permute.xlu0 %5857
        %5859 = vset.pattern.permute.xlu0 0
        %5860 = vperm.xlu0 %5859, %v5081
        %v5861 = vpop.permute.xlu0 %5860
        %5862 = vset.pattern.permute.xlu0 0
        %5863 = vperm.xlu0 %5862, %v5082
        %v5864 = vpop.permute.xlu0 %5863
        %5865 = vset.pattern.permute.xlu0 0
        %5866 = vperm.xlu0 %5865, %v5083
        %v5867 = vpop.permute.xlu0 %5866
        %5868 = vset.pattern.permute.xlu0 0
        %5869 = vperm.xlu0 %5868, %v5084
        %v5870 = vpop.permute.xlu0 %5869
        %5871 = vset.pattern.permute.xlu0 0
        %5872 = vperm.xlu0 %5871, %v5085
        %v5873 = vpop.permute.xlu0 %5872
        %5874 = vset.pattern.permute.xlu0 0
        %5875 = vperm.xlu0 %5874, %v5086
        %v5876 = vpop.permute.xlu0 %5875
        %5877 = vset.pattern.permute.xlu0 0
        %5878 = vperm.xlu0 %5877, %v5087
        %v5879 = vpop.permute.xlu0 %5878
        %5880 = vset.pattern.permute.xlu0 0
        %5881 = vperm.xlu0 %5880, %v5088
        %v5882 = vpop.permute.xlu0 %5881
        %5883 = vset.pattern.permute.xlu0 0
        %5884 = vperm.xlu0 %5883, %v5089
        %v5885 = vpop.permute.xlu0 %5884
        %5886 = vset.pattern.permute.xlu0 0
        %5887 = vperm.xlu0 %5886, %v5090
        %v5888 = vpop.permute.xlu0 %5887
        %5889 = vset.pattern.permute.xlu0 0
        %5890 = vperm.xlu0 %5889, %v5091
        %v5891 = vpop.permute.xlu0 %5890
        %5892 = vset.pattern.permute.xlu0 0
        %5893 = vperm.xlu0 %5892, %v5092
        %v5894 = vpop.permute.xlu0 %5893
        %5895 = vset.pattern.permute.xlu0 0
        %5896 = vperm.xlu0 %5895, %v5093
        %v5897 = vpop.permute.xlu0 %5896
        %5898 = vset.pattern.permute.xlu0 0
        %5899 = vperm.xlu0 %5898, %v5094
        %v5900 = vpop.permute.xlu0 %5899
        %5901 = vset.pattern.permute.xlu0 0
        %5902 = vperm.xlu0 %5901, %v5095
        %v5903 = vpop.permute.xlu0 %5902
        %5904 = vset.pattern.permute.xlu0 0
        %5905 = vperm.xlu0 %5904, %v5096
        %v5906 = vpop.permute.xlu0 %5905
        %5907 = vset.pattern.permute.xlu0 0
        %5908 = vperm.xlu0 %5907, %v5097
        %v5909 = vpop.permute.xlu0 %5908
        %5910 = vset.pattern.permute.xlu0 0
        %5911 = vperm.xlu0 %5910, %v5098
        %v5912 = vpop.permute.xlu0 %5911
        %5913 = vset.pattern.permute.xlu0 0
        %5914 = vperm.xlu0 %5913, %v5099
        %v5915 = vpop.permute.xlu0 %5914
        %5916 = vset.pattern.permute.xlu0 0
        %5917 = vperm.xlu0 %5916, %v5100
        %v5918 = vpop.permute.xlu0 %5917
        %5919 = vset.pattern.permute.xlu0 0
        %5920 = vperm.xlu0 %5919, %v5101
        %v5921 = vpop.permute.xlu0 %5920
        %5922 = vset.pattern.permute.xlu0 0
        %5923 = vperm.xlu0 %5922, %v5102
        %v5924 = vpop.permute.xlu0 %5923
        %5925 = vset.pattern.permute.xlu0 0
        %5926 = vperm.xlu0 %5925, %v5103
        %v5927 = vpop.permute.xlu0 %5926
        %5928 = vset.pattern.permute.xlu0 0
        %5929 = vperm.xlu0 %5928, %v5104
        %v5930 = vpop.permute.xlu0 %5929
        %5931 = vset.pattern.permute.xlu0 0
        %5932 = vperm.xlu0 %5931, %v5105
        %v5933 = vpop.permute.xlu0 %5932
        %5934 = vset.pattern.permute.xlu0 0
        %5935 = vperm.xlu0 %5934, %v5106
        %v5936 = vpop.permute.xlu0 %5935
        %5937 = vset.pattern.permute.xlu0 0
        %5938 = vperm.xlu0 %5937, %v5107
        %v5939 = vpop.permute.xlu0 %5938
        %5940 = vset.pattern.permute.xlu0 0
        %5941 = vperm.xlu0 %5940, %v5108
        %v5942 = vpop.permute.xlu0 %5941
        %5943 = vset.pattern.permute.xlu0 0
        %5944 = vperm.xlu0 %5943, %v5109
        %v5945 = vpop.permute.xlu0 %5944
        %5946 = vset.pattern.permute.xlu0 0
        %5947 = vperm.xlu0 %5946, %v5110
        %v5948 = vpop.permute.xlu0 %5947
        %5949 = vset.pattern.permute.xlu0 0
        %5950 = vperm.xlu0 %5949, %v5111
        %v5951 = vpop.permute.xlu0 %5950
        %5952 = vset.pattern.permute.xlu0 0
        %5953 = vperm.xlu0 %5952, %v5112
        %v5954 = vpop.permute.xlu0 %5953
        %5955 = vset.pattern.permute.xlu0 0
        %5956 = vperm.xlu0 %5955, %v5113
        %v5957 = vpop.permute.xlu0 %5956
        %5958 = vset.pattern.permute.xlu0 0
        %5959 = vperm.xlu0 %5958, %v5114
        %v5960 = vpop.permute.xlu0 %5959
        %5961 = vset.pattern.permute.xlu0 0
        %5962 = vperm.xlu0 %5961, %v5115
        %v5963 = vpop.permute.xlu0 %5962
        %5964 = vset.pattern.permute.xlu0 0
        %5965 = vperm.xlu0 %5964, %v5116
        %v5966 = vpop.permute.xlu0 %5965
        %5967 = vset.pattern.permute.xlu0 0
        %5968 = vperm.xlu0 %5967, %v5117
        %v5969 = vpop.permute.xlu0 %5968
        %5970 = vset.pattern.permute.xlu0 0
        %5971 = vperm.xlu0 %5970, %v5118
        %v5972 = vpop.permute.xlu0 %5971
        %5973 = vset.pattern.permute.xlu0 0
        %5974 = vperm.xlu0 %5973, %v5119
        %v5975 = vpop.permute.xlu0 %5974
        %5976 = vset.pattern.permute.xlu0 0
        %5977 = vperm.xlu0 %5976, %v5120
        %v5978 = vpop.permute.xlu0 %5977
        %5979 = vset.pattern.permute.xlu0 0
        %5980 = vperm.xlu0 %5979, %v5121
        %v5981 = vpop.permute.xlu0 %5980
        %5982 = vset.pattern.permute.xlu0 0
        %5983 = vperm.xlu0 %5982, %v5122
        %v5984 = vpop.permute.xlu0 %5983
        %5985 = vset.pattern.permute.xlu0 0
        %5986 = vperm.xlu0 %5985, %v5123
        %v5987 = vpop.permute.xlu0 %5986
        %5988 = vset.pattern.permute.xlu0 0
        %5989 = vperm.xlu0 %5988, %v5124
        %v5990 = vpop.permute.xlu0 %5989
        %5991 = vset.pattern.permute.xlu0 0
        %5992 = vperm.xlu0 %5991, %v5125
        %v5993 = vpop.permute.xlu0 %5992
        %5994 = vset.pattern.permute.xlu0 0
        %5995 = vperm.xlu0 %5994, %v5126
        %v5996 = vpop.permute.xlu0 %5995
        %5997 = vset.pattern.permute.xlu0 0
        %5998 = vperm.xlu0 %5997, %v5127
        %v5999 = vpop.permute.xlu0 %5998
        %6000 = vset.pattern.permute.xlu0 0
        %6001 = vperm.xlu0 %6000, %v5128
        %v6002 = vpop.permute.xlu0 %6001
        %6003 = vset.pattern.permute.xlu0 0
        %6004 = vperm.xlu0 %6003, %v5129
        %v6005 = vpop.permute.xlu0 %6004
        %6006 = vset.pattern.permute.xlu0 0
        %6007 = vperm.xlu0 %6006, %v5130
        %v6008 = vpop.permute.xlu0 %6007
        %6009 = vset.pattern.permute.xlu0 0
        %6010 = vperm.xlu0 %6009, %v5131
        %v6011 = vpop.permute.xlu0 %6010
        %6012 = vset.pattern.permute.xlu0 0
        %6013 = vperm.xlu0 %6012, %v5132
        %v6014 = vpop.permute.xlu0 %6013
        %6015 = vset.pattern.permute.xlu0 0
        %6016 = vperm.xlu0 %6015, %v5133
        %v6017 = vpop.permute.xlu0 %6016
        %6018 = vset.pattern.permute.xlu0 0
        %6019 = vperm.xlu0 %6018, %v5134
        %v6020 = vpop.permute.xlu0 %6019
        %6021 = vset.pattern.permute.xlu0 0
        %6022 = vperm.xlu0 %6021, %v5135
        %v6023 = vpop.permute.xlu0 %6022
        %6024 = vset.pattern.permute.xlu0 0
        %6025 = vperm.xlu0 %6024, %v5136
        %v6026 = vpop.permute.xlu0 %6025
        %6027 = vset.pattern.permute.xlu0 0
        %6028 = vperm.xlu0 %6027, %v5137
        %v6029 = vpop.permute.xlu0 %6028
        %6030 = vset.pattern.permute.xlu0 0
        %6031 = vperm.xlu0 %6030, %v5138
        %v6032 = vpop.permute.xlu0 %6031
        %6033 = vset.pattern.permute.xlu0 0
        %6034 = vperm.xlu0 %6033, %v5139
        %v6035 = vpop.permute.xlu0 %6034
        %6036 = vset.pattern.permute.xlu0 0
        %6037 = vperm.xlu0 %6036, %v5140
        %v6038 = vpop.permute.xlu0 %6037
        %6039 = vset.pattern.permute.xlu0 0
        %6040 = vperm.xlu0 %6039, %v5141
        %v6041 = vpop.permute.xlu0 %6040
        %6042 = vset.pattern.permute.xlu0 0
        %6043 = vperm.xlu0 %6042, %v5142
        %v6044 = vpop.permute.xlu0 %6043
        %6045 = vset.pattern.permute.xlu0 0
        %6046 = vperm.xlu0 %6045, %v5143
        %v6047 = vpop.permute.xlu0 %6046
        %6048 = vset.pattern.permute.xlu0 0
        %6049 = vperm.xlu0 %6048, %v5144
        %v6050 = vpop.permute.xlu0 %6049
        %6051 = vset.pattern.permute.xlu0 0
        %6052 = vperm.xlu0 %6051, %v5145
        %v6053 = vpop.permute.xlu0 %6052
        %6054 = vset.pattern.permute.xlu0 0
        %6055 = vperm.xlu0 %6054, %v5146
        %v6056 = vpop.permute.xlu0 %6055
        %6057 = vset.pattern.permute.xlu0 0
        %6058 = vperm.xlu0 %6057, %v5147
        %v6059 = vpop.permute.xlu0 %6058
        %6060 = vset.pattern.permute.xlu0 0
        %6061 = vperm.xlu0 %6060, %v5148
        %v6062 = vpop.permute.xlu0 %6061
        %6063 = vset.pattern.permute.xlu0 0
        %6064 = vperm.xlu0 %6063, %v5149
        %v6065 = vpop.permute.xlu0 %6064
        %6066 = vset.pattern.permute.xlu0 0
        %6067 = vperm.xlu0 %6066, %v5150
        %v6068 = vpop.permute.xlu0 %6067
        %6069 = vset.pattern.permute.xlu0 0
        %6070 = vperm.xlu0 %6069, %v5151
        %v6071 = vpop.permute.xlu0 %6070
        %6072 = vset.pattern.permute.xlu0 0
        %6073 = vperm.xlu0 %6072, %v5152
        %v6074 = vpop.permute.xlu0 %6073
        %6075 = vset.pattern.permute.xlu0 0
        %6076 = vperm.xlu0 %6075, %v5153
        %v6077 = vpop.permute.xlu0 %6076
        %6078 = vset.pattern.permute.xlu0 0
        %6079 = vperm.xlu0 %6078, %v5154
        %v6080 = vpop.permute.xlu0 %6079
        %6081 = vset.pattern.permute.xlu0 0
        %6082 = vperm.xlu0 %6081, %v5155
        %v6083 = vpop.permute.xlu0 %6082
        %6084 = vset.pattern.permute.xlu0 0
        %6085 = vperm.xlu0 %6084, %v5156
        %v6086 = vpop.permute.xlu0 %6085
        %6087 = vset.pattern.permute.xlu0 0
        %6088 = vperm.xlu0 %6087, %v5157
        %v6089 = vpop.permute.xlu0 %6088
        %6090 = vset.pattern.permute.xlu0 0
        %6091 = vperm.xlu0 %6090, %v5158
        %v6092 = vpop.permute.xlu0 %6091
        %6093 = vset.pattern.permute.xlu0 0
        %6094 = vperm.xlu0 %6093, %v5159
        %v6095 = vpop.permute.xlu0 %6094
        %6096 = vset.pattern.permute.xlu0 0
        %6097 = vperm.xlu0 %6096, %v5160
        %v6098 = vpop.permute.xlu0 %6097
        %6099 = vset.pattern.permute.xlu0 0
        %6100 = vperm.xlu0 %6099, %v5161
        %v6101 = vpop.permute.xlu0 %6100
        %6102 = vset.pattern.permute.xlu0 0
        %6103 = vperm.xlu0 %6102, %v5162
        %v6104 = vpop.permute.xlu0 %6103
        %6105 = vset.pattern.permute.xlu0 0
        %6106 = vperm.xlu0 %6105, %v5163
        %v6107 = vpop.permute.xlu0 %6106
        %6108 = vset.pattern.permute.xlu0 0
        %6109 = vperm.xlu0 %6108, %v5164
        %v6110 = vpop.permute.xlu0 %6109
        %6111 = vset.pattern.permute.xlu0 0
        %6112 = vperm.xlu0 %6111, %v5165
        %v6113 = vpop.permute.xlu0 %6112
        %6114 = vset.pattern.permute.xlu0 0
        %6115 = vperm.xlu0 %6114, %v5166
        %v6116 = vpop.permute.xlu0 %6115
        %6117 = vset.pattern.permute.xlu0 0
        %6118 = vperm.xlu0 %6117, %v5167
        %v6119 = vpop.permute.xlu0 %6118
        %6120 = vset.pattern.permute.xlu0 0
        %6121 = vperm.xlu0 %6120, %v5168
        %v6122 = vpop.permute.xlu0 %6121
        %6123 = vset.pattern.permute.xlu0 0
        %6124 = vperm.xlu0 %6123, %v5169
        %v6125 = vpop.permute.xlu0 %6124
        %6126 = vset.pattern.permute.xlu0 0
        %6127 = vperm.xlu0 %6126, %v5170
        %v6128 = vpop.permute.xlu0 %6127
        %6129 = vset.pattern.permute.xlu0 0
        %6130 = vperm.xlu0 %6129, %v5171
        %v6131 = vpop.permute.xlu0 %6130
        %6132 = vset.pattern.permute.xlu0 0
        %6133 = vperm.xlu0 %6132, %v5172
        %v6134 = vpop.permute.xlu0 %6133
        %6135 = vset.pattern.permute.xlu0 0
        %6136 = vperm.xlu0 %6135, %v5173
        %v6137 = vpop.permute.xlu0 %6136
        %6138 = vset.pattern.permute.xlu0 0
        %6139 = vperm.xlu0 %6138, %v5174
        %v6140 = vpop.permute.xlu0 %6139
        %6141 = vset.pattern.permute.xlu0 0
        %6142 = vperm.xlu0 %6141, %v5175
        %v6143 = vpop.permute.xlu0 %6142
        %6144 = vset.pattern.permute.xlu0 0
        %6145 = vperm.xlu0 %6144, %v5176
        %v6146 = vpop.permute.xlu0 %6145
        %6147 = vset.pattern.permute.xlu0 0
        %6148 = vperm.xlu0 %6147, %v5177
        %v6149 = vpop.permute.xlu0 %6148
        %6150 = vset.pattern.permute.xlu0 0
        %6151 = vperm.xlu0 %6150, %v5178
        %v6152 = vpop.permute.xlu0 %6151
        %6153 = vset.pattern.permute.xlu0 0
        %6154 = vperm.xlu0 %6153, %v5179
        %v6155 = vpop.permute.xlu0 %6154
        %6156 = vset.pattern.permute.xlu0 0
        %6157 = vperm.xlu0 %6156, %v5180
        %v6158 = vpop.permute.xlu0 %6157
        %6159 = vset.pattern.permute.xlu0 0
        %6160 = vperm.xlu0 %6159, %v5181
        %v6161 = vpop.permute.xlu0 %6160
        %6162 = vset.pattern.permute.xlu0 0
        %6163 = vperm.xlu0 %6162, %v5182
        %v6164 = vpop.permute.xlu0 %6163
        %6165 = vset.pattern.permute.xlu0 0
        %6166 = vperm.xlu0 %6165, %v5183
        %v6167 = vpop.permute.xlu0 %6166
        %6168 = vset.pattern.permute.xlu0 0
        %6169 = vperm.xlu0 %6168, %v5184
        %v6170 = vpop.permute.xlu0 %6169
        %6171 = vset.pattern.permute.xlu0 0
        %6172 = vperm.xlu0 %6171, %v5185
        %v6173 = vpop.permute.xlu0 %6172
        %6174 = vset.pattern.permute.xlu0 0
        %6175 = vperm.xlu0 %6174, %v5186
        %v6176 = vpop.permute.xlu0 %6175
        %6177 = vset.pattern.permute.xlu0 0
        %6178 = vperm.xlu0 %6177, %v5187
        %v6179 = vpop.permute.xlu0 %6178
        %6180 = vset.pattern.permute.xlu0 0
        %6181 = vperm.xlu0 %6180, %v5188
        %v6182 = vpop.permute.xlu0 %6181
        %6183 = vset.pattern.permute.xlu0 0
        %6184 = vperm.xlu0 %6183, %v5189
        %v6185 = vpop.permute.xlu0 %6184
        %6186 = vset.pattern.permute.xlu0 0
        %6187 = vperm.xlu0 %6186, %v5190
        %v6188 = vpop.permute.xlu0 %6187
        %6189 = vset.pattern.permute.xlu0 0
        %6190 = vperm.xlu0 %6189, %v5191
        %v6191 = vpop.permute.xlu0 %6190
        %6192 = vset.pattern.permute.xlu0 0
        %6193 = vperm.xlu0 %6192, %v5192
        %v6194 = vpop.permute.xlu0 %6193
        %6195 = vset.pattern.permute.xlu0 0
        %6196 = vperm.xlu0 %6195, %v5193
        %v6197 = vpop.permute.xlu0 %6196
        %6198 = vset.pattern.permute.xlu0 0
        %6199 = vperm.xlu0 %6198, %v5194
        %v6200 = vpop.permute.xlu0 %6199
        %6201 = vset.pattern.permute.xlu0 0
        %6202 = vperm.xlu0 %6201, %v5195
        %v6203 = vpop.permute.xlu0 %6202
        %6204 = vset.pattern.permute.xlu0 0
        %6205 = vperm.xlu0 %6204, %v5196
        %v6206 = vpop.permute.xlu0 %6205
        %6207 = vset.pattern.permute.xlu0 0
        %6208 = vperm.xlu0 %6207, %v5197
        %v6209 = vpop.permute.xlu0 %6208
        %6210 = vset.pattern.permute.xlu0 0
        %6211 = vperm.xlu0 %6210, %v5198
        %v6212 = vpop.permute.xlu0 %6211
        %6213 = vset.pattern.permute.xlu0 0
        %6214 = vperm.xlu0 %6213, %v5199
        %v6215 = vpop.permute.xlu0 %6214
        %6216 = vset.pattern.permute.xlu0 0
        %6217 = vperm.xlu0 %6216, %v5200
        %v6218 = vpop.permute.xlu0 %6217
        %6219 = vset.pattern.permute.xlu0 0
        %6220 = vperm.xlu0 %6219, %v5201
        %v6221 = vpop.permute.xlu0 %6220
        %6222 = vset.pattern.permute.xlu0 0
        %6223 = vperm.xlu0 %6222, %v5202
        %v6224 = vpop.permute.xlu0 %6223
        %6225 = vset.pattern.permute.xlu0 0
        %6226 = vperm.xlu0 %6225, %v5203
        %v6227 = vpop.permute.xlu0 %6226
        %v6228 = vlaneseq
        %v6229 = vshrl.u32 %v6228, 7
        %v6230 = vsub.s32 %v3584, %v6229
        %v6231 = vrot.slane %v5462, %v6230
        %v6232 = vlaneseq
        %v6233 = vshrl.u32 %v6232, 7
        %v6234 = vsub.s32 %v3589, %v6233
        %v6235 = vrot.slane %v5465, %v6234
        %v6236 = vsel %vm3594, %v6235, %v6231
        %v6237 = vlaneseq
        %v6238 = vshrl.u32 %v6237, 7
        %v6239 = vsub.s32 %v3596, %v6238
        %v6240 = vrot.slane %v5468, %v6239
        %v6241 = vsel %vm3601, %v6240, %v6236
        %v6242 = vlaneseq
        %v6243 = vshrl.u32 %v6242, 7
        %v6244 = vsub.s32 %v3603, %v6243
        %v6245 = vrot.slane %v5471, %v6244
        %v6246 = vsel %vm3608, %v6245, %v6241
        %v6247 = vlaneseq
        %v6248 = vshrl.u32 %v6247, 7
        %v6249 = vsub.s32 %v3610, %v6248
        %v6250 = vrot.slane %v5474, %v6249
        %v6251 = vsel %vm3615, %v6250, %v6246
        %v6252 = vlaneseq
        %v6253 = vshrl.u32 %v6252, 7
        %v6254 = vsub.s32 %v3617, %v6253
        %v6255 = vrot.slane %v5477, %v6254
        %v6256 = vsel %vm3622, %v6255, %v6251
        %v6257 = vlaneseq
        %v6258 = vshrl.u32 %v6257, 7
        %v6259 = vsub.s32 %v3624, %v6258
        %v6260 = vrot.slane %v5480, %v6259
        %v6261 = vsel %vm3629, %v6260, %v6256
        %v6262 = vlaneseq
        %v6263 = vshrl.u32 %v6262, 7
        %v6264 = vsub.s32 %v3631, %v6263
        %v6265 = vrot.slane %v5483, %v6264
        %v6266 = vsel %vm3636, %v6265, %v6261
        %v6267 = vlaneseq
        %v6268 = vshrl.u32 %v6267, 7
        %v6269 = vsub.s32 %v3638, %v6268
        %v6270 = vrot.slane %v5486, %v6269
        %v6271 = vsel %vm3643, %v6270, %v6266
        %v6272 = vlaneseq
        %v6273 = vshrl.u32 %v6272, 7
        %v6274 = vsub.s32 %v3645, %v6273
        %v6275 = vrot.slane %v5489, %v6274
        %v6276 = vsel %vm3650, %v6275, %v6271
        %v6277 = vlaneseq
        %v6278 = vshrl.u32 %v6277, 7
        %v6279 = vsub.s32 %v3652, %v6278
        %v6280 = vrot.slane %v5492, %v6279
        %v6281 = vsel %vm3657, %v6280, %v6276
        %v6282 = vlaneseq
        %v6283 = vshrl.u32 %v6282, 7
        %v6284 = vsub.s32 %v3659, %v6283
        %v6285 = vrot.slane %v5495, %v6284
        %v6286 = vsel %vm3664, %v6285, %v6281
        %v6287 = vlaneseq
        %v6288 = vshrl.u32 %v6287, 7
        %v6289 = vsub.s32 %v3666, %v6288
        %v6290 = vrot.slane %v5498, %v6289
        %v6291 = vsel %vm3671, %v6290, %v6286
        %v6292 = vlaneseq
        %v6293 = vshrl.u32 %v6292, 7
        %v6294 = vsub.s32 %v3673, %v6293
        %v6295 = vrot.slane %v5501, %v6294
        %v6296 = vsel %vm3678, %v6295, %v6291
        %v6297 = vlaneseq
        %v6298 = vshrl.u32 %v6297, 7
        %v6299 = vsub.s32 %v3680, %v6298
        %v6300 = vrot.slane %v5504, %v6299
        %v6301 = vsel %vm3685, %v6300, %v6296
        %v6302 = vlaneseq
        %v6303 = vshrl.u32 %v6302, 7
        %v6304 = vsub.s32 %v3687, %v6303
        %v6305 = vrot.slane %v5507, %v6304
        %v6306 = vsel %vm3692, %v6305, %v6301
        %v6307 = vlaneseq
        %v6308 = vshrl.u32 %v6307, 7
        %v6309 = vsub.s32 %v3584, %v6308
        %v6310 = vrot.slane %v5510, %v6309
        %v6311 = vlaneseq
        %v6312 = vshrl.u32 %v6311, 7
        %v6313 = vsub.s32 %v3589, %v6312
        %v6314 = vrot.slane %v5513, %v6313
        %v6315 = vsel %vm3594, %v6314, %v6310
        %v6316 = vlaneseq
        %v6317 = vshrl.u32 %v6316, 7
        %v6318 = vsub.s32 %v3596, %v6317
        %v6319 = vrot.slane %v5516, %v6318
        %v6320 = vsel %vm3601, %v6319, %v6315
        %v6321 = vlaneseq
        %v6322 = vshrl.u32 %v6321, 7
        %v6323 = vsub.s32 %v3603, %v6322
        %v6324 = vrot.slane %v5519, %v6323
        %v6325 = vsel %vm3608, %v6324, %v6320
        %v6326 = vlaneseq
        %v6327 = vshrl.u32 %v6326, 7
        %v6328 = vsub.s32 %v3610, %v6327
        %v6329 = vrot.slane %v5522, %v6328
        %v6330 = vsel %vm3615, %v6329, %v6325
        %v6331 = vlaneseq
        %v6332 = vshrl.u32 %v6331, 7
        %v6333 = vsub.s32 %v3617, %v6332
        %v6334 = vrot.slane %v5525, %v6333
        %v6335 = vsel %vm3622, %v6334, %v6330
        %v6336 = vlaneseq
        %v6337 = vshrl.u32 %v6336, 7
        %v6338 = vsub.s32 %v3624, %v6337
        %v6339 = vrot.slane %v5528, %v6338
        %v6340 = vsel %vm3629, %v6339, %v6335
        %v6341 = vlaneseq
        %v6342 = vshrl.u32 %v6341, 7
        %v6343 = vsub.s32 %v3631, %v6342
        %v6344 = vrot.slane %v5531, %v6343
        %v6345 = vsel %vm3636, %v6344, %v6340
        %v6346 = vlaneseq
        %v6347 = vshrl.u32 %v6346, 7
        %v6348 = vsub.s32 %v3638, %v6347
        %v6349 = vrot.slane %v5534, %v6348
        %v6350 = vsel %vm3643, %v6349, %v6345
        %v6351 = vlaneseq
        %v6352 = vshrl.u32 %v6351, 7
        %v6353 = vsub.s32 %v3645, %v6352
        %v6354 = vrot.slane %v5537, %v6353
        %v6355 = vsel %vm3650, %v6354, %v6350
        %v6356 = vlaneseq
        %v6357 = vshrl.u32 %v6356, 7
        %v6358 = vsub.s32 %v3652, %v6357
        %v6359 = vrot.slane %v5540, %v6358
        %v6360 = vsel %vm3657, %v6359, %v6355
        %v6361 = vlaneseq
        %v6362 = vshrl.u32 %v6361, 7
        %v6363 = vsub.s32 %v3659, %v6362
        %v6364 = vrot.slane %v5543, %v6363
        %v6365 = vsel %vm3664, %v6364, %v6360
        %v6366 = vlaneseq
        %v6367 = vshrl.u32 %v6366, 7
        %v6368 = vsub.s32 %v3666, %v6367
        %v6369 = vrot.slane %v5546, %v6368
        %v6370 = vsel %vm3671, %v6369, %v6365
        %v6371 = vlaneseq
        %v6372 = vshrl.u32 %v6371, 7
        %v6373 = vsub.s32 %v3673, %v6372
        %v6374 = vrot.slane %v5549, %v6373
        %v6375 = vsel %vm3678, %v6374, %v6370
        %v6376 = vlaneseq
        %v6377 = vshrl.u32 %v6376, 7
        %v6378 = vsub.s32 %v3680, %v6377
        %v6379 = vrot.slane %v5552, %v6378
        %v6380 = vsel %vm3685, %v6379, %v6375
        %v6381 = vlaneseq
        %v6382 = vshrl.u32 %v6381, 7
        %v6383 = vsub.s32 %v3687, %v6382
        %v6384 = vrot.slane %v5555, %v6383
        %v6385 = vsel %vm3692, %v6384, %v6380
        %v6386 = vlaneseq
        %v6387 = vshrl.u32 %v6386, 7
        %v6388 = vsub.s32 %v3584, %v6387
        %v6389 = vrot.slane %v5558, %v6388
        %v6390 = vlaneseq
        %v6391 = vshrl.u32 %v6390, 7
        %v6392 = vsub.s32 %v3589, %v6391
        %v6393 = vrot.slane %v5561, %v6392
        %v6394 = vsel %vm3594, %v6393, %v6389
        %v6395 = vlaneseq
        %v6396 = vshrl.u32 %v6395, 7
        %v6397 = vsub.s32 %v3596, %v6396
        %v6398 = vrot.slane %v5564, %v6397
        %v6399 = vsel %vm3601, %v6398, %v6394
        %v6400 = vlaneseq
        %v6401 = vshrl.u32 %v6400, 7
        %v6402 = vsub.s32 %v3603, %v6401
        %v6403 = vrot.slane %v5567, %v6402
        %v6404 = vsel %vm3608, %v6403, %v6399
        %v6405 = vlaneseq
        %v6406 = vshrl.u32 %v6405, 7
        %v6407 = vsub.s32 %v3610, %v6406
        %v6408 = vrot.slane %v5570, %v6407
        %v6409 = vsel %vm3615, %v6408, %v6404
        %v6410 = vlaneseq
        %v6411 = vshrl.u32 %v6410, 7
        %v6412 = vsub.s32 %v3617, %v6411
        %v6413 = vrot.slane %v5573, %v6412
        %v6414 = vsel %vm3622, %v6413, %v6409
        %v6415 = vlaneseq
        %v6416 = vshrl.u32 %v6415, 7
        %v6417 = vsub.s32 %v3624, %v6416
        %v6418 = vrot.slane %v5576, %v6417
        %v6419 = vsel %vm3629, %v6418, %v6414
        %v6420 = vlaneseq
        %v6421 = vshrl.u32 %v6420, 7
        %v6422 = vsub.s32 %v3631, %v6421
        %v6423 = vrot.slane %v5579, %v6422
        %v6424 = vsel %vm3636, %v6423, %v6419
        %v6425 = vlaneseq
        %v6426 = vshrl.u32 %v6425, 7
        %v6427 = vsub.s32 %v3638, %v6426
        %v6428 = vrot.slane %v5582, %v6427
        %v6429 = vsel %vm3643, %v6428, %v6424
        %v6430 = vlaneseq
        %v6431 = vshrl.u32 %v6430, 7
        %v6432 = vsub.s32 %v3645, %v6431
        %v6433 = vrot.slane %v5585, %v6432
        %v6434 = vsel %vm3650, %v6433, %v6429
        %v6435 = vlaneseq
        %v6436 = vshrl.u32 %v6435, 7
        %v6437 = vsub.s32 %v3652, %v6436
        %v6438 = vrot.slane %v5588, %v6437
        %v6439 = vsel %vm3657, %v6438, %v6434
        %v6440 = vlaneseq
        %v6441 = vshrl.u32 %v6440, 7
        %v6442 = vsub.s32 %v3659, %v6441
        %v6443 = vrot.slane %v5591, %v6442
        %v6444 = vsel %vm3664, %v6443, %v6439
        %v6445 = vlaneseq
        %v6446 = vshrl.u32 %v6445, 7
        %v6447 = vsub.s32 %v3666, %v6446
        %v6448 = vrot.slane %v5594, %v6447
        %v6449 = vsel %vm3671, %v6448, %v6444
        %v6450 = vlaneseq
        %v6451 = vshrl.u32 %v6450, 7
        %v6452 = vsub.s32 %v3673, %v6451
        %v6453 = vrot.slane %v5597, %v6452
        %v6454 = vsel %vm3678, %v6453, %v6449
        %v6455 = vlaneseq
        %v6456 = vshrl.u32 %v6455, 7
        %v6457 = vsub.s32 %v3680, %v6456
        %v6458 = vrot.slane %v5600, %v6457
        %v6459 = vsel %vm3685, %v6458, %v6454
        %v6460 = vlaneseq
        %v6461 = vshrl.u32 %v6460, 7
        %v6462 = vsub.s32 %v3687, %v6461
        %v6463 = vrot.slane %v5603, %v6462
        %v6464 = vsel %vm3692, %v6463, %v6459
        %v6465 = vlaneseq
        %v6466 = vshrl.u32 %v6465, 7
        %v6467 = vsub.s32 %v3584, %v6466
        %v6468 = vrot.slane %v5606, %v6467
        %v6469 = vlaneseq
        %v6470 = vshrl.u32 %v6469, 7
        %v6471 = vsub.s32 %v3589, %v6470
        %v6472 = vrot.slane %v5609, %v6471
        %v6473 = vsel %vm3594, %v6472, %v6468
        %v6474 = vlaneseq
        %v6475 = vshrl.u32 %v6474, 7
        %v6476 = vsub.s32 %v3596, %v6475
        %v6477 = vrot.slane %v5612, %v6476
        %v6478 = vsel %vm3601, %v6477, %v6473
        %v6479 = vlaneseq
        %v6480 = vshrl.u32 %v6479, 7
        %v6481 = vsub.s32 %v3603, %v6480
        %v6482 = vrot.slane %v5615, %v6481
        %v6483 = vsel %vm3608, %v6482, %v6478
        %v6484 = vlaneseq
        %v6485 = vshrl.u32 %v6484, 7
        %v6486 = vsub.s32 %v3610, %v6485
        %v6487 = vrot.slane %v5618, %v6486
        %v6488 = vsel %vm3615, %v6487, %v6483
        %v6489 = vlaneseq
        %v6490 = vshrl.u32 %v6489, 7
        %v6491 = vsub.s32 %v3617, %v6490
        %v6492 = vrot.slane %v5621, %v6491
        %v6493 = vsel %vm3622, %v6492, %v6488
        %v6494 = vlaneseq
        %v6495 = vshrl.u32 %v6494, 7
        %v6496 = vsub.s32 %v3624, %v6495
        %v6497 = vrot.slane %v5624, %v6496
        %v6498 = vsel %vm3629, %v6497, %v6493
        %v6499 = vlaneseq
        %v6500 = vshrl.u32 %v6499, 7
        %v6501 = vsub.s32 %v3631, %v6500
        %v6502 = vrot.slane %v5627, %v6501
        %v6503 = vsel %vm3636, %v6502, %v6498
        %v6504 = vlaneseq
        %v6505 = vshrl.u32 %v6504, 7
        %v6506 = vsub.s32 %v3638, %v6505
        %v6507 = vrot.slane %v5630, %v6506
        %v6508 = vsel %vm3643, %v6507, %v6503
        %v6509 = vlaneseq
        %v6510 = vshrl.u32 %v6509, 7
        %v6511 = vsub.s32 %v3645, %v6510
        %v6512 = vrot.slane %v5633, %v6511
        %v6513 = vsel %vm3650, %v6512, %v6508
        %v6514 = vlaneseq
        %v6515 = vshrl.u32 %v6514, 7
        %v6516 = vsub.s32 %v3652, %v6515
        %v6517 = vrot.slane %v5636, %v6516
        %v6518 = vsel %vm3657, %v6517, %v6513
        %v6519 = vlaneseq
        %v6520 = vshrl.u32 %v6519, 7
        %v6521 = vsub.s32 %v3659, %v6520
        %v6522 = vrot.slane %v5639, %v6521
        %v6523 = vsel %vm3664, %v6522, %v6518
        %v6524 = vlaneseq
        %v6525 = vshrl.u32 %v6524, 7
        %v6526 = vsub.s32 %v3666, %v6525
        %v6527 = vrot.slane %v5642, %v6526
        %v6528 = vsel %vm3671, %v6527, %v6523
        %v6529 = vlaneseq
        %v6530 = vshrl.u32 %v6529, 7
        %v6531 = vsub.s32 %v3673, %v6530
        %v6532 = vrot.slane %v5645, %v6531
        %v6533 = vsel %vm3678, %v6532, %v6528
        %v6534 = vlaneseq
        %v6535 = vshrl.u32 %v6534, 7
        %v6536 = vsub.s32 %v3680, %v6535
        %v6537 = vrot.slane %v5648, %v6536
        %v6538 = vsel %vm3685, %v6537, %v6533
        %v6539 = vlaneseq
        %v6540 = vshrl.u32 %v6539, 7
        %v6541 = vsub.s32 %v3687, %v6540
        %v6542 = vrot.slane %v5651, %v6541
        %v6543 = vsel %vm3692, %v6542, %v6538
        %v6544 = vlaneseq
        %v6545 = vshrl.u32 %v6544, 7
        %v6546 = vsub.s32 %v3584, %v6545
        %v6547 = vrot.slane %v5654, %v6546
        %v6548 = vlaneseq
        %v6549 = vshrl.u32 %v6548, 7
        %v6550 = vsub.s32 %v3589, %v6549
        %v6551 = vrot.slane %v5657, %v6550
        %v6552 = vsel %vm3594, %v6551, %v6547
        %v6553 = vlaneseq
        %v6554 = vshrl.u32 %v6553, 7
        %v6555 = vsub.s32 %v3596, %v6554
        %v6556 = vrot.slane %v5660, %v6555
        %v6557 = vsel %vm3601, %v6556, %v6552
        %v6558 = vlaneseq
        %v6559 = vshrl.u32 %v6558, 7
        %v6560 = vsub.s32 %v3603, %v6559
        %v6561 = vrot.slane %v5663, %v6560
        %v6562 = vsel %vm3608, %v6561, %v6557
        %v6563 = vlaneseq
        %v6564 = vshrl.u32 %v6563, 7
        %v6565 = vsub.s32 %v3610, %v6564
        %v6566 = vrot.slane %v5666, %v6565
        %v6567 = vsel %vm3615, %v6566, %v6562
        %v6568 = vlaneseq
        %v6569 = vshrl.u32 %v6568, 7
        %v6570 = vsub.s32 %v3617, %v6569
        %v6571 = vrot.slane %v5669, %v6570
        %v6572 = vsel %vm3622, %v6571, %v6567
        %v6573 = vlaneseq
        %v6574 = vshrl.u32 %v6573, 7
        %v6575 = vsub.s32 %v3624, %v6574
        %v6576 = vrot.slane %v5672, %v6575
        %v6577 = vsel %vm3629, %v6576, %v6572
        %v6578 = vlaneseq
        %v6579 = vshrl.u32 %v6578, 7
        %v6580 = vsub.s32 %v3631, %v6579
        %v6581 = vrot.slane %v5675, %v6580
        %v6582 = vsel %vm3636, %v6581, %v6577
        %v6583 = vlaneseq
        %v6584 = vshrl.u32 %v6583, 7
        %v6585 = vsub.s32 %v3638, %v6584
        %v6586 = vrot.slane %v5678, %v6585
        %v6587 = vsel %vm3643, %v6586, %v6582
        %v6588 = vlaneseq
        %v6589 = vshrl.u32 %v6588, 7
        %v6590 = vsub.s32 %v3645, %v6589
        %v6591 = vrot.slane %v5681, %v6590
        %v6592 = vsel %vm3650, %v6591, %v6587
        %v6593 = vlaneseq
        %v6594 = vshrl.u32 %v6593, 7
        %v6595 = vsub.s32 %v3652, %v6594
        %v6596 = vrot.slane %v5684, %v6595
        %v6597 = vsel %vm3657, %v6596, %v6592
        %v6598 = vlaneseq
        %v6599 = vshrl.u32 %v6598, 7
        %v6600 = vsub.s32 %v3659, %v6599
        %v6601 = vrot.slane %v5687, %v6600
        %v6602 = vsel %vm3664, %v6601, %v6597
        %v6603 = vlaneseq
        %v6604 = vshrl.u32 %v6603, 7
        %v6605 = vsub.s32 %v3666, %v6604
        %v6606 = vrot.slane %v5690, %v6605
        %v6607 = vsel %vm3671, %v6606, %v6602
        %v6608 = vlaneseq
        %v6609 = vshrl.u32 %v6608, 7
        %v6610 = vsub.s32 %v3673, %v6609
        %v6611 = vrot.slane %v5693, %v6610
        %v6612 = vsel %vm3678, %v6611, %v6607
        %v6613 = vlaneseq
        %v6614 = vshrl.u32 %v6613, 7
        %v6615 = vsub.s32 %v3680, %v6614
        %v6616 = vrot.slane %v5696, %v6615
        %v6617 = vsel %vm3685, %v6616, %v6612
        %v6618 = vlaneseq
        %v6619 = vshrl.u32 %v6618, 7
        %v6620 = vsub.s32 %v3687, %v6619
        %v6621 = vrot.slane %v5699, %v6620
        %v6622 = vsel %vm3692, %v6621, %v6617
        %v6623 = vlaneseq
        %v6624 = vshrl.u32 %v6623, 7
        %v6625 = vsub.s32 %v3584, %v6624
        %v6626 = vrot.slane %v5702, %v6625
        %v6627 = vlaneseq
        %v6628 = vshrl.u32 %v6627, 7
        %v6629 = vsub.s32 %v3589, %v6628
        %v6630 = vrot.slane %v5705, %v6629
        %v6631 = vsel %vm3594, %v6630, %v6626
        %v6632 = vlaneseq
        %v6633 = vshrl.u32 %v6632, 7
        %v6634 = vsub.s32 %v3596, %v6633
        %v6635 = vrot.slane %v5708, %v6634
        %v6636 = vsel %vm3601, %v6635, %v6631
        %v6637 = vlaneseq
        %v6638 = vshrl.u32 %v6637, 7
        %v6639 = vsub.s32 %v3603, %v6638
        %v6640 = vrot.slane %v5711, %v6639
        %v6641 = vsel %vm3608, %v6640, %v6636
        %v6642 = vlaneseq
        %v6643 = vshrl.u32 %v6642, 7
        %v6644 = vsub.s32 %v3610, %v6643
        %v6645 = vrot.slane %v5714, %v6644
        %v6646 = vsel %vm3615, %v6645, %v6641
        %v6647 = vlaneseq
        %v6648 = vshrl.u32 %v6647, 7
        %v6649 = vsub.s32 %v3617, %v6648
        %v6650 = vrot.slane %v5717, %v6649
        %v6651 = vsel %vm3622, %v6650, %v6646
        %v6652 = vlaneseq
        %v6653 = vshrl.u32 %v6652, 7
        %v6654 = vsub.s32 %v3624, %v6653
        %v6655 = vrot.slane %v5720, %v6654
        %v6656 = vsel %vm3629, %v6655, %v6651
        %v6657 = vlaneseq
        %v6658 = vshrl.u32 %v6657, 7
        %v6659 = vsub.s32 %v3631, %v6658
        %v6660 = vrot.slane %v5723, %v6659
        %v6661 = vsel %vm3636, %v6660, %v6656
        %v6662 = vlaneseq
        %v6663 = vshrl.u32 %v6662, 7
        %v6664 = vsub.s32 %v3638, %v6663
        %v6665 = vrot.slane %v5726, %v6664
        %v6666 = vsel %vm3643, %v6665, %v6661
        %v6667 = vlaneseq
        %v6668 = vshrl.u32 %v6667, 7
        %v6669 = vsub.s32 %v3645, %v6668
        %v6670 = vrot.slane %v5729, %v6669
        %v6671 = vsel %vm3650, %v6670, %v6666
        %v6672 = vlaneseq
        %v6673 = vshrl.u32 %v6672, 7
        %v6674 = vsub.s32 %v3652, %v6673
        %v6675 = vrot.slane %v5732, %v6674
        %v6676 = vsel %vm3657, %v6675, %v6671
        %v6677 = vlaneseq
        %v6678 = vshrl.u32 %v6677, 7
        %v6679 = vsub.s32 %v3659, %v6678
        %v6680 = vrot.slane %v5735, %v6679
        %v6681 = vsel %vm3664, %v6680, %v6676
        %v6682 = vlaneseq
        %v6683 = vshrl.u32 %v6682, 7
        %v6684 = vsub.s32 %v3666, %v6683
        %v6685 = vrot.slane %v5738, %v6684
        %v6686 = vsel %vm3671, %v6685, %v6681
        %v6687 = vlaneseq
        %v6688 = vshrl.u32 %v6687, 7
        %v6689 = vsub.s32 %v3673, %v6688
        %v6690 = vrot.slane %v5741, %v6689
        %v6691 = vsel %vm3678, %v6690, %v6686
        %v6692 = vlaneseq
        %v6693 = vshrl.u32 %v6692, 7
        %v6694 = vsub.s32 %v3680, %v6693
        %v6695 = vrot.slane %v5744, %v6694
        %v6696 = vsel %vm3685, %v6695, %v6691
        %v6697 = vlaneseq
        %v6698 = vshrl.u32 %v6697, 7
        %v6699 = vsub.s32 %v3687, %v6698
        %v6700 = vrot.slane %v5747, %v6699
        %v6701 = vsel %vm3692, %v6700, %v6696
        %v6702 = vlaneseq
        %v6703 = vshrl.u32 %v6702, 7
        %v6704 = vsub.s32 %v3584, %v6703
        %v6705 = vrot.slane %v5750, %v6704
        %v6706 = vlaneseq
        %v6707 = vshrl.u32 %v6706, 7
        %v6708 = vsub.s32 %v3589, %v6707
        %v6709 = vrot.slane %v5753, %v6708
        %v6710 = vsel %vm3594, %v6709, %v6705
        %v6711 = vlaneseq
        %v6712 = vshrl.u32 %v6711, 7
        %v6713 = vsub.s32 %v3596, %v6712
        %v6714 = vrot.slane %v5756, %v6713
        %v6715 = vsel %vm3601, %v6714, %v6710
        %v6716 = vlaneseq
        %v6717 = vshrl.u32 %v6716, 7
        %v6718 = vsub.s32 %v3603, %v6717
        %v6719 = vrot.slane %v5759, %v6718
        %v6720 = vsel %vm3608, %v6719, %v6715
        %v6721 = vlaneseq
        %v6722 = vshrl.u32 %v6721, 7
        %v6723 = vsub.s32 %v3610, %v6722
        %v6724 = vrot.slane %v5762, %v6723
        %v6725 = vsel %vm3615, %v6724, %v6720
        %v6726 = vlaneseq
        %v6727 = vshrl.u32 %v6726, 7
        %v6728 = vsub.s32 %v3617, %v6727
        %v6729 = vrot.slane %v5765, %v6728
        %v6730 = vsel %vm3622, %v6729, %v6725
        %v6731 = vlaneseq
        %v6732 = vshrl.u32 %v6731, 7
        %v6733 = vsub.s32 %v3624, %v6732
        %v6734 = vrot.slane %v5768, %v6733
        %v6735 = vsel %vm3629, %v6734, %v6730
        %v6736 = vlaneseq
        %v6737 = vshrl.u32 %v6736, 7
        %v6738 = vsub.s32 %v3631, %v6737
        %v6739 = vrot.slane %v5771, %v6738
        %v6740 = vsel %vm3636, %v6739, %v6735
        %v6741 = vlaneseq
        %v6742 = vshrl.u32 %v6741, 7
        %v6743 = vsub.s32 %v3638, %v6742
        %v6744 = vrot.slane %v5774, %v6743
        %v6745 = vsel %vm3643, %v6744, %v6740
        %v6746 = vlaneseq
        %v6747 = vshrl.u32 %v6746, 7
        %v6748 = vsub.s32 %v3645, %v6747
        %v6749 = vrot.slane %v5777, %v6748
        %v6750 = vsel %vm3650, %v6749, %v6745
        %v6751 = vlaneseq
        %v6752 = vshrl.u32 %v6751, 7
        %v6753 = vsub.s32 %v3652, %v6752
        %v6754 = vrot.slane %v5780, %v6753
        %v6755 = vsel %vm3657, %v6754, %v6750
        %v6756 = vlaneseq
        %v6757 = vshrl.u32 %v6756, 7
        %v6758 = vsub.s32 %v3659, %v6757
        %v6759 = vrot.slane %v5783, %v6758
        %v6760 = vsel %vm3664, %v6759, %v6755
        %v6761 = vlaneseq
        %v6762 = vshrl.u32 %v6761, 7
        %v6763 = vsub.s32 %v3666, %v6762
        %v6764 = vrot.slane %v5786, %v6763
        %v6765 = vsel %vm3671, %v6764, %v6760
        %v6766 = vlaneseq
        %v6767 = vshrl.u32 %v6766, 7
        %v6768 = vsub.s32 %v3673, %v6767
        %v6769 = vrot.slane %v5789, %v6768
        %v6770 = vsel %vm3678, %v6769, %v6765
        %v6771 = vlaneseq
        %v6772 = vshrl.u32 %v6771, 7
        %v6773 = vsub.s32 %v3680, %v6772
        %v6774 = vrot.slane %v5792, %v6773
        %v6775 = vsel %vm3685, %v6774, %v6770
        %v6776 = vlaneseq
        %v6777 = vshrl.u32 %v6776, 7
        %v6778 = vsub.s32 %v3687, %v6777
        %v6779 = vrot.slane %v5795, %v6778
        %v6780 = vsel %vm3692, %v6779, %v6775
        %v6781 = vlaneseq
        %v6782 = vshrl.u32 %v6781, 7
        %v6783 = vsub.s32 %v3584, %v6782
        %v6784 = vrot.slane %v5798, %v6783
        %v6785 = vlaneseq
        %v6786 = vshrl.u32 %v6785, 7
        %v6787 = vsub.s32 %v3589, %v6786
        %v6788 = vrot.slane %v5801, %v6787
        %v6789 = vsel %vm3594, %v6788, %v6784
        %v6790 = vlaneseq
        %v6791 = vshrl.u32 %v6790, 7
        %v6792 = vsub.s32 %v3596, %v6791
        %v6793 = vrot.slane %v5804, %v6792
        %v6794 = vsel %vm3601, %v6793, %v6789
        %v6795 = vlaneseq
        %v6796 = vshrl.u32 %v6795, 7
        %v6797 = vsub.s32 %v3603, %v6796
        %v6798 = vrot.slane %v5807, %v6797
        %v6799 = vsel %vm3608, %v6798, %v6794
        %v6800 = vlaneseq
        %v6801 = vshrl.u32 %v6800, 7
        %v6802 = vsub.s32 %v3610, %v6801
        %v6803 = vrot.slane %v5810, %v6802
        %v6804 = vsel %vm3615, %v6803, %v6799
        %v6805 = vlaneseq
        %v6806 = vshrl.u32 %v6805, 7
        %v6807 = vsub.s32 %v3617, %v6806
        %v6808 = vrot.slane %v5813, %v6807
        %v6809 = vsel %vm3622, %v6808, %v6804
        %v6810 = vlaneseq
        %v6811 = vshrl.u32 %v6810, 7
        %v6812 = vsub.s32 %v3624, %v6811
        %v6813 = vrot.slane %v5816, %v6812
        %v6814 = vsel %vm3629, %v6813, %v6809
        %v6815 = vlaneseq
        %v6816 = vshrl.u32 %v6815, 7
        %v6817 = vsub.s32 %v3631, %v6816
        %v6818 = vrot.slane %v5819, %v6817
        %v6819 = vsel %vm3636, %v6818, %v6814
        %v6820 = vlaneseq
        %v6821 = vshrl.u32 %v6820, 7
        %v6822 = vsub.s32 %v3638, %v6821
        %v6823 = vrot.slane %v5822, %v6822
        %v6824 = vsel %vm3643, %v6823, %v6819
        %v6825 = vlaneseq
        %v6826 = vshrl.u32 %v6825, 7
        %v6827 = vsub.s32 %v3645, %v6826
        %v6828 = vrot.slane %v5825, %v6827
        %v6829 = vsel %vm3650, %v6828, %v6824
        %v6830 = vlaneseq
        %v6831 = vshrl.u32 %v6830, 7
        %v6832 = vsub.s32 %v3652, %v6831
        %v6833 = vrot.slane %v5828, %v6832
        %v6834 = vsel %vm3657, %v6833, %v6829
        %v6835 = vlaneseq
        %v6836 = vshrl.u32 %v6835, 7
        %v6837 = vsub.s32 %v3659, %v6836
        %v6838 = vrot.slane %v5831, %v6837
        %v6839 = vsel %vm3664, %v6838, %v6834
        %v6840 = vlaneseq
        %v6841 = vshrl.u32 %v6840, 7
        %v6842 = vsub.s32 %v3666, %v6841
        %v6843 = vrot.slane %v5834, %v6842
        %v6844 = vsel %vm3671, %v6843, %v6839
        %v6845 = vlaneseq
        %v6846 = vshrl.u32 %v6845, 7
        %v6847 = vsub.s32 %v3673, %v6846
        %v6848 = vrot.slane %v5837, %v6847
        %v6849 = vsel %vm3678, %v6848, %v6844
        %v6850 = vlaneseq
        %v6851 = vshrl.u32 %v6850, 7
        %v6852 = vsub.s32 %v3680, %v6851
        %v6853 = vrot.slane %v5840, %v6852
        %v6854 = vsel %vm3685, %v6853, %v6849
        %v6855 = vlaneseq
        %v6856 = vshrl.u32 %v6855, 7
        %v6857 = vsub.s32 %v3687, %v6856
        %v6858 = vrot.slane %v5843, %v6857
        %v6859 = vsel %vm3692, %v6858, %v6854
        %v6860 = vlaneseq
        %v6861 = vshrl.u32 %v6860, 7
        %v6862 = vsub.s32 %v3584, %v6861
        %v6863 = vrot.slane %v5846, %v6862
        %v6864 = vlaneseq
        %v6865 = vshrl.u32 %v6864, 7
        %v6866 = vsub.s32 %v3589, %v6865
        %v6867 = vrot.slane %v5849, %v6866
        %v6868 = vsel %vm3594, %v6867, %v6863
        %v6869 = vlaneseq
        %v6870 = vshrl.u32 %v6869, 7
        %v6871 = vsub.s32 %v3596, %v6870
        %v6872 = vrot.slane %v5852, %v6871
        %v6873 = vsel %vm3601, %v6872, %v6868
        %v6874 = vlaneseq
        %v6875 = vshrl.u32 %v6874, 7
        %v6876 = vsub.s32 %v3603, %v6875
        %v6877 = vrot.slane %v5855, %v6876
        %v6878 = vsel %vm3608, %v6877, %v6873
        %v6879 = vlaneseq
        %v6880 = vshrl.u32 %v6879, 7
        %v6881 = vsub.s32 %v3610, %v6880
        %v6882 = vrot.slane %v5858, %v6881
        %v6883 = vsel %vm3615, %v6882, %v6878
        %v6884 = vlaneseq
        %v6885 = vshrl.u32 %v6884, 7
        %v6886 = vsub.s32 %v3617, %v6885
        %v6887 = vrot.slane %v5861, %v6886
        %v6888 = vsel %vm3622, %v6887, %v6883
        %v6889 = vlaneseq
        %v6890 = vshrl.u32 %v6889, 7
        %v6891 = vsub.s32 %v3624, %v6890
        %v6892 = vrot.slane %v5864, %v6891
        %v6893 = vsel %vm3629, %v6892, %v6888
        %v6894 = vlaneseq
        %v6895 = vshrl.u32 %v6894, 7
        %v6896 = vsub.s32 %v3631, %v6895
        %v6897 = vrot.slane %v5867, %v6896
        %v6898 = vsel %vm3636, %v6897, %v6893
        %v6899 = vlaneseq
        %v6900 = vshrl.u32 %v6899, 7
        %v6901 = vsub.s32 %v3638, %v6900
        %v6902 = vrot.slane %v5870, %v6901
        %v6903 = vsel %vm3643, %v6902, %v6898
        %v6904 = vlaneseq
        %v6905 = vshrl.u32 %v6904, 7
        %v6906 = vsub.s32 %v3645, %v6905
        %v6907 = vrot.slane %v5873, %v6906
        %v6908 = vsel %vm3650, %v6907, %v6903
        %v6909 = vlaneseq
        %v6910 = vshrl.u32 %v6909, 7
        %v6911 = vsub.s32 %v3652, %v6910
        %v6912 = vrot.slane %v5876, %v6911
        %v6913 = vsel %vm3657, %v6912, %v6908
        %v6914 = vlaneseq
        %v6915 = vshrl.u32 %v6914, 7
        %v6916 = vsub.s32 %v3659, %v6915
        %v6917 = vrot.slane %v5879, %v6916
        %v6918 = vsel %vm3664, %v6917, %v6913
        %v6919 = vlaneseq
        %v6920 = vshrl.u32 %v6919, 7
        %v6921 = vsub.s32 %v3666, %v6920
        %v6922 = vrot.slane %v5882, %v6921
        %v6923 = vsel %vm3671, %v6922, %v6918
        %v6924 = vlaneseq
        %v6925 = vshrl.u32 %v6924, 7
        %v6926 = vsub.s32 %v3673, %v6925
        %v6927 = vrot.slane %v5885, %v6926
        %v6928 = vsel %vm3678, %v6927, %v6923
        %v6929 = vlaneseq
        %v6930 = vshrl.u32 %v6929, 7
        %v6931 = vsub.s32 %v3680, %v6930
        %v6932 = vrot.slane %v5888, %v6931
        %v6933 = vsel %vm3685, %v6932, %v6928
        %v6934 = vlaneseq
        %v6935 = vshrl.u32 %v6934, 7
        %v6936 = vsub.s32 %v3687, %v6935
        %v6937 = vrot.slane %v5891, %v6936
        %v6938 = vsel %vm3692, %v6937, %v6933
        %v6939 = vlaneseq
        %v6940 = vshrl.u32 %v6939, 7
        %v6941 = vsub.s32 %v3584, %v6940
        %v6942 = vrot.slane %v5894, %v6941
        %v6943 = vlaneseq
        %v6944 = vshrl.u32 %v6943, 7
        %v6945 = vsub.s32 %v3589, %v6944
        %v6946 = vrot.slane %v5897, %v6945
        %v6947 = vsel %vm3594, %v6946, %v6942
        %v6948 = vlaneseq
        %v6949 = vshrl.u32 %v6948, 7
        %v6950 = vsub.s32 %v3596, %v6949
        %v6951 = vrot.slane %v5900, %v6950
        %v6952 = vsel %vm3601, %v6951, %v6947
        %v6953 = vlaneseq
        %v6954 = vshrl.u32 %v6953, 7
        %v6955 = vsub.s32 %v3603, %v6954
        %v6956 = vrot.slane %v5903, %v6955
        %v6957 = vsel %vm3608, %v6956, %v6952
        %v6958 = vlaneseq
        %v6959 = vshrl.u32 %v6958, 7
        %v6960 = vsub.s32 %v3610, %v6959
        %v6961 = vrot.slane %v5906, %v6960
        %v6962 = vsel %vm3615, %v6961, %v6957
        %v6963 = vlaneseq
        %v6964 = vshrl.u32 %v6963, 7
        %v6965 = vsub.s32 %v3617, %v6964
        %v6966 = vrot.slane %v5909, %v6965
        %v6967 = vsel %vm3622, %v6966, %v6962
        %v6968 = vlaneseq
        %v6969 = vshrl.u32 %v6968, 7
        %v6970 = vsub.s32 %v3624, %v6969
        %v6971 = vrot.slane %v5912, %v6970
        %v6972 = vsel %vm3629, %v6971, %v6967
        %v6973 = vlaneseq
        %v6974 = vshrl.u32 %v6973, 7
        %v6975 = vsub.s32 %v3631, %v6974
        %v6976 = vrot.slane %v5915, %v6975
        %v6977 = vsel %vm3636, %v6976, %v6972
        %v6978 = vlaneseq
        %v6979 = vshrl.u32 %v6978, 7
        %v6980 = vsub.s32 %v3638, %v6979
        %v6981 = vrot.slane %v5918, %v6980
        %v6982 = vsel %vm3643, %v6981, %v6977
        %v6983 = vlaneseq
        %v6984 = vshrl.u32 %v6983, 7
        %v6985 = vsub.s32 %v3645, %v6984
        %v6986 = vrot.slane %v5921, %v6985
        %v6987 = vsel %vm3650, %v6986, %v6982
        %v6988 = vlaneseq
        %v6989 = vshrl.u32 %v6988, 7
        %v6990 = vsub.s32 %v3652, %v6989
        %v6991 = vrot.slane %v5924, %v6990
        %v6992 = vsel %vm3657, %v6991, %v6987
        %v6993 = vlaneseq
        %v6994 = vshrl.u32 %v6993, 7
        %v6995 = vsub.s32 %v3659, %v6994
        %v6996 = vrot.slane %v5927, %v6995
        %v6997 = vsel %vm3664, %v6996, %v6992
        %v6998 = vlaneseq
        %v6999 = vshrl.u32 %v6998, 7
        %v7000 = vsub.s32 %v3666, %v6999
        %v7001 = vrot.slane %v5930, %v7000
        %v7002 = vsel %vm3671, %v7001, %v6997
        %v7003 = vlaneseq
        %v7004 = vshrl.u32 %v7003, 7
        %v7005 = vsub.s32 %v3673, %v7004
        %v7006 = vrot.slane %v5933, %v7005
        %v7007 = vsel %vm3678, %v7006, %v7002
        %v7008 = vlaneseq
        %v7009 = vshrl.u32 %v7008, 7
        %v7010 = vsub.s32 %v3680, %v7009
        %v7011 = vrot.slane %v5936, %v7010
        %v7012 = vsel %vm3685, %v7011, %v7007
        %v7013 = vlaneseq
        %v7014 = vshrl.u32 %v7013, 7
        %v7015 = vsub.s32 %v3687, %v7014
        %v7016 = vrot.slane %v5939, %v7015
        %v7017 = vsel %vm3692, %v7016, %v7012
        %v7018 = vlaneseq
        %v7019 = vshrl.u32 %v7018, 7
        %v7020 = vsub.s32 %v3584, %v7019
        %v7021 = vrot.slane %v5942, %v7020
        %v7022 = vlaneseq
        %v7023 = vshrl.u32 %v7022, 7
        %v7024 = vsub.s32 %v3589, %v7023
        %v7025 = vrot.slane %v5945, %v7024
        %v7026 = vsel %vm3594, %v7025, %v7021
        %v7027 = vlaneseq
        %v7028 = vshrl.u32 %v7027, 7
        %v7029 = vsub.s32 %v3596, %v7028
        %v7030 = vrot.slane %v5948, %v7029
        %v7031 = vsel %vm3601, %v7030, %v7026
        %v7032 = vlaneseq
        %v7033 = vshrl.u32 %v7032, 7
        %v7034 = vsub.s32 %v3603, %v7033
        %v7035 = vrot.slane %v5951, %v7034
        %v7036 = vsel %vm3608, %v7035, %v7031
        %v7037 = vlaneseq
        %v7038 = vshrl.u32 %v7037, 7
        %v7039 = vsub.s32 %v3610, %v7038
        %v7040 = vrot.slane %v5954, %v7039
        %v7041 = vsel %vm3615, %v7040, %v7036
        %v7042 = vlaneseq
        %v7043 = vshrl.u32 %v7042, 7
        %v7044 = vsub.s32 %v3617, %v7043
        %v7045 = vrot.slane %v5957, %v7044
        %v7046 = vsel %vm3622, %v7045, %v7041
        %v7047 = vlaneseq
        %v7048 = vshrl.u32 %v7047, 7
        %v7049 = vsub.s32 %v3624, %v7048
        %v7050 = vrot.slane %v5960, %v7049
        %v7051 = vsel %vm3629, %v7050, %v7046
        %v7052 = vlaneseq
        %v7053 = vshrl.u32 %v7052, 7
        %v7054 = vsub.s32 %v3631, %v7053
        %v7055 = vrot.slane %v5963, %v7054
        %v7056 = vsel %vm3636, %v7055, %v7051
        %v7057 = vlaneseq
        %v7058 = vshrl.u32 %v7057, 7
        %v7059 = vsub.s32 %v3638, %v7058
        %v7060 = vrot.slane %v5966, %v7059
        %v7061 = vsel %vm3643, %v7060, %v7056
        %v7062 = vlaneseq
        %v7063 = vshrl.u32 %v7062, 7
        %v7064 = vsub.s32 %v3645, %v7063
        %v7065 = vrot.slane %v5969, %v7064
        %v7066 = vsel %vm3650, %v7065, %v7061
        %v7067 = vlaneseq
        %v7068 = vshrl.u32 %v7067, 7
        %v7069 = vsub.s32 %v3652, %v7068
        %v7070 = vrot.slane %v5972, %v7069
        %v7071 = vsel %vm3657, %v7070, %v7066
        %v7072 = vlaneseq
        %v7073 = vshrl.u32 %v7072, 7
        %v7074 = vsub.s32 %v3659, %v7073
        %v7075 = vrot.slane %v5975, %v7074
        %v7076 = vsel %vm3664, %v7075, %v7071
        %v7077 = vlaneseq
        %v7078 = vshrl.u32 %v7077, 7
        %v7079 = vsub.s32 %v3666, %v7078
        %v7080 = vrot.slane %v5978, %v7079
        %v7081 = vsel %vm3671, %v7080, %v7076
        %v7082 = vlaneseq
        %v7083 = vshrl.u32 %v7082, 7
        %v7084 = vsub.s32 %v3673, %v7083
        %v7085 = vrot.slane %v5981, %v7084
        %v7086 = vsel %vm3678, %v7085, %v7081
        %v7087 = vlaneseq
        %v7088 = vshrl.u32 %v7087, 7
        %v7089 = vsub.s32 %v3680, %v7088
        %v7090 = vrot.slane %v5984, %v7089
        %v7091 = vsel %vm3685, %v7090, %v7086
        %v7092 = vlaneseq
        %v7093 = vshrl.u32 %v7092, 7
        %v7094 = vsub.s32 %v3687, %v7093
        %v7095 = vrot.slane %v5987, %v7094
        %v7096 = vsel %vm3692, %v7095, %v7091
        %v7097 = vlaneseq
        %v7098 = vshrl.u32 %v7097, 7
        %v7099 = vsub.s32 %v3584, %v7098
        %v7100 = vrot.slane %v5990, %v7099
        %v7101 = vlaneseq
        %v7102 = vshrl.u32 %v7101, 7
        %v7103 = vsub.s32 %v3589, %v7102
        %v7104 = vrot.slane %v5993, %v7103
        %v7105 = vsel %vm3594, %v7104, %v7100
        %v7106 = vlaneseq
        %v7107 = vshrl.u32 %v7106, 7
        %v7108 = vsub.s32 %v3596, %v7107
        %v7109 = vrot.slane %v5996, %v7108
        %v7110 = vsel %vm3601, %v7109, %v7105
        %v7111 = vlaneseq
        %v7112 = vshrl.u32 %v7111, 7
        %v7113 = vsub.s32 %v3603, %v7112
        %v7114 = vrot.slane %v5999, %v7113
        %v7115 = vsel %vm3608, %v7114, %v7110
        %v7116 = vlaneseq
        %v7117 = vshrl.u32 %v7116, 7
        %v7118 = vsub.s32 %v3610, %v7117
        %v7119 = vrot.slane %v6002, %v7118
        %v7120 = vsel %vm3615, %v7119, %v7115
        %v7121 = vlaneseq
        %v7122 = vshrl.u32 %v7121, 7
        %v7123 = vsub.s32 %v3617, %v7122
        %v7124 = vrot.slane %v6005, %v7123
        %v7125 = vsel %vm3622, %v7124, %v7120
        %v7126 = vlaneseq
        %v7127 = vshrl.u32 %v7126, 7
        %v7128 = vsub.s32 %v3624, %v7127
        %v7129 = vrot.slane %v6008, %v7128
        %v7130 = vsel %vm3629, %v7129, %v7125
        %v7131 = vlaneseq
        %v7132 = vshrl.u32 %v7131, 7
        %v7133 = vsub.s32 %v3631, %v7132
        %v7134 = vrot.slane %v6011, %v7133
        %v7135 = vsel %vm3636, %v7134, %v7130
        %v7136 = vlaneseq
        %v7137 = vshrl.u32 %v7136, 7
        %v7138 = vsub.s32 %v3638, %v7137
        %v7139 = vrot.slane %v6014, %v7138
        %v7140 = vsel %vm3643, %v7139, %v7135
        %v7141 = vlaneseq
        %v7142 = vshrl.u32 %v7141, 7
        %v7143 = vsub.s32 %v3645, %v7142
        %v7144 = vrot.slane %v6017, %v7143
        %v7145 = vsel %vm3650, %v7144, %v7140
        %v7146 = vlaneseq
        %v7147 = vshrl.u32 %v7146, 7
        %v7148 = vsub.s32 %v3652, %v7147
        %v7149 = vrot.slane %v6020, %v7148
        %v7150 = vsel %vm3657, %v7149, %v7145
        %v7151 = vlaneseq
        %v7152 = vshrl.u32 %v7151, 7
        %v7153 = vsub.s32 %v3659, %v7152
        %v7154 = vrot.slane %v6023, %v7153
        %v7155 = vsel %vm3664, %v7154, %v7150
        %v7156 = vlaneseq
        %v7157 = vshrl.u32 %v7156, 7
        %v7158 = vsub.s32 %v3666, %v7157
        %v7159 = vrot.slane %v6026, %v7158
        %v7160 = vsel %vm3671, %v7159, %v7155
        %v7161 = vlaneseq
        %v7162 = vshrl.u32 %v7161, 7
        %v7163 = vsub.s32 %v3673, %v7162
        %v7164 = vrot.slane %v6029, %v7163
        %v7165 = vsel %vm3678, %v7164, %v7160
        %v7166 = vlaneseq
        %v7167 = vshrl.u32 %v7166, 7
        %v7168 = vsub.s32 %v3680, %v7167
        %v7169 = vrot.slane %v6032, %v7168
        %v7170 = vsel %vm3685, %v7169, %v7165
        %v7171 = vlaneseq
        %v7172 = vshrl.u32 %v7171, 7
        %v7173 = vsub.s32 %v3687, %v7172
        %v7174 = vrot.slane %v6035, %v7173
        %v7175 = vsel %vm3692, %v7174, %v7170
        %v7176 = vlaneseq
        %v7177 = vshrl.u32 %v7176, 7
        %v7178 = vsub.s32 %v3584, %v7177
        %v7179 = vrot.slane %v6038, %v7178
        %v7180 = vlaneseq
        %v7181 = vshrl.u32 %v7180, 7
        %v7182 = vsub.s32 %v3589, %v7181
        %v7183 = vrot.slane %v6041, %v7182
        %v7184 = vsel %vm3594, %v7183, %v7179
        %v7185 = vlaneseq
        %v7186 = vshrl.u32 %v7185, 7
        %v7187 = vsub.s32 %v3596, %v7186
        %v7188 = vrot.slane %v6044, %v7187
        %v7189 = vsel %vm3601, %v7188, %v7184
        %v7190 = vlaneseq
        %v7191 = vshrl.u32 %v7190, 7
        %v7192 = vsub.s32 %v3603, %v7191
        %v7193 = vrot.slane %v6047, %v7192
        %v7194 = vsel %vm3608, %v7193, %v7189
        %v7195 = vlaneseq
        %v7196 = vshrl.u32 %v7195, 7
        %v7197 = vsub.s32 %v3610, %v7196
        %v7198 = vrot.slane %v6050, %v7197
        %v7199 = vsel %vm3615, %v7198, %v7194
        %v7200 = vlaneseq
        %v7201 = vshrl.u32 %v7200, 7
        %v7202 = vsub.s32 %v3617, %v7201
        %v7203 = vrot.slane %v6053, %v7202
        %v7204 = vsel %vm3622, %v7203, %v7199
        %v7205 = vlaneseq
        %v7206 = vshrl.u32 %v7205, 7
        %v7207 = vsub.s32 %v3624, %v7206
        %v7208 = vrot.slane %v6056, %v7207
        %v7209 = vsel %vm3629, %v7208, %v7204
        %v7210 = vlaneseq
        %v7211 = vshrl.u32 %v7210, 7
        %v7212 = vsub.s32 %v3631, %v7211
        %v7213 = vrot.slane %v6059, %v7212
        %v7214 = vsel %vm3636, %v7213, %v7209
        %v7215 = vlaneseq
        %v7216 = vshrl.u32 %v7215, 7
        %v7217 = vsub.s32 %v3638, %v7216
        %v7218 = vrot.slane %v6062, %v7217
        %v7219 = vsel %vm3643, %v7218, %v7214
        %v7220 = vlaneseq
        %v7221 = vshrl.u32 %v7220, 7
        %v7222 = vsub.s32 %v3645, %v7221
        %v7223 = vrot.slane %v6065, %v7222
        %v7224 = vsel %vm3650, %v7223, %v7219
        %v7225 = vlaneseq
        %v7226 = vshrl.u32 %v7225, 7
        %v7227 = vsub.s32 %v3652, %v7226
        %v7228 = vrot.slane %v6068, %v7227
        %v7229 = vsel %vm3657, %v7228, %v7224
        %v7230 = vlaneseq
        %v7231 = vshrl.u32 %v7230, 7
        %v7232 = vsub.s32 %v3659, %v7231
        %v7233 = vrot.slane %v6071, %v7232
        %v7234 = vsel %vm3664, %v7233, %v7229
        %v7235 = vlaneseq
        %v7236 = vshrl.u32 %v7235, 7
        %v7237 = vsub.s32 %v3666, %v7236
        %v7238 = vrot.slane %v6074, %v7237
        %v7239 = vsel %vm3671, %v7238, %v7234
        %v7240 = vlaneseq
        %v7241 = vshrl.u32 %v7240, 7
        %v7242 = vsub.s32 %v3673, %v7241
        %v7243 = vrot.slane %v6077, %v7242
        %v7244 = vsel %vm3678, %v7243, %v7239
        %v7245 = vlaneseq
        %v7246 = vshrl.u32 %v7245, 7
        %v7247 = vsub.s32 %v3680, %v7246
        %v7248 = vrot.slane %v6080, %v7247
        %v7249 = vsel %vm3685, %v7248, %v7244
        %v7250 = vlaneseq
        %v7251 = vshrl.u32 %v7250, 7
        %v7252 = vsub.s32 %v3687, %v7251
        %v7253 = vrot.slane %v6083, %v7252
        %v7254 = vsel %vm3692, %v7253, %v7249
        %v7255 = vlaneseq
        %v7256 = vshrl.u32 %v7255, 7
        %v7257 = vsub.s32 %v3584, %v7256
        %v7258 = vrot.slane %v6086, %v7257
        %v7259 = vlaneseq
        %v7260 = vshrl.u32 %v7259, 7
        %v7261 = vsub.s32 %v3589, %v7260
        %v7262 = vrot.slane %v6089, %v7261
        %v7263 = vsel %vm3594, %v7262, %v7258
        %v7264 = vlaneseq
        %v7265 = vshrl.u32 %v7264, 7
        %v7266 = vsub.s32 %v3596, %v7265
        %v7267 = vrot.slane %v6092, %v7266
        %v7268 = vsel %vm3601, %v7267, %v7263
        %v7269 = vlaneseq
        %v7270 = vshrl.u32 %v7269, 7
        %v7271 = vsub.s32 %v3603, %v7270
        %v7272 = vrot.slane %v6095, %v7271
        %v7273 = vsel %vm3608, %v7272, %v7268
        %v7274 = vlaneseq
        %v7275 = vshrl.u32 %v7274, 7
        %v7276 = vsub.s32 %v3610, %v7275
        %v7277 = vrot.slane %v6098, %v7276
        %v7278 = vsel %vm3615, %v7277, %v7273
        %v7279 = vlaneseq
        %v7280 = vshrl.u32 %v7279, 7
        %v7281 = vsub.s32 %v3617, %v7280
        %v7282 = vrot.slane %v6101, %v7281
        %v7283 = vsel %vm3622, %v7282, %v7278
        %v7284 = vlaneseq
        %v7285 = vshrl.u32 %v7284, 7
        %v7286 = vsub.s32 %v3624, %v7285
        %v7287 = vrot.slane %v6104, %v7286
        %v7288 = vsel %vm3629, %v7287, %v7283
        %v7289 = vlaneseq
        %v7290 = vshrl.u32 %v7289, 7
        %v7291 = vsub.s32 %v3631, %v7290
        %v7292 = vrot.slane %v6107, %v7291
        %v7293 = vsel %vm3636, %v7292, %v7288
        %v7294 = vlaneseq
        %v7295 = vshrl.u32 %v7294, 7
        %v7296 = vsub.s32 %v3638, %v7295
        %v7297 = vrot.slane %v6110, %v7296
        %v7298 = vsel %vm3643, %v7297, %v7293
        %v7299 = vlaneseq
        %v7300 = vshrl.u32 %v7299, 7
        %v7301 = vsub.s32 %v3645, %v7300
        %v7302 = vrot.slane %v6113, %v7301
        %v7303 = vsel %vm3650, %v7302, %v7298
        %v7304 = vlaneseq
        %v7305 = vshrl.u32 %v7304, 7
        %v7306 = vsub.s32 %v3652, %v7305
        %v7307 = vrot.slane %v6116, %v7306
        %v7308 = vsel %vm3657, %v7307, %v7303
        %v7309 = vlaneseq
        %v7310 = vshrl.u32 %v7309, 7
        %v7311 = vsub.s32 %v3659, %v7310
        %v7312 = vrot.slane %v6119, %v7311
        %v7313 = vsel %vm3664, %v7312, %v7308
        %v7314 = vlaneseq
        %v7315 = vshrl.u32 %v7314, 7
        %v7316 = vsub.s32 %v3666, %v7315
        %v7317 = vrot.slane %v6122, %v7316
        %v7318 = vsel %vm3671, %v7317, %v7313
        %v7319 = vlaneseq
        %v7320 = vshrl.u32 %v7319, 7
        %v7321 = vsub.s32 %v3673, %v7320
        %v7322 = vrot.slane %v6125, %v7321
        %v7323 = vsel %vm3678, %v7322, %v7318
        %v7324 = vlaneseq
        %v7325 = vshrl.u32 %v7324, 7
        %v7326 = vsub.s32 %v3680, %v7325
        %v7327 = vrot.slane %v6128, %v7326
        %v7328 = vsel %vm3685, %v7327, %v7323
        %v7329 = vlaneseq
        %v7330 = vshrl.u32 %v7329, 7
        %v7331 = vsub.s32 %v3687, %v7330
        %v7332 = vrot.slane %v6131, %v7331
        %v7333 = vsel %vm3692, %v7332, %v7328
        %v7334 = vlaneseq
        %v7335 = vshrl.u32 %v7334, 7
        %v7336 = vsub.s32 %v3584, %v7335
        %v7337 = vrot.slane %v6134, %v7336
        %v7338 = vlaneseq
        %v7339 = vshrl.u32 %v7338, 7
        %v7340 = vsub.s32 %v3589, %v7339
        %v7341 = vrot.slane %v6137, %v7340
        %v7342 = vsel %vm3594, %v7341, %v7337
        %v7343 = vlaneseq
        %v7344 = vshrl.u32 %v7343, 7
        %v7345 = vsub.s32 %v3596, %v7344
        %v7346 = vrot.slane %v6140, %v7345
        %v7347 = vsel %vm3601, %v7346, %v7342
        %v7348 = vlaneseq
        %v7349 = vshrl.u32 %v7348, 7
        %v7350 = vsub.s32 %v3603, %v7349
        %v7351 = vrot.slane %v6143, %v7350
        %v7352 = vsel %vm3608, %v7351, %v7347
        %v7353 = vlaneseq
        %v7354 = vshrl.u32 %v7353, 7
        %v7355 = vsub.s32 %v3610, %v7354
        %v7356 = vrot.slane %v6146, %v7355
        %v7357 = vsel %vm3615, %v7356, %v7352
        %v7358 = vlaneseq
        %v7359 = vshrl.u32 %v7358, 7
        %v7360 = vsub.s32 %v3617, %v7359
        %v7361 = vrot.slane %v6149, %v7360
        %v7362 = vsel %vm3622, %v7361, %v7357
        %v7363 = vlaneseq
        %v7364 = vshrl.u32 %v7363, 7
        %v7365 = vsub.s32 %v3624, %v7364
        %v7366 = vrot.slane %v6152, %v7365
        %v7367 = vsel %vm3629, %v7366, %v7362
        %v7368 = vlaneseq
        %v7369 = vshrl.u32 %v7368, 7
        %v7370 = vsub.s32 %v3631, %v7369
        %v7371 = vrot.slane %v6155, %v7370
        %v7372 = vsel %vm3636, %v7371, %v7367
        %v7373 = vlaneseq
        %v7374 = vshrl.u32 %v7373, 7
        %v7375 = vsub.s32 %v3638, %v7374
        %v7376 = vrot.slane %v6158, %v7375
        %v7377 = vsel %vm3643, %v7376, %v7372
        %v7378 = vlaneseq
        %v7379 = vshrl.u32 %v7378, 7
        %v7380 = vsub.s32 %v3645, %v7379
        %v7381 = vrot.slane %v6161, %v7380
        %v7382 = vsel %vm3650, %v7381, %v7377
        %v7383 = vlaneseq
        %v7384 = vshrl.u32 %v7383, 7
        %v7385 = vsub.s32 %v3652, %v7384
        %v7386 = vrot.slane %v6164, %v7385
        %v7387 = vsel %vm3657, %v7386, %v7382
        %v7388 = vlaneseq
        %v7389 = vshrl.u32 %v7388, 7
        %v7390 = vsub.s32 %v3659, %v7389
        %v7391 = vrot.slane %v6167, %v7390
        %v7392 = vsel %vm3664, %v7391, %v7387
        %v7393 = vlaneseq
        %v7394 = vshrl.u32 %v7393, 7
        %v7395 = vsub.s32 %v3666, %v7394
        %v7396 = vrot.slane %v6170, %v7395
        %v7397 = vsel %vm3671, %v7396, %v7392
        %v7398 = vlaneseq
        %v7399 = vshrl.u32 %v7398, 7
        %v7400 = vsub.s32 %v3673, %v7399
        %v7401 = vrot.slane %v6173, %v7400
        %v7402 = vsel %vm3678, %v7401, %v7397
        %v7403 = vlaneseq
        %v7404 = vshrl.u32 %v7403, 7
        %v7405 = vsub.s32 %v3680, %v7404
        %v7406 = vrot.slane %v6176, %v7405
        %v7407 = vsel %vm3685, %v7406, %v7402
        %v7408 = vlaneseq
        %v7409 = vshrl.u32 %v7408, 7
        %v7410 = vsub.s32 %v3687, %v7409
        %v7411 = vrot.slane %v6179, %v7410
        %v7412 = vsel %vm3692, %v7411, %v7407
        %v7413 = vlaneseq
        %v7414 = vshrl.u32 %v7413, 7
        %v7415 = vsub.s32 %v3584, %v7414
        %v7416 = vrot.slane %v6182, %v7415
        %v7417 = vlaneseq
        %v7418 = vshrl.u32 %v7417, 7
        %v7419 = vsub.s32 %v3589, %v7418
        %v7420 = vrot.slane %v6185, %v7419
        %v7421 = vsel %vm3594, %v7420, %v7416
        %v7422 = vlaneseq
        %v7423 = vshrl.u32 %v7422, 7
        %v7424 = vsub.s32 %v3596, %v7423
        %v7425 = vrot.slane %v6188, %v7424
        %v7426 = vsel %vm3601, %v7425, %v7421
        %v7427 = vlaneseq
        %v7428 = vshrl.u32 %v7427, 7
        %v7429 = vsub.s32 %v3603, %v7428
        %v7430 = vrot.slane %v6191, %v7429
        %v7431 = vsel %vm3608, %v7430, %v7426
        %v7432 = vlaneseq
        %v7433 = vshrl.u32 %v7432, 7
        %v7434 = vsub.s32 %v3610, %v7433
        %v7435 = vrot.slane %v6194, %v7434
        %v7436 = vsel %vm3615, %v7435, %v7431
        %v7437 = vlaneseq
        %v7438 = vshrl.u32 %v7437, 7
        %v7439 = vsub.s32 %v3617, %v7438
        %v7440 = vrot.slane %v6197, %v7439
        %v7441 = vsel %vm3622, %v7440, %v7436
        %v7442 = vlaneseq
        %v7443 = vshrl.u32 %v7442, 7
        %v7444 = vsub.s32 %v3624, %v7443
        %v7445 = vrot.slane %v6200, %v7444
        %v7446 = vsel %vm3629, %v7445, %v7441
        %v7447 = vlaneseq
        %v7448 = vshrl.u32 %v7447, 7
        %v7449 = vsub.s32 %v3631, %v7448
        %v7450 = vrot.slane %v6203, %v7449
        %v7451 = vsel %vm3636, %v7450, %v7446
        %v7452 = vlaneseq
        %v7453 = vshrl.u32 %v7452, 7
        %v7454 = vsub.s32 %v3638, %v7453
        %v7455 = vrot.slane %v6206, %v7454
        %v7456 = vsel %vm3643, %v7455, %v7451
        %v7457 = vlaneseq
        %v7458 = vshrl.u32 %v7457, 7
        %v7459 = vsub.s32 %v3645, %v7458
        %v7460 = vrot.slane %v6209, %v7459
        %v7461 = vsel %vm3650, %v7460, %v7456
        %v7462 = vlaneseq
        %v7463 = vshrl.u32 %v7462, 7
        %v7464 = vsub.s32 %v3652, %v7463
        %v7465 = vrot.slane %v6212, %v7464
        %v7466 = vsel %vm3657, %v7465, %v7461
        %v7467 = vlaneseq
        %v7468 = vshrl.u32 %v7467, 7
        %v7469 = vsub.s32 %v3659, %v7468
        %v7470 = vrot.slane %v6215, %v7469
        %v7471 = vsel %vm3664, %v7470, %v7466
        %v7472 = vlaneseq
        %v7473 = vshrl.u32 %v7472, 7
        %v7474 = vsub.s32 %v3666, %v7473
        %v7475 = vrot.slane %v6218, %v7474
        %v7476 = vsel %vm3671, %v7475, %v7471
        %v7477 = vlaneseq
        %v7478 = vshrl.u32 %v7477, 7
        %v7479 = vsub.s32 %v3673, %v7478
        %v7480 = vrot.slane %v6221, %v7479
        %v7481 = vsel %vm3678, %v7480, %v7476
        %v7482 = vlaneseq
        %v7483 = vshrl.u32 %v7482, 7
        %v7484 = vsub.s32 %v3680, %v7483
        %v7485 = vrot.slane %v6224, %v7484
        %v7486 = vsel %vm3685, %v7485, %v7481
        %v7487 = vlaneseq
        %v7488 = vshrl.u32 %v7487, 7
        %v7489 = vsub.s32 %v3687, %v7488
        %v7490 = vrot.slane %v6227, %v7489
        %v7491 = vsel %vm3692, %v7490, %v7486
        %v7492 = vsel %vm4879, %v6464, %v6306
        %v7493 = vsel %vm4881, %v6622, %v7492
        %v7494 = vsel %vm4883, %v6780, %v7493
        %v7495 = vsel %vm4885, %v6938, %v7494
        %v7496 = vsel %vm4887, %v7096, %v7495
        %v7497 = vsel %vm4889, %v7254, %v7496
        %v7498 = vsel %vm4891, %v7412, %v7497
        %v7499 = vsel %vm4879, %v6543, %v6385
        %v7500 = vsel %vm4881, %v6701, %v7499
        %v7501 = vsel %vm4883, %v6859, %v7500
        %v7502 = vsel %vm4885, %v7017, %v7501
        %v7503 = vsel %vm4887, %v7175, %v7502
        %v7504 = vsel %vm4889, %v7333, %v7503
        %v7505 = vsel %vm4891, %v7491, %v7504
        %7508 = vst [vmem:[%s166] sm:$0xff] %v7498
        %7509 = vst [vmem:[%s166 + $0x8] sm:$0xff] %v7505
        %s7510 = sand.u32 %s93, 1
        %s7511 = scalar_lea.sflag [#allocation3], %s7510
        %s7512 = sand.u32 %s93, 1
        %s7513 = smul.addr %s7512, 16
        %s7514 = scalar_lea.vmem [#allocation2], %s7513
        // Predicated region
        $region33: #{tpu_custom_call.1} parent=31 // pred_check
          %p7515 = pneg %p103
        $region34: #{tpu_custom_call.1} parent=31 // pred_check_branch
          %7517 = sbr.rel (%p7515) target = $region36
        $region35: #{tpu_custom_call.1} parent=31 // pred_region
          %s7519 = ssub.s32 256, 256
          %7520 = vsyncadd %s7511, %s7519
          %s7521 = smul.addr %s17, 2
          %s7522 = smul.addr %s7521, 128
          %s7523 = scalar_lea.hbm %s3, %s7522
          %s7525 = sshll.u32 %s7514, 4
          %s7526 = int_to_ptr.vmem [resolvable:$true] %s7525
          %7528 = dma.vmem_to_hbm [thread:$0]  %s7526, 256, %s7523, %s7511
        $region36: #{tpu_custom_call.1} parent=31 // pred_fallthru
          _
      $region32: #{tpu_custom_call.1} parent=5 // pred_fallthru
        _
      %p7529 = scmp.le.s32.totalorder 2, %s12
      // Predicated region
      $region37: #{tpu_custom_call.1} parent=5 // pred_check
        %p7530 = pneg %p7529
      $region38: #{tpu_custom_call.1} parent=5 // pred_check_branch
        %7532 = sbr.rel (%p7530) target = $region40
      $region39: #{tpu_custom_call.1} parent=5 // pred_region
        %s7533 = ssub.s32 %s12, 2
        // Predicated region
        $region41: #{tpu_custom_call.1} parent=39 // pred_check
          %p7534 = pneg %p109
        $region42: #{tpu_custom_call.1} parent=39 // pred_check_branch
          %7536 = sbr.rel (%p7534) target = $region44
        $region43: #{tpu_custom_call.1} parent=39 // pred_region
          %s7537 = sand.u32 %s94, 1
          %s7538 = scalar_lea.sflag [#allocation3], %s7537
          %s7539 = sand.u32 %s94, 1
          %s7540 = smul.addr %s7539, 16
          %s7541 = scalar_lea.vmem [#allocation2], %s7540
          %7542 = dma.done %s7538, 256
        $region44: #{tpu_custom_call.1} parent=39 // pred_fallthru
          _
      $region40: #{tpu_custom_call.1} parent=5 // pred_fallthru
        _
    $region6: #{tpu_custom_call.1} parent=1 // loop_footer
      %s16 = sadd.s32 1, %s12
    $region7: #{tpu_custom_call.1} parent=1 // loop_footer_branch
      %11 = sbr.rel target = $region3
    $region8: #{tpu_custom_call.1} parent=1 // loop_exit
      _
    %7543 = vsyncpa [#allocation3], 1
    %s7544 = scalar_lea.sflag [#allocation3], 1
    %7545 = vsyncpa %s7544, 1

</llo_original>
